<compile_context>
chip_gen: v6e
topology: v6e:2x2x1
jax: 0.10.0
libtpu: 0.0.40
codegen_flags: <defaults>
</compile_context>

<pallas_src>
import functools
import math

import jax
import jax.numpy as jnp
import numpy as np
from jax.experimental import pallas as pl
from jax.experimental.pallas import tpu as pltpu


# ---------------------------------------------------------------------------
# block_embedding — same math as the PyTorch helper, returns a jnp array
# ---------------------------------------------------------------------------
def block_embedding(length, dim, min_timescale=1.0, max_timescale=10000.0):
    position = np.arange(length)
    num_timescales = dim // 2
    log_timescale_increment = math.log(float(max_timescale) / float(min_timescale)) / (
        float(num_timescales) - 1
    )
    inv_timescales = min_timescale * np.exp(
        np.arange(num_timescales).astype(np.float32) * -log_timescale_increment
    )
    scaled_time = np.expand_dims(position, 1) * np.expand_dims(inv_timescales, 0)
    signal = np.concatenate([np.sin(scaled_time), np.cos(scaled_time)], axis=1)
    signal = np.pad(signal, [[0, 0], [0, dim % 2]], "constant", constant_values=0.0)
    signal = signal.reshape([1, length, dim])
    return jnp.asarray(signal, dtype=jnp.float32)


# ---------------------------------------------------------------------------
# Fused decoder kernel: grid = (batch, layer); x stays resident across layers
# ---------------------------------------------------------------------------
def _decoder_kernel(
    # data
    trg_ref, mem_ref, smask_ref, tmask_ref, sig_ref,
    # self-attention + LN1
    wqkv_s_ref, bqkv_s_ref, wo_s_ref, bo_s_ref, g1_ref, be1_ref,
    # cross-attention + LN2
    wq_c_ref, bq_c_ref, wk_c_ref, wv_c_ref, bv_c_ref, wo_c_ref, bo_c_ref,
    g2_ref, be2_ref,
    # FFN + LN3
    w1_ref, b1_ref, w2_ref, b2_ref, g3_ref, be3_ref,
    # outputs
    out_ref, attn_ref,
    # scratch (persists across the layer grid axis)
    x_scratch, kc_scratch, vc_scratch,
    *, n_heads, eps=1e-5,
):
    l = pl.program_id(1)
    n_layers = pl.num_programs(1)
    T, D = x_scratch.shape
    S = kc_scratch.shape[0]
    dh = D // n_heads
    is_last = l == n_layers - 1

    @pl.when(l == 0)
    def _init():
        # activation accumulator starts from the decoder input (once per batch)
        x_scratch[...] = trg_ref[0]
        # cross-attn K/V: memory & weights are layer-invariant -> compute once
        mem = mem_ref[0].astype(jnp.bfloat16)
        kc = jnp.dot(mem, wk_c_ref[...], preferred_element_type=jnp.float32)
        vc = jnp.dot(mem, wv_c_ref[...],
                     preferred_element_type=jnp.float32) + bv_c_ref[...]
        kc_scratch[...] = kc.astype(jnp.bfloat16)
        vc_scratch[...] = vc.astype(jnp.bfloat16)

    def layer_norm(v, g_ref, b_ref):
        mean = jnp.mean(v, axis=-1, keepdims=True)
        var = jnp.mean(jnp.square(v - mean), axis=-1, keepdims=True)
        return (v - mean) * jax.lax.rsqrt(var + eps) * g_ref[...] + b_ref[...]

    # time + position signal added before the (weight-shared) layer
    x = x_scratch[...] + sig_ref[0]          # (T, D) f32
    tmask_add = tmask_ref[0]                 # (T, T) additive causal mask
    smask_add = smask_ref[0]                 # (1, S) additive padding mask

    # ---------------- masked self attention --------------------------------
    xb = x.astype(jnp.bfloat16)
    qkv = (jnp.dot(xb, wqkv_s_ref[...], preferred_element_type=jnp.float32)
           + bqkv_s_ref[...]).astype(jnp.bfloat16)            # (T, 3D)
    heads = []
    for h in range(n_heads):
        qh = qkv[:, h * dh:(h + 1) * dh]
        kh = qkv[:, D + h * dh:D + (h + 1) * dh]
        vh = qkv[:, 2 * D + h * dh:2 * D + (h + 1) * dh]
        s = jax.lax.dot_general(qh, kh, (((1,), (1,)), ((), ())),
                                preferred_element_type=jnp.float32) + tmask_add
        m = jnp.max(s, axis=-1, keepdims=True)
        e = jnp.exp(s - m)
        p = e * pl.reciprocal(jnp.sum(e, axis=-1, keepdims=True), approx=True)
        heads.append(jnp.dot(p.astype(jnp.bfloat16), vh,
                             preferred_element_type=jnp.float32))
    sa = jnp.concatenate(heads, axis=-1).astype(jnp.bfloat16)  # (T, D)
    sa = jnp.dot(sa, wo_s_ref[...],
                 preferred_element_type=jnp.float32) + bo_s_ref[...]
    x = layer_norm(x + sa, g1_ref, be1_ref)

    # ---------------- cross attention over encoder memory ------------------
    xb = x.astype(jnp.bfloat16)
    qc = (jnp.dot(xb, wq_c_ref[...], preferred_element_type=jnp.float32)
          + bq_c_ref[...]).astype(jnp.bfloat16)               # (T, D)
    kc = kc_scratch[...]
    vc = vc_scratch[...]
    heads = []
    for h in range(n_heads):
        qh = qc[:, h * dh:(h + 1) * dh]
        kh = kc[:, h * dh:(h + 1) * dh]
        vh = vc[:, h * dh:(h + 1) * dh]
        s = jax.lax.dot_general(qh, kh, (((1,), (1,)), ((), ())),
                                preferred_element_type=jnp.float32) + smask_add
        m = jnp.max(s, axis=-1, keepdims=True)
        e = jnp.exp(s - m)
        # exact normalization: these probabilities are a user-visible output
        p = e / jnp.sum(e, axis=-1, keepdims=True)

        # store probs immediately (only at the last layer) so they do not stay
        # live through the FFN / LayerNorms
        @pl.when(is_last)
        def _store(p=p, h=h):
            attn_ref[0, h] = p.astype(attn_ref.dtype)

        heads.append(jnp.dot(p.astype(jnp.bfloat16), vh,
                             preferred_element_type=jnp.float32))
    ca = jnp.concatenate(heads, axis=-1).astype(jnp.bfloat16)
    ca = jnp.dot(ca, wo_c_ref[...],
                 preferred_element_type=jnp.float32) + bo_c_ref[...]
    x = layer_norm(x + ca, g2_ref, be2_ref)

    # ---------------- position-wise FFN (hidden never leaves VMEM) ---------
    xb = x.astype(jnp.bfloat16)
    h1 = jnp.maximum(
        jnp.dot(xb, w1_ref[...], preferred_element_type=jnp.float32)
        + b1_ref[...], 0.0)
    h2 = jnp.dot(h1.astype(jnp.bfloat16), w2_ref[...],
                 preferred_element_type=jnp.float32) + b2_ref[...]
    x = layer_norm(x + h2, g3_ref, be3_ref)

    x_scratch[...] = x

    @pl.when(is_last)
    def _final():
        out_ref[0] = x.astype(out_ref.dtype)


# ---------------------------------------------------------------------------
# Decoder forward: ONE pallas_call for all layers of all batch elements
# ---------------------------------------------------------------------------
def decoder_forward(params, memory, trg, src_mask, trg_mask,
                    time_signal, pos_signal, *, n_layers, n_heads):
    B, T, D = trg.shape
    S = memory.shape[1]
    H = n_heads

    # additive masks, built once (layer- and grid-step-invariant)
    smask_add = (1.0 - src_mask.astype(jnp.float32).reshape(B, 1, S)) * jnp.float32(-1e9)
    tmask_add = (1.0 - trg_mask.astype(jnp.float32).reshape(1, T, T)) * jnp.float32(-1e9)

    # per-layer (time + position) signal rows -> (n_layers, 1, D)
    # TODO(synk): the reference forward refers to an undefined `src`; we read
    # src.shape[1] as the encoder length S (requires T == S), so the per-layer
    # signal collapses to a single D-row broadcast over all positions.
    sig_rows = time_signal[0, S, :][None, :] + pos_signal[0, :n_layers, :]
    sig_rows = sig_rows.reshape(n_layers, 1, D).astype(jnp.float32)

    weight_list = [
        params["wqkv_s"], params["bqkv_s"], params["wo_s"], params["bo_s"],
        params["g1"], params["be1"],
        params["wq_c"], params["bq_c"], params["wk_c"], params["wv_c"],
        params["bv_c"], params["wo_c"], params["bo_c"],
        params["g2"], params["be2"],
        params["w1"], params["b1"], params["w2"], params["b2"],
        params["g3"], params["be3"],
    ]

    def _const_spec(arr):
        zeros = (0,) * arr.ndim
        return pl.BlockSpec(arr.shape, lambda b, l, _z=zeros: _z)

    in_specs = [
        pl.BlockSpec((1, T, D), lambda b, l: (b, 0, 0)),   # trg (once per batch)
        pl.BlockSpec((1, S, D), lambda b, l: (b, 0, 0)),   # memory (used at l==0)
        pl.BlockSpec((1, 1, S), lambda b, l: (b, 0, 0)),   # additive src mask
        pl.BlockSpec((1, T, T), lambda b, l: (0, 0, 0)),   # additive causal mask
        pl.BlockSpec((1, 1, D), lambda b, l: (l, 0, 0)),   # per-layer signal row
    ] + [_const_spec(w) for w in weight_list]

    # rough VMEM footprint -> scoped limit (never below platform defaults,
    # never above what a v7x 64 MiB part can give)
    F = params["w1"].shape[1]
    est = 4 * (3 * T * D + 3 * S * D + T * T + S + D + 2 * H * T * S
               + 3 * D * D + 6 * D * D + 2 * D * F + 16 * D + 2 * F)
    vmem_limit = int(min(max(4 * est, 32 << 20), 48 << 20))

    kernel = functools.partial(_decoder_kernel, n_heads=H)
    out, attn = pl.pallas_call(
        kernel,
        out_shape=(jax.ShapeDtypeStruct((B, T, D), jnp.float32),
                   jax.ShapeDtypeStruct((B, H, T, S), jnp.float32)),
        grid=(B, n_layers),
        in_specs=in_specs,
        out_specs=(pl.BlockSpec((1, T, D), lambda b, l: (b, 0, 0)),
                   pl.BlockSpec((1, H, T, S), lambda b, l: (b, 0, 0, 0))),
        scratch_shapes=[pltpu.VMEM((T, D), jnp.float32),      # resident x
                        pltpu.VMEM((S, D), jnp.bfloat16),     # cached K_c
                        pltpu.VMEM((S, D), jnp.bfloat16)],    # cached V_c
        compiler_params=pltpu.CompilerParams(
            dimension_semantics=("parallel", "arbitrary"),
            vmem_limit_bytes=vmem_limit),
    )(trg, memory, smask_add, tmask_add, sig_rows, *weight_list)
    return out, attn


# ---------------------------------------------------------------------------
# deterministic parameter init + packing (bf16 weights, fused QKV, folded scale)
# ---------------------------------------------------------------------------
def init_decoder_params(key, d_model, d_ff):
    keys = jax.random.split(key, 10)

    def lin(k, din, dout):
        return (jax.random.normal(k, (din, dout), jnp.float32) * 0.02,
                jnp.zeros((dout,), jnp.float32))

    def ln():
        return (jnp.ones((d_model,), jnp.float32), jnp.zeros((d_model,), jnp.float32))

    return {
        "self": {"q": lin(keys[0], d_model, d_model),
                 "k": lin(keys[1], d_model, d_model),
                 "v": lin(keys[2], d_model, d_model),
                 "o": lin(keys[3], d_model, d_model)},
        "cross": {"q": lin(keys[4], d_model, d_model),
                  "k": lin(keys[5], d_model, d_model),
                  "v": lin(keys[6], d_model, d_model),
                  "o": lin(keys[7], d_model, d_model)},
        "ffn": {"w1": lin(keys[8], d_model, d_ff),
                "w2": lin(keys[9], d_ff, d_model)},
        "ln1": ln(), "ln2": ln(), "ln3": ln(),
    }


def pack_params(p, n_heads):
    D = p["self"]["q"][0].shape[0]
    dh = D // n_heads
    scale = 1.0 / math.sqrt(dh)
    row = lambda v: v.reshape(1, -1).astype(jnp.float32)
    bf16 = lambda w: w.astype(jnp.bfloat16)

    wq_s, bq_s = p["self"]["q"]
    wk_s, bk_s = p["self"]["k"]
    wv_s, bv_s = p["self"]["v"]
    wq_c, bq_c = p["cross"]["q"]
    wk_c, _bk_c = p["cross"]["k"]
    wv_c, bv_c = p["cross"]["v"]

    # 1/sqrt(dh) folded into the Q projection; K-projection bias dropped
    # (q . b_k is constant across keys and cancels in softmax).
    wqkv_s = jnp.concatenate([wq_s * scale, wk_s, wv_s], axis=1)        # (D, 3D)
    bqkv_s = jnp.concatenate(
        [bq_s * scale, jnp.zeros_like(bk_s), bv_s]).reshape(1, -1)      # (1, 3D)

    return {
        "wqkv_s": bf16(wqkv_s), "bqkv_s": bqkv_s.astype(jnp.float32),
        "wo_s": bf16(p["self"]["o"][0]), "bo_s": row(p["self"]["o"][1]),
        "g1": row(p["ln1"][0]), "be1": row(p["ln1"][1]),
        "wq_c": bf16(wq_c * scale), "bq_c": row(bq_c * scale),
        "wk_c": bf16(wk_c), "wv_c": bf16(wv_c), "bv_c": row(bv_c),
        "wo_c": bf16(p["cross"]["o"][0]), "bo_c": row(p["cross"]["o"][1]),
        "g2": row(p["ln2"][0]), "be2": row(p["ln2"][1]),
        "w1": bf16(p["ffn"]["w1"][0]), "b1": row(p["ffn"]["w1"][1]),
        "w2": bf16(p["ffn"]["w2"][0]), "b2": row(p["ffn"]["w2"][1]),
        "g3": row(p["ln3"][0]), "be3": row(p["ln3"][1]),
    }


if __name__ == "__main__":
    B, S, T, D, H, F = 2, 8, 8, 32, 4, 64
    n_layers = 2
    max_len = 32  # sinusoid table length (must exceed S and n_layers)

    key = jax.random.PRNGKey(0)
    k_mem, k_trg, k_par = jax.random.split(key, 3)
    memory = jax.random.normal(k_mem, (B, S, D), jnp.float32)   # encoder output
    trg = jax.random.normal(k_trg, (B, T, D), jnp.float32)      # decoder input
    src_mask = jnp.ones((B, 1, S), jnp.float32)                 # attend everywhere
    trg_mask = jnp.tril(jnp.ones((T, T), jnp.float32))[None]    # causal [1, T, T]

    time_signal = block_embedding(max_len, D)
    pos_signal = block_embedding(max_len, D)
    params = pack_params(init_decoder_params(k_par, D, F), H)

    fwd = jax.jit(functools.partial(decoder_forward, n_layers=n_layers, n_heads=H))
    out, attn = fwd(params, memory, trg, src_mask, trg_mask, time_signal, pos_signal)
    jax.block_until_ready((out, attn))

    assert out.shape == (B, T, D)
    assert attn.shape == (B, H, T, S)
    assert bool(jnp.all(jnp.isfinite(out)))
    assert bool(jnp.all(jnp.isfinite(attn)))
    # returned (exact-softmax) attention probabilities sum to 1 over keys
    assert bool(jnp.all(jnp.abs(jnp.sum(attn, axis=-1) - 1.0) < 1e-3))
    print("KERNEL_OK")
</pallas_src>

<mosaic_0001>
module attributes {stable_mosaic.version = 11 : i64} {
  func.func @_decoder_kernel(%arg0: i32, %arg1: i32, %arg2: memref<1x8x32xf32, #tpu.memory_space<vmem>>, %arg3: memref<1x8x32xf32, #tpu.memory_space<vmem>>, %arg4: memref<1x1x8xf32, #tpu.memory_space<vmem>>, %arg5: memref<1x8x8xf32, #tpu.memory_space<vmem>>, %arg6: memref<1x1x32xf32, #tpu.memory_space<vmem>>, %arg7: memref<32x96xbf16, #tpu.memory_space<vmem>>, %arg8: memref<1x96xf32, #tpu.memory_space<vmem>>, %arg9: memref<32x32xbf16, #tpu.memory_space<vmem>>, %arg10: memref<1x32xf32, #tpu.memory_space<vmem>>, %arg11: memref<1x32xf32, #tpu.memory_space<vmem>>, %arg12: memref<1x32xf32, #tpu.memory_space<vmem>>, %arg13: memref<32x32xbf16, #tpu.memory_space<vmem>>, %arg14: memref<1x32xf32, #tpu.memory_space<vmem>>, %arg15: memref<32x32xbf16, #tpu.memory_space<vmem>>, %arg16: memref<32x32xbf16, #tpu.memory_space<vmem>>, %arg17: memref<1x32xf32, #tpu.memory_space<vmem>>, %arg18: memref<32x32xbf16, #tpu.memory_space<vmem>>, %arg19: memref<1x32xf32, #tpu.memory_space<vmem>>, %arg20: memref<1x32xf32, #tpu.memory_space<vmem>>, %arg21: memref<1x32xf32, #tpu.memory_space<vmem>>, %arg22: memref<32x64xbf16, #tpu.memory_space<vmem>>, %arg23: memref<1x64xf32, #tpu.memory_space<vmem>>, %arg24: memref<64x32xbf16, #tpu.memory_space<vmem>>, %arg25: memref<1x32xf32, #tpu.memory_space<vmem>>, %arg26: memref<1x32xf32, #tpu.memory_space<vmem>>, %arg27: memref<1x32xf32, #tpu.memory_space<vmem>>, %arg28: memref<1x8x32xf32, #tpu.memory_space<vmem>>, %arg29: memref<1x4x8x8xf32, #tpu.memory_space<vmem>>, %arg30: memref<8x32xf32, #tpu.memory_space<vmem>>, %arg31: memref<8x32xbf16, #tpu.memory_space<vmem>>, %arg32: memref<8x32xbf16, #tpu.memory_space<vmem>>) attributes {dimension_semantics = [#tpu.dimension_semantics<parallel>, #tpu.dimension_semantics<arbitrary>], iteration_bounds = array<i64: 2, 2>, scalar_prefetch = 0 : i64, scratch_operands = 3 : i64, tpu.core_type = #tpu.core_type<tc>, window_params = [{transform_indices = @transform_0, window_bounds = array<i64: 1, 8, 32>}, {transform_indices = @transform_1, window_bounds = array<i64: 1, 8, 32>}, {transform_indices = @transform_2, window_bounds = array<i64: 1, 1, 8>}, {pipeline_mode = #tpu.pipeline_mode<synchronous>, transform_indices = @transform_3, window_bounds = array<i64: 1, 8, 8>}, {transform_indices = @transform_4, window_bounds = array<i64: 1, 1, 32>}, {pipeline_mode = #tpu.pipeline_mode<synchronous>, transform_indices = @transform_5, window_bounds = array<i64: 32, 96>}, {pipeline_mode = #tpu.pipeline_mode<synchronous>, transform_indices = @transform_6, window_bounds = array<i64: 1, 96>}, {pipeline_mode = #tpu.pipeline_mode<synchronous>, transform_indices = @transform_7, window_bounds = array<i64: 32, 32>}, {pipeline_mode = #tpu.pipeline_mode<synchronous>, transform_indices = @transform_8, window_bounds = array<i64: 1, 32>}, {pipeline_mode = #tpu.pipeline_mode<synchronous>, transform_indices = @transform_9, window_bounds = array<i64: 1, 32>}, {pipeline_mode = #tpu.pipeline_mode<synchronous>, transform_indices = @transform_10, window_bounds = array<i64: 1, 32>}, {pipeline_mode = #tpu.pipeline_mode<synchronous>, transform_indices = @transform_11, window_bounds = array<i64: 32, 32>}, {pipeline_mode = #tpu.pipeline_mode<synchronous>, transform_indices = @transform_12, window_bounds = array<i64: 1, 32>}, {pipeline_mode = #tpu.pipeline_mode<synchronous>, transform_indices = @transform_13, window_bounds = array<i64: 32, 32>}, {pipeline_mode = #tpu.pipeline_mode<synchronous>, transform_indices = @transform_14, window_bounds = array<i64: 32, 32>}, {pipeline_mode = #tpu.pipeline_mode<synchronous>, transform_indices = @transform_15, window_bounds = array<i64: 1, 32>}, {pipeline_mode = #tpu.pipeline_mode<synchronous>, transform_indices = @transform_16, window_bounds = array<i64: 32, 32>}, {pipeline_mode = #tpu.pipeline_mode<synchronous>, transform_indices = @transform_17, window_bounds = array<i64: 1, 32>}, {pipeline_mode = #tpu.pipeline_mode<synchronous>, transform_indices = @transform_18, window_bounds = array<i64: 1, 32>}, {pipeline_mode = #tpu.pipeline_mode<synchronous>, transform_indices = @transform_19, window_bounds = array<i64: 1, 32>}, {pipeline_mode = #tpu.pipeline_mode<synchronous>, transform_indices = @transform_20, window_bounds = array<i64: 32, 64>}, {pipeline_mode = #tpu.pipeline_mode<synchronous>, transform_indices = @transform_21, window_bounds = array<i64: 1, 64>}, {pipeline_mode = #tpu.pipeline_mode<synchronous>, transform_indices = @transform_22, window_bounds = array<i64: 64, 32>}, {pipeline_mode = #tpu.pipeline_mode<synchronous>, transform_indices = @transform_23, window_bounds = array<i64: 1, 32>}, {pipeline_mode = #tpu.pipeline_mode<synchronous>, transform_indices = @transform_24, window_bounds = array<i64: 1, 32>}, {pipeline_mode = #tpu.pipeline_mode<synchronous>, transform_indices = @transform_25, window_bounds = array<i64: 1, 32>}, {transform_indices = @transform_26, window_bounds = array<i64: 1, 8, 32>}, {transform_indices = @transform_27, window_bounds = array<i64: 1, 4, 8, 8>}]} {
    %c1_i32 = arith.constant 1 : i32
    %0 = arith.cmpi eq, %arg1, %c1_i32 : i32
    %c0_i32 = arith.constant 0 : i32
    %1 = arith.cmpi eq, %arg1, %c0_i32 : i32
    %2 = arith.extui %1 : i1 to i32
    %c0_i32_0 = arith.constant 0 : i32
    %3 = arith.cmpi ne, %2, %c0_i32_0 : i32
    scf.if %3 {
      %c0_111 = arith.constant 0 : index
      %c0_112 = arith.constant 0 : index
      %c0_113 = arith.constant 0 : index
      %279 = vector.load %arg2[%c0_111, %c0_112, %c0_113] : memref<1x8x32xf32, #tpu.memory_space<vmem>>, vector<1x8x32xf32>
      %280 = vector.shape_cast %279 : vector<1x8x32xf32> to vector<8x32xf32>
      %c0_114 = arith.constant 0 : index
      %c0_115 = arith.constant 0 : index
      %281 = vector.load %arg30[%c0_114, %c0_115] : memref<8x32xf32, #tpu.memory_space<vmem>>, vector<8x32xf32>
      tpu.vector_store %arg30[%c0_114, %c0_115], %280 {strides = array<i32>} : memref<8x32xf32, #tpu.memory_space<vmem>>, vector<8x32xf32>,
      %c0_116 = arith.constant 0 : index
      %c0_117 = arith.constant 0 : index
      %c0_118 = arith.constant 0 : index
      %282 = vector.load %arg3[%c0_116, %c0_117, %c0_118] : memref<1x8x32xf32, #tpu.memory_space<vmem>>, vector<1x8x32xf32>
      %283 = vector.shape_cast %282 : vector<1x8x32xf32> to vector<8x32xf32>
      %284 = arith.truncf %283 : vector<8x32xf32> to vector<8x32xbf16>
      %c0_119 = arith.constant 0 : index
      %c0_120 = arith.constant 0 : index
      %285 = vector.load %arg15[%c0_119, %c0_120] : memref<32x32xbf16, #tpu.memory_space<vmem>>, vector<32x32xbf16>
      %cst_121 = arith.constant dense<0.000000e+00> : vector<8x32xf32>
      %286 = tpu.matmul %284, %285, %cst_121 {dimension_numbers = #tpu.dot_dimension_numbers<[1], [0], [0], [1], [0, 0, 1, 1], [], []>} : vector<8x32xbf16>, vector<32x32xbf16>, vector<8x32xf32> -> vector<8x32xf32>
      %c0_122 = arith.constant 0 : index
      %c0_123 = arith.constant 0 : index
      %287 = vector.load %arg16[%c0_122, %c0_123] : memref<32x32xbf16, #tpu.memory_space<vmem>>, vector<32x32xbf16>
      %cst_124 = arith.constant dense<0.000000e+00> : vector<8x32xf32>
      %288 = tpu.matmul %284, %287, %cst_124 {dimension_numbers = #tpu.dot_dimension_numbers<[1], [0], [0], [1], [0, 0, 1, 1], [], []>} : vector<8x32xbf16>, vector<32x32xbf16>, vector<8x32xf32> -> vector<8x32xf32>
      %c0_125 = arith.constant 0 : index
      %c0_126 = arith.constant 0 : index
      %289 = vector.load %arg17[%c0_125, %c0_126] : memref<1x32xf32, #tpu.memory_space<vmem>>, vector<1x32xf32>
      %290 = vector.broadcast %289 : vector<1x32xf32> to vector<8x32xf32>
      %291 = arith.addf %288, %290 : vector<8x32xf32>
      %292 = arith.truncf %286 : vector<8x32xf32> to vector<8x32xbf16>
      %c0_127 = arith.constant 0 : index
      %c0_128 = arith.constant 0 : index
      %293 = vector.load %arg31[%c0_127, %c0_128] : memref<8x32xbf16, #tpu.memory_space<vmem>>, vector<8x32xbf16>
      tpu.vector_store %arg31[%c0_127, %c0_128], %292 {strides = array<i32>} : memref<8x32xbf16, #tpu.memory_space<vmem>>, vector<8x32xbf16>,
      %294 = arith.truncf %291 : vector<8x32xf32> to vector<8x32xbf16>
      %c0_129 = arith.constant 0 : index
      %c0_130 = arith.constant 0 : index
      %295 = vector.load %arg32[%c0_129, %c0_130] : memref<8x32xbf16, #tpu.memory_space<vmem>>, vector<8x32xbf16>
      tpu.vector_store %arg32[%c0_129, %c0_130], %294 {strides = array<i32>} : memref<8x32xbf16, #tpu.memory_space<vmem>>, vector<8x32xbf16>,
    } else {
    }
    %c0 = arith.constant 0 : index
    %c0_1 = arith.constant 0 : index
    %4 = vector.load %arg30[%c0, %c0_1] : memref<8x32xf32, #tpu.memory_space<vmem>>, vector<8x32xf32>
    %c0_2 = arith.constant 0 : index
    %c0_3 = arith.constant 0 : index
    %c0_4 = arith.constant 0 : index
    %5 = vector.load %arg6[%c0_2, %c0_3, %c0_4] : memref<1x1x32xf32, #tpu.memory_space<vmem>>, vector<1x1x32xf32>
    %6 = vector.shape_cast %5 : vector<1x1x32xf32> to vector<1x32xf32>
    %7 = vector.broadcast %6 : vector<1x32xf32> to vector<8x32xf32>
    %8 = arith.addf %4, %7 : vector<8x32xf32>
    %c0_5 = arith.constant 0 : index
    %c0_6 = arith.constant 0 : index
    %c0_7 = arith.constant 0 : index
    %9 = vector.load %arg5[%c0_5, %c0_6, %c0_7] : memref<1x8x8xf32, #tpu.memory_space<vmem>>, vector<1x8x8xf32>
    %10 = vector.shape_cast %9 : vector<1x8x8xf32> to vector<8x8xf32>
    %c0_8 = arith.constant 0 : index
    %c0_9 = arith.constant 0 : index
    %c0_10 = arith.constant 0 : index
    %11 = vector.load %arg4[%c0_8, %c0_9, %c0_10] : memref<1x1x8xf32, #tpu.memory_space<vmem>>, vector<1x1x8xf32>
    %12 = vector.shape_cast %11 : vector<1x1x8xf32> to vector<1x8xf32>
    %13 = arith.truncf %8 : vector<8x32xf32> to vector<8x32xbf16>
    %c0_11 = arith.constant 0 : index
    %c0_12 = arith.constant 0 : index
    %14 = vector.load %arg7[%c0_11, %c0_12] : memref<32x96xbf16, #tpu.memory_space<vmem>>, vector<32x96xbf16>
    %cst = arith.constant dense<0.000000e+00> : vector<8x96xf32>
    %15 = tpu.matmul %13, %14, %cst {dimension_numbers = #tpu.dot_dimension_numbers<[1], [0], [0], [1], [0, 0, 1, 1], [], []>} : vector<8x32xbf16>, vector<32x96xbf16>, vector<8x96xf32> -> vector<8x96xf32>
    %c0_13 = arith.constant 0 : index
    %c0_14 = arith.constant 0 : index
    %16 = vector.load %arg8[%c0_13, %c0_14] : memref<1x96xf32, #tpu.memory_space<vmem>>, vector<1x96xf32>
    %17 = vector.broadcast %16 : vector<1x96xf32> to vector<8x96xf32>
    %18 = arith.addf %15, %17 : vector<8x96xf32>
    %19 = arith.truncf %18 : vector<8x96xf32> to vector<8x96xbf16>
    %20 = vector.extract_strided_slice %19 {offsets = [0, 0], sizes = [8, 8], strides = [1, 1]} : vector<8x96xbf16> to vector<8x8xbf16>
    %21 = vector.extract_strided_slice %19 {offsets = [0, 32], sizes = [8, 8], strides = [1, 1]} : vector<8x96xbf16> to vector<8x8xbf16>
    %22 = vector.extract_strided_slice %19 {offsets = [0, 64], sizes = [8, 8], strides = [1, 1]} : vector<8x96xbf16> to vector<8x8xbf16>
    %cst_15 = arith.constant dense<0.000000e+00> : vector<8x8xf32>
    %23 = tpu.matmul %20, %21, %cst_15 {dimension_numbers = #tpu.dot_dimension_numbers<[1], [1], [0], [0], [0, 0, 1, 0], [], []>} : vector<8x8xbf16>, vector<8x8xbf16>, vector<8x8xf32> -> vector<8x8xf32>
    %24 = arith.addf %23, %10 : vector<8x8xf32>
    %cst_16 = arith.constant dense<0xFF800000> : vector<8xf32>
    %25 = vector.multi_reduction <maximumf>, %24, %cst_16 [1] : vector<8x8xf32> to vector<8xf32>
    %26 = vector.shape_cast %25 : vector<8xf32> to vector<8x1xf32>
    %27 = vector.broadcast %26 : vector<8x1xf32> to vector<8x8xf32>
    %28 = arith.subf %24, %27 : vector<8x8xf32>
    %29 = math.exp %28 : vector<8x8xf32>
    %cst_17 = arith.constant dense<0.000000e+00> : vector<8xf32>
    %30 = vector.multi_reduction <add>, %29, %cst_17 [1] : vector<8x8xf32> to vector<8xf32>
    %31 = vector.shape_cast %30 : vector<8xf32> to vector<8x1xf32>
    %32 = tpu.reciprocal %31 {approx = true} : vector<8x1xf32> -> vector<8x1xf32>
    %33 = vector.broadcast %32 : vector<8x1xf32> to vector<8x8xf32>
    %34 = arith.mulf %29, %33 : vector<8x8xf32>
    %35 = arith.truncf %34 : vector<8x8xf32> to vector<8x8xbf16>
    %cst_18 = arith.constant dense<0.000000e+00> : vector<8x8xf32>
    %36 = tpu.matmul %35, %22, %cst_18 {dimension_numbers = #tpu.dot_dimension_numbers<[1], [0], [0], [1], [0, 0, 1, 1], [], []>} : vector<8x8xbf16>, vector<8x8xbf16>, vector<8x8xf32> -> vector<8x8xf32>
    %37 = vector.extract_strided_slice %19 {offsets = [0, 8], sizes = [8, 8], strides = [1, 1]} : vector<8x96xbf16> to vector<8x8xbf16>
    %38 = vector.extract_strided_slice %19 {offsets = [0, 40], sizes = [8, 8], strides = [1, 1]} : vector<8x96xbf16> to vector<8x8xbf16>
    %39 = vector.extract_strided_slice %19 {offsets = [0, 72], sizes = [8, 8], strides = [1, 1]} : vector<8x96xbf16> to vector<8x8xbf16>
    %cst_19 = arith.constant dense<0.000000e+00> : vector<8x8xf32>
    %40 = tpu.matmul %37, %38, %cst_19 {dimension_numbers = #tpu.dot_dimension_numbers<[1], [1], [0], [0], [0, 0, 1, 0], [], []>} : vector<8x8xbf16>, vector<8x8xbf16>, vector<8x8xf32> -> vector<8x8xf32>
    %41 = arith.addf %40, %10 : vector<8x8xf32>
    %cst_20 = arith.constant dense<0xFF800000> : vector<8xf32>
    %42 = vector.multi_reduction <maximumf>, %41, %cst_20 [1] : vector<8x8xf32> to vector<8xf32>
    %43 = vector.shape_cast %42 : vector<8xf32> to vector<8x1xf32>
    %44 = vector.broadcast %43 : vector<8x1xf32> to vector<8x8xf32>
    %45 = arith.subf %41, %44 : vector<8x8xf32>
    %46 = math.exp %45 : vector<8x8xf32>
    %cst_21 = arith.constant dense<0.000000e+00> : vector<8xf32>
    %47 = vector.multi_reduction <add>, %46, %cst_21 [1] : vector<8x8xf32> to vector<8xf32>
    %48 = vector.shape_cast %47 : vector<8xf32> to vector<8x1xf32>
    %49 = tpu.reciprocal %48 {approx = true} : vector<8x1xf32> -> vector<8x1xf32>
    %50 = vector.broadcast %49 : vector<8x1xf32> to vector<8x8xf32>
    %51 = arith.mulf %46, %50 : vector<8x8xf32>
    %52 = arith.truncf %51 : vector<8x8xf32> to vector<8x8xbf16>
    %cst_22 = arith.constant dense<0.000000e+00> : vector<8x8xf32>
    %53 = tpu.matmul %52, %39, %cst_22 {dimension_numbers = #tpu.dot_dimension_numbers<[1], [0], [0], [1], [0, 0, 1, 1], [], []>} : vector<8x8xbf16>, vector<8x8xbf16>, vector<8x8xf32> -> vector<8x8xf32>
    %54 = vector.extract_strided_slice %19 {offsets = [0, 16], sizes = [8, 8], strides = [1, 1]} : vector<8x96xbf16> to vector<8x8xbf16>
    %55 = vector.extract_strided_slice %19 {offsets = [0, 48], sizes = [8, 8], strides = [1, 1]} : vector<8x96xbf16> to vector<8x8xbf16>
    %56 = vector.extract_strided_slice %19 {offsets = [0, 80], sizes = [8, 8], strides = [1, 1]} : vector<8x96xbf16> to vector<8x8xbf16>
    %cst_23 = arith.constant dense<0.000000e+00> : vector<8x8xf32>
    %57 = tpu.matmul %54, %55, %cst_23 {dimension_numbers = #tpu.dot_dimension_numbers<[1], [1], [0], [0], [0, 0, 1, 0], [], []>} : vector<8x8xbf16>, vector<8x8xbf16>, vector<8x8xf32> -> vector<8x8xf32>
    %58 = arith.addf %57, %10 : vector<8x8xf32>
    %cst_24 = arith.constant dense<0xFF800000> : vector<8xf32>
    %59 = vector.multi_reduction <maximumf>, %58, %cst_24 [1] : vector<8x8xf32> to vector<8xf32>
    %60 = vector.shape_cast %59 : vector<8xf32> to vector<8x1xf32>
    %61 = vector.broadcast %60 : vector<8x1xf32> to vector<8x8xf32>
    %62 = arith.subf %58, %61 : vector<8x8xf32>
    %63 = math.exp %62 : vector<8x8xf32>
    %cst_25 = arith.constant dense<0.000000e+00> : vector<8xf32>
    %64 = vector.multi_reduction <add>, %63, %cst_25 [1] : vector<8x8xf32> to vector<8xf32>
    %65 = vector.shape_cast %64 : vector<8xf32> to vector<8x1xf32>
    %66 = tpu.reciprocal %65 {approx = true} : vector<8x1xf32> -> vector<8x1xf32>
    %67 = vector.broadcast %66 : vector<8x1xf32> to vector<8x8xf32>
    %68 = arith.mulf %63, %67 : vector<8x8xf32>
    %69 = arith.truncf %68 : vector<8x8xf32> to vector<8x8xbf16>
    %cst_26 = arith.constant dense<0.000000e+00> : vector<8x8xf32>
    %70 = tpu.matmul %69, %56, %cst_26 {dimension_numbers = #tpu.dot_dimension_numbers<[1], [0], [0], [1], [0, 0, 1, 1], [], []>} : vector<8x8xbf16>, vector<8x8xbf16>, vector<8x8xf32> -> vector<8x8xf32>
    %71 = vector.extract_strided_slice %19 {offsets = [0, 24], sizes = [8, 8], strides = [1, 1]} : vector<8x96xbf16> to vector<8x8xbf16>
    %72 = vector.extract_strided_slice %19 {offsets = [0, 56], sizes = [8, 8], strides = [1, 1]} : vector<8x96xbf16> to vector<8x8xbf16>
    %73 = vector.extract_strided_slice %19 {offsets = [0, 88], sizes = [8, 8], strides = [1, 1]} : vector<8x96xbf16> to vector<8x8xbf16>
    %cst_27 = arith.constant dense<0.000000e+00> : vector<8x8xf32>
    %74 = tpu.matmul %71, %72, %cst_27 {dimension_numbers = #tpu.dot_dimension_numbers<[1], [1], [0], [0], [0, 0, 1, 0], [], []>} : vector<8x8xbf16>, vector<8x8xbf16>, vector<8x8xf32> -> vector<8x8xf32>
    %75 = arith.addf %74, %10 : vector<8x8xf32>
    %cst_28 = arith.constant dense<0xFF800000> : vector<8xf32>
    %76 = vector.multi_reduction <maximumf>, %75, %cst_28 [1] : vector<8x8xf32> to vector<8xf32>
    %77 = vector.shape_cast %76 : vector<8xf32> to vector<8x1xf32>
    %78 = vector.broadcast %77 : vector<8x1xf32> to vector<8x8xf32>
    %79 = arith.subf %75, %78 : vector<8x8xf32>
    %80 = math.exp %79 : vector<8x8xf32>
    %cst_29 = arith.constant dense<0.000000e+00> : vector<8xf32>
    %81 = vector.multi_reduction <add>, %80, %cst_29 [1] : vector<8x8xf32> to vector<8xf32>
    %82 = vector.shape_cast %81 : vector<8xf32> to vector<8x1xf32>
    %83 = tpu.reciprocal %82 {approx = true} : vector<8x1xf32> -> vector<8x1xf32>
    %84 = vector.broadcast %83 : vector<8x1xf32> to vector<8x8xf32>
    %85 = arith.mulf %80, %84 : vector<8x8xf32>
    %86 = arith.truncf %85 : vector<8x8xf32> to vector<8x8xbf16>
    %cst_30 = arith.constant dense<0.000000e+00> : vector<8x8xf32>
    %87 = tpu.matmul %86, %73, %cst_30 {dimension_numbers = #tpu.dot_dimension_numbers<[1], [0], [0], [1], [0, 0, 1, 1], [], []>} : vector<8x8xbf16>, vector<8x8xbf16>, vector<8x8xf32> -> vector<8x8xf32>
    %88 = tpu.concatenate %36, %53, %70, %87 in 1 : vector<8x8xf32>, vector<8x8xf32>, vector<8x8xf32>, vector<8x8xf32> -> vector<8x32xf32>
    %89 = arith.truncf %88 : vector<8x32xf32> to vector<8x32xbf16>
    %c0_31 = arith.constant 0 : index
    %c0_32 = arith.constant 0 : index
    %90 = vector.load %arg9[%c0_31, %c0_32] : memref<32x32xbf16, #tpu.memory_space<vmem>>, vector<32x32xbf16>
    %cst_33 = arith.constant dense<0.000000e+00> : vector<8x32xf32>
    %91 = tpu.matmul %89, %90, %cst_33 {dimension_numbers = #tpu.dot_dimension_numbers<[1], [0], [0], [1], [0, 0, 1, 1], [], []>} : vector<8x32xbf16>, vector<32x32xbf16>, vector<8x32xf32> -> vector<8x32xf32>
    %c0_34 = arith.constant 0 : index
    %c0_35 = arith.constant 0 : index
    %92 = vector.load %arg10[%c0_34, %c0_35] : memref<1x32xf32, #tpu.memory_space<vmem>>, vector<1x32xf32>
    %93 = vector.broadcast %92 : vector<1x32xf32> to vector<8x32xf32>
    %94 = arith.addf %91, %93 : vector<8x32xf32>
    %95 = arith.addf %8, %94 : vector<8x32xf32>
    %cst_36 = arith.constant dense<0.000000e+00> : vector<8xf32>
    %96 = vector.multi_reduction <add>, %95, %cst_36 [1] : vector<8x32xf32> to vector<8xf32>
    %97 = vector.shape_cast %96 : vector<8xf32> to vector<8x1xf32>
    %cst_37 = arith.constant 3.200000e+01 : f32
    %98 = vector.broadcast %cst_37 : f32 to vector<8x1xf32>
    %99 = arith.divf %97, %98 : vector<8x1xf32>
    %100 = vector.broadcast %99 : vector<8x1xf32> to vector<8x32xf32>
    %101 = arith.subf %95, %100 : vector<8x32xf32>
    %102 = arith.mulf %101, %101 : vector<8x32xf32>
    %cst_38 = arith.constant dense<0.000000e+00> : vector<8xf32>
    %103 = vector.multi_reduction <add>, %102, %cst_38 [1] : vector<8x32xf32> to vector<8xf32>
    %104 = vector.shape_cast %103 : vector<8xf32> to vector<8x1xf32>
    %cst_39 = arith.constant 3.200000e+01 : f32
    %105 = vector.broadcast %cst_39 : f32 to vector<8x1xf32>
    %106 = arith.divf %104, %105 : vector<8x1xf32>
    %107 = vector.broadcast %99 : vector<8x1xf32> to vector<8x32xf32>
    %108 = arith.subf %95, %107 : vector<8x32xf32>
    %cst_40 = arith.constant 9.99999974E-6 : f32
    %109 = vector.broadcast %cst_40 : f32 to vector<8x1xf32>
    %110 = arith.addf %106, %109 : vector<8x1xf32>
    %111 = math.rsqrt %110 : vector<8x1xf32>
    %112 = vector.broadcast %111 : vector<8x1xf32> to vector<8x32xf32>
    %113 = arith.mulf %108, %112 : vector<8x32xf32>
    %c0_41 = arith.constant 0 : index
    %c0_42 = arith.constant 0 : index
    %114 = vector.load %arg11[%c0_41, %c0_42] : memref<1x32xf32, #tpu.memory_space<vmem>>, vector<1x32xf32>
    %115 = vector.broadcast %114 : vector<1x32xf32> to vector<8x32xf32>
    %116 = arith.mulf %113, %115 : vector<8x32xf32>
    %c0_43 = arith.constant 0 : index
    %c0_44 = arith.constant 0 : index
    %117 = vector.load %arg12[%c0_43, %c0_44] : memref<1x32xf32, #tpu.memory_space<vmem>>, vector<1x32xf32>
    %118 = vector.broadcast %117 : vector<1x32xf32> to vector<8x32xf32>
    %119 = arith.addf %116, %118 : vector<8x32xf32>
    %120 = arith.truncf %119 : vector<8x32xf32> to vector<8x32xbf16>
    %c0_45 = arith.constant 0 : index
    %c0_46 = arith.constant 0 : index
    %121 = vector.load %arg13[%c0_45, %c0_46] : memref<32x32xbf16, #tpu.memory_space<vmem>>, vector<32x32xbf16>
    %cst_47 = arith.constant dense<0.000000e+00> : vector<8x32xf32>
    %122 = tpu.matmul %120, %121, %cst_47 {dimension_numbers = #tpu.dot_dimension_numbers<[1], [0], [0], [1], [0, 0, 1, 1], [], []>} : vector<8x32xbf16>, vector<32x32xbf16>, vector<8x32xf32> -> vector<8x32xf32>
    %c0_48 = arith.constant 0 : index
    %c0_49 = arith.constant 0 : index
    %123 = vector.load %arg14[%c0_48, %c0_49] : memref<1x32xf32, #tpu.memory_space<vmem>>, vector<1x32xf32>
    %124 = vector.broadcast %123 : vector<1x32xf32> to vector<8x32xf32>
    %125 = arith.addf %122, %124 : vector<8x32xf32>
    %126 = arith.truncf %125 : vector<8x32xf32> to vector<8x32xbf16>
    %c0_50 = arith.constant 0 : index
    %c0_51 = arith.constant 0 : index
    %127 = vector.load %arg31[%c0_50, %c0_51] : memref<8x32xbf16, #tpu.memory_space<vmem>>, vector<8x32xbf16>
    %c0_52 = arith.constant 0 : index
    %c0_53 = arith.constant 0 : index
    %128 = vector.load %arg32[%c0_52, %c0_53] : memref<8x32xbf16, #tpu.memory_space<vmem>>, vector<8x32xbf16>
    %129 = vector.extract_strided_slice %126 {offsets = [0, 0], sizes = [8, 8], strides = [1, 1]} : vector<8x32xbf16> to vector<8x8xbf16>
    %130 = vector.extract_strided_slice %127 {offsets = [0, 0], sizes = [8, 8], strides = [1, 1]} : vector<8x32xbf16> to vector<8x8xbf16>
    %131 = vector.extract_strided_slice %128 {offsets = [0, 0], sizes = [8, 8], strides = [1, 1]} : vector<8x32xbf16> to vector<8x8xbf16>
    %cst_54 = arith.constant dense<0.000000e+00> : vector<8x8xf32>
    %132 = tpu.matmul %129, %130, %cst_54 {dimension_numbers = #tpu.dot_dimension_numbers<[1], [1], [0], [0], [0, 0, 1, 0], [], []>} : vector<8x8xbf16>, vector<8x8xbf16>, vector<8x8xf32> -> vector<8x8xf32>
    %133 = vector.broadcast %12 : vector<1x8xf32> to vector<8x8xf32>
    %134 = arith.addf %132, %133 : vector<8x8xf32>
    %cst_55 = arith.constant dense<0xFF800000> : vector<8xf32>
    %135 = vector.multi_reduction <maximumf>, %134, %cst_55 [1] : vector<8x8xf32> to vector<8xf32>
    %136 = vector.shape_cast %135 : vector<8xf32> to vector<8x1xf32>
    %137 = vector.broadcast %136 : vector<8x1xf32> to vector<8x8xf32>
    %138 = arith.subf %134, %137 : vector<8x8xf32>
    %139 = math.exp %138 : vector<8x8xf32>
    %cst_56 = arith.constant dense<0.000000e+00> : vector<8xf32>
    %140 = vector.multi_reduction <add>, %139, %cst_56 [1] : vector<8x8xf32> to vector<8xf32>
    %141 = vector.shape_cast %140 : vector<8xf32> to vector<8x1xf32>
    %142 = vector.broadcast %141 : vector<8x1xf32> to vector<8x8xf32>
    %143 = arith.divf %139, %142 : vector<8x8xf32>
    %144 = arith.extui %0 : i1 to i32
    %c0_i32_57 = arith.constant 0 : i32
    %145 = arith.cmpi ne, %144, %c0_i32_57 : i32
    scf.if %145 {
      %c0_111 = arith.constant 0 : index
      %c0_112 = arith.constant 0 : index
      %c0_113 = arith.constant 0 : index
      %c0_114 = arith.constant 0 : index
      %279 = vector.load %arg29[%c0_111, %c0_112, %c0_113, %c0_114] : memref<1x4x8x8xf32, #tpu.memory_space<vmem>>, vector<1x1x8x8xf32>
      %280 = vector.shape_cast %279 : vector<1x1x8x8xf32> to vector<8x8xf32>
      %281 = vector.shape_cast %143 : vector<8x8xf32> to vector<1x1x8x8xf32>
      tpu.vector_store %arg29[%c0_111, %c0_112, %c0_113, %c0_114], %281 {strides = array<i32>} : memref<1x4x8x8xf32, #tpu.memory_space<vmem>>, vector<1x1x8x8xf32>,
    } else {
    }
    %146 = arith.truncf %143 : vector<8x8xf32> to vector<8x8xbf16>
    %cst_58 = arith.constant dense<0.000000e+00> : vector<8x8xf32>
    %147 = tpu.matmul %146, %131, %cst_58 {dimension_numbers = #tpu.dot_dimension_numbers<[1], [0], [0], [1], [0, 0, 1, 1], [], []>} : vector<8x8xbf16>, vector<8x8xbf16>, vector<8x8xf32> -> vector<8x8xf32>
    %148 = vector.extract_strided_slice %126 {offsets = [0, 8], sizes = [8, 8], strides = [1, 1]} : vector<8x32xbf16> to vector<8x8xbf16>
    %149 = vector.extract_strided_slice %127 {offsets = [0, 8], sizes = [8, 8], strides = [1, 1]} : vector<8x32xbf16> to vector<8x8xbf16>
    %150 = vector.extract_strided_slice %128 {offsets = [0, 8], sizes = [8, 8], strides = [1, 1]} : vector<8x32xbf16> to vector<8x8xbf16>
    %cst_59 = arith.constant dense<0.000000e+00> : vector<8x8xf32>
    %151 = tpu.matmul %148, %149, %cst_59 {dimension_numbers = #tpu.dot_dimension_numbers<[1], [1], [0], [0], [0, 0, 1, 0], [], []>} : vector<8x8xbf16>, vector<8x8xbf16>, vector<8x8xf32> -> vector<8x8xf32>
    %152 = vector.broadcast %12 : vector<1x8xf32> to vector<8x8xf32>
    %153 = arith.addf %151, %152 : vector<8x8xf32>
    %cst_60 = arith.constant dense<0xFF800000> : vector<8xf32>
    %154 = vector.multi_reduction <maximumf>, %153, %cst_60 [1] : vector<8x8xf32> to vector<8xf32>
    %155 = vector.shape_cast %154 : vector<8xf32> to vector<8x1xf32>
    %156 = vector.broadcast %155 : vector<8x1xf32> to vector<8x8xf32>
    %157 = arith.subf %153, %156 : vector<8x8xf32>
    %158 = math.exp %157 : vector<8x8xf32>
    %cst_61 = arith.constant dense<0.000000e+00> : vector<8xf32>
    %159 = vector.multi_reduction <add>, %158, %cst_61 [1] : vector<8x8xf32> to vector<8xf32>
    %160 = vector.shape_cast %159 : vector<8xf32> to vector<8x1xf32>
    %161 = vector.broadcast %160 : vector<8x1xf32> to vector<8x8xf32>
    %162 = arith.divf %158, %161 : vector<8x8xf32>
    %163 = arith.extui %0 : i1 to i32
    %c0_i32_62 = arith.constant 0 : i32
    %164 = arith.cmpi ne, %163, %c0_i32_62 : i32
    scf.if %164 {
      %c0_111 = arith.constant 0 : index
      %c1 = arith.constant 1 : index
      %c0_112 = arith.constant 0 : index
      %c0_113 = arith.constant 0 : index
      %279 = vector.load %arg29[%c0_111, %c1, %c0_112, %c0_113] : memref<1x4x8x8xf32, #tpu.memory_space<vmem>>, vector<1x1x8x8xf32>
      %280 = vector.shape_cast %279 : vector<1x1x8x8xf32> to vector<8x8xf32>
      %281 = vector.shape_cast %162 : vector<8x8xf32> to vector<1x1x8x8xf32>
      tpu.vector_store %arg29[%c0_111, %c1, %c0_112, %c0_113], %281 {strides = array<i32>} : memref<1x4x8x8xf32, #tpu.memory_space<vmem>>, vector<1x1x8x8xf32>,
    } else {
    }
    %165 = arith.truncf %162 : vector<8x8xf32> to vector<8x8xbf16>
    %cst_63 = arith.constant dense<0.000000e+00> : vector<8x8xf32>
    %166 = tpu.matmul %165, %150, %cst_63 {dimension_numbers = #tpu.dot_dimension_numbers<[1], [0], [0], [1], [0, 0, 1, 1], [], []>} : vector<8x8xbf16>, vector<8x8xbf16>, vector<8x8xf32> -> vector<8x8xf32>
    %167 = vector.extract_strided_slice %126 {offsets = [0, 16], sizes = [8, 8], strides = [1, 1]} : vector<8x32xbf16> to vector<8x8xbf16>
    %168 = vector.extract_strided_slice %127 {offsets = [0, 16], sizes = [8, 8], strides = [1, 1]} : vector<8x32xbf16> to vector<8x8xbf16>
    %169 = vector.extract_strided_slice %128 {offsets = [0, 16], sizes = [8, 8], strides = [1, 1]} : vector<8x32xbf16> to vector<8x8xbf16>
    %cst_64 = arith.constant dense<0.000000e+00> : vector<8x8xf32>
    %170 = tpu.matmul %167, %168, %cst_64 {dimension_numbers = #tpu.dot_dimension_numbers<[1], [1], [0], [0], [0, 0, 1, 0], [], []>} : vector<8x8xbf16>, vector<8x8xbf16>, vector<8x8xf32> -> vector<8x8xf32>
    %171 = vector.broadcast %12 : vector<1x8xf32> to vector<8x8xf32>
    %172 = arith.addf %170, %171 : vector<8x8xf32>
    %cst_65 = arith.constant dense<0xFF800000> : vector<8xf32>
    %173 = vector.multi_reduction <maximumf>, %172, %cst_65 [1] : vector<8x8xf32> to vector<8xf32>
    %174 = vector.shape_cast %173 : vector<8xf32> to vector<8x1xf32>
    %175 = vector.broadcast %174 : vector<8x1xf32> to vector<8x8xf32>
    %176 = arith.subf %172, %175 : vector<8x8xf32>
    %177 = math.exp %176 : vector<8x8xf32>
    %cst_66 = arith.constant dense<0.000000e+00> : vector<8xf32>
    %178 = vector.multi_reduction <add>, %177, %cst_66 [1] : vector<8x8xf32> to vector<8xf32>
    %179 = vector.shape_cast %178 : vector<8xf32> to vector<8x1xf32>
    %180 = vector.broadcast %179 : vector<8x1xf32> to vector<8x8xf32>
    %181 = arith.divf %177, %180 : vector<8x8xf32>
    %182 = arith.extui %0 : i1 to i32
    %c0_i32_67 = arith.constant 0 : i32
    %183 = arith.cmpi ne, %182, %c0_i32_67 : i32
    scf.if %183 {
      %c0_111 = arith.constant 0 : index
      %c2 = arith.constant 2 : index
      %c0_112 = arith.constant 0 : index
      %c0_113 = arith.constant 0 : index
      %279 = vector.load %arg29[%c0_111, %c2, %c0_112, %c0_113] : memref<1x4x8x8xf32, #tpu.memory_space<vmem>>, vector<1x1x8x8xf32>
      %280 = vector.shape_cast %279 : vector<1x1x8x8xf32> to vector<8x8xf32>
      %281 = vector.shape_cast %181 : vector<8x8xf32> to vector<1x1x8x8xf32>
      tpu.vector_store %arg29[%c0_111, %c2, %c0_112, %c0_113], %281 {strides = array<i32>} : memref<1x4x8x8xf32, #tpu.memory_space<vmem>>, vector<1x1x8x8xf32>,
    } else {
    }
    %184 = arith.truncf %181 : vector<8x8xf32> to vector<8x8xbf16>
    %cst_68 = arith.constant dense<0.000000e+00> : vector<8x8xf32>
    %185 = tpu.matmul %184, %169, %cst_68 {dimension_numbers = #tpu.dot_dimension_numbers<[1], [0], [0], [1], [0, 0, 1, 1], [], []>} : vector<8x8xbf16>, vector<8x8xbf16>, vector<8x8xf32> -> vector<8x8xf32>
    %186 = vector.extract_strided_slice %126 {offsets = [0, 24], sizes = [8, 8], strides = [1, 1]} : vector<8x32xbf16> to vector<8x8xbf16>
    %187 = vector.extract_strided_slice %127 {offsets = [0, 24], sizes = [8, 8], strides = [1, 1]} : vector<8x32xbf16> to vector<8x8xbf16>
    %188 = vector.extract_strided_slice %128 {offsets = [0, 24], sizes = [8, 8], strides = [1, 1]} : vector<8x32xbf16> to vector<8x8xbf16>
    %cst_69 = arith.constant dense<0.000000e+00> : vector<8x8xf32>
    %189 = tpu.matmul %186, %187, %cst_69 {dimension_numbers = #tpu.dot_dimension_numbers<[1], [1], [0], [0], [0, 0, 1, 0], [], []>} : vector<8x8xbf16>, vector<8x8xbf16>, vector<8x8xf32> -> vector<8x8xf32>
    %190 = vector.broadcast %12 : vector<1x8xf32> to vector<8x8xf32>
    %191 = arith.addf %189, %190 : vector<8x8xf32>
    %cst_70 = arith.constant dense<0xFF800000> : vector<8xf32>
    %192 = vector.multi_reduction <maximumf>, %191, %cst_70 [1] : vector<8x8xf32> to vector<8xf32>
    %193 = vector.shape_cast %192 : vector<8xf32> to vector<8x1xf32>
    %194 = vector.broadcast %193 : vector<8x1xf32> to vector<8x8xf32>
    %195 = arith.subf %191, %194 : vector<8x8xf32>
    %196 = math.exp %195 : vector<8x8xf32>
    %cst_71 = arith.constant dense<0.000000e+00> : vector<8xf32>
    %197 = vector.multi_reduction <add>, %196, %cst_71 [1] : vector<8x8xf32> to vector<8xf32>
    %198 = vector.shape_cast %197 : vector<8xf32> to vector<8x1xf32>
    %199 = vector.broadcast %198 : vector<8x1xf32> to vector<8x8xf32>
    %200 = arith.divf %196, %199 : vector<8x8xf32>
    %201 = arith.extui %0 : i1 to i32
    %c0_i32_72 = arith.constant 0 : i32
    %202 = arith.cmpi ne, %201, %c0_i32_72 : i32
    scf.if %202 {
      %c0_111 = arith.constant 0 : index
      %c3 = arith.constant 3 : index
      %c0_112 = arith.constant 0 : index
      %c0_113 = arith.constant 0 : index
      %279 = vector.load %arg29[%c0_111, %c3, %c0_112, %c0_113] : memref<1x4x8x8xf32, #tpu.memory_space<vmem>>, vector<1x1x8x8xf32>
      %280 = vector.shape_cast %279 : vector<1x1x8x8xf32> to vector<8x8xf32>
      %281 = vector.shape_cast %200 : vector<8x8xf32> to vector<1x1x8x8xf32>
      tpu.vector_store %arg29[%c0_111, %c3, %c0_112, %c0_113], %281 {strides = array<i32>} : memref<1x4x8x8xf32, #tpu.memory_space<vmem>>, vector<1x1x8x8xf32>,
    } else {
    }
    %203 = arith.truncf %200 : vector<8x8xf32> to vector<8x8xbf16>
    %cst_73 = arith.constant dense<0.000000e+00> : vector<8x8xf32>
    %204 = tpu.matmul %203, %188, %cst_73 {dimension_numbers = #tpu.dot_dimension_numbers<[1], [0], [0], [1], [0, 0, 1, 1], [], []>} : vector<8x8xbf16>, vector<8x8xbf16>, vector<8x8xf32> -> vector<8x8xf32>
    %205 = tpu.concatenate %147, %166, %185, %204 in 1 : vector<8x8xf32>, vector<8x8xf32>, vector<8x8xf32>, vector<8x8xf32> -> vector<8x32xf32>
    %206 = arith.truncf %205 : vector<8x32xf32> to vector<8x32xbf16>
    %c0_74 = arith.constant 0 : index
    %c0_75 = arith.constant 0 : index
    %207 = vector.load %arg18[%c0_74, %c0_75] : memref<32x32xbf16, #tpu.memory_space<vmem>>, vector<32x32xbf16>
    %cst_76 = arith.constant dense<0.000000e+00> : vector<8x32xf32>
    %208 = tpu.matmul %206, %207, %cst_76 {dimension_numbers = #tpu.dot_dimension_numbers<[1], [0], [0], [1], [0, 0, 1, 1], [], []>} : vector<8x32xbf16>, vector<32x32xbf16>, vector<8x32xf32> -> vector<8x32xf32>
    %c0_77 = arith.constant 0 : index
    %c0_78 = arith.constant 0 : index
    %209 = vector.load %arg19[%c0_77, %c0_78] : memref<1x32xf32, #tpu.memory_space<vmem>>, vector<1x32xf32>
    %210 = vector.broadcast %209 : vector<1x32xf32> to vector<8x32xf32>
    %211 = arith.addf %208, %210 : vector<8x32xf32>
    %212 = arith.addf %119, %211 : vector<8x32xf32>
    %cst_79 = arith.constant dense<0.000000e+00> : vector<8xf32>
    %213 = vector.multi_reduction <add>, %212, %cst_79 [1] : vector<8x32xf32> to vector<8xf32>
    %214 = vector.shape_cast %213 : vector<8xf32> to vector<8x1xf32>
    %cst_80 = arith.constant 3.200000e+01 : f32
    %215 = vector.broadcast %cst_80 : f32 to vector<8x1xf32>
    %216 = arith.divf %214, %215 : vector<8x1xf32>
    %217 = vector.broadcast %216 : vector<8x1xf32> to vector<8x32xf32>
    %218 = arith.subf %212, %217 : vector<8x32xf32>
    %219 = arith.mulf %218, %218 : vector<8x32xf32>
    %cst_81 = arith.constant dense<0.000000e+00> : vector<8xf32>
    %220 = vector.multi_reduction <add>, %219, %cst_81 [1] : vector<8x32xf32> to vector<8xf32>
    %221 = vector.shape_cast %220 : vector<8xf32> to vector<8x1xf32>
    %cst_82 = arith.constant 3.200000e+01 : f32
    %222 = vector.broadcast %cst_82 : f32 to vector<8x1xf32>
    %223 = arith.divf %221, %222 : vector<8x1xf32>
    %224 = vector.broadcast %216 : vector<8x1xf32> to vector<8x32xf32>
    %225 = arith.subf %212, %224 : vector<8x32xf32>
    %cst_83 = arith.constant 9.99999974E-6 : f32
    %226 = vector.broadcast %cst_83 : f32 to vector<8x1xf32>
    %227 = arith.addf %223, %226 : vector<8x1xf32>
    %228 = math.rsqrt %227 : vector<8x1xf32>
    %229 = vector.broadcast %228 : vector<8x1xf32> to vector<8x32xf32>
    %230 = arith.mulf %225, %229 : vector<8x32xf32>
    %c0_84 = arith.constant 0 : index
    %c0_85 = arith.constant 0 : index
    %231 = vector.load %arg20[%c0_84, %c0_85] : memref<1x32xf32, #tpu.memory_space<vmem>>, vector<1x32xf32>
    %232 = vector.broadcast %231 : vector<1x32xf32> to vector<8x32xf32>
    %233 = arith.mulf %230, %232 : vector<8x32xf32>
    %c0_86 = arith.constant 0 : index
    %c0_87 = arith.constant 0 : index
    %234 = vector.load %arg21[%c0_86, %c0_87] : memref<1x32xf32, #tpu.memory_space<vmem>>, vector<1x32xf32>
    %235 = vector.broadcast %234 : vector<1x32xf32> to vector<8x32xf32>
    %236 = arith.addf %233, %235 : vector<8x32xf32>
    %237 = arith.truncf %236 : vector<8x32xf32> to vector<8x32xbf16>
    %c0_88 = arith.constant 0 : index
    %c0_89 = arith.constant 0 : index
    %238 = vector.load %arg22[%c0_88, %c0_89] : memref<32x64xbf16, #tpu.memory_space<vmem>>, vector<32x64xbf16>
    %cst_90 = arith.constant dense<0.000000e+00> : vector<8x64xf32>
    %239 = tpu.matmul %237, %238, %cst_90 {dimension_numbers = #tpu.dot_dimension_numbers<[1], [0], [0], [1], [0, 0, 1, 1], [], []>} : vector<8x32xbf16>, vector<32x64xbf16>, vector<8x64xf32> -> vector<8x64xf32>
    %c0_91 = arith.constant 0 : index
    %c0_92 = arith.constant 0 : index
    %240 = vector.load %arg23[%c0_91, %c0_92] : memref<1x64xf32, #tpu.memory_space<vmem>>, vector<1x64xf32>
    %241 = vector.broadcast %240 : vector<1x64xf32> to vector<8x64xf32>
    %242 = arith.addf %239, %241 : vector<8x64xf32>
    %cst_93 = arith.constant 0.000000e+00 : f32
    %243 = vector.broadcast %cst_93 : f32 to vector<8x64xf32>
    %244 = arith.maximumf %242, %243 : vector<8x64xf32>
    %245 = arith.truncf %244 : vector<8x64xf32> to vector<8x64xbf16>
    %c0_94 = arith.constant 0 : index
    %c0_95 = arith.constant 0 : index
    %246 = vector.load %arg24[%c0_94, %c0_95] : memref<64x32xbf16, #tpu.memory_space<vmem>>, vector<64x32xbf16>
    %cst_96 = arith.constant dense<0.000000e+00> : vector<8x32xf32>
    %247 = tpu.matmul %245, %246, %cst_96 {dimension_numbers = #tpu.dot_dimension_numbers<[1], [0], [0], [1], [0, 0, 1, 1], [], []>} : vector<8x64xbf16>, vector<64x32xbf16>, vector<8x32xf32> -> vector<8x32xf32>
    %c0_97 = arith.constant 0 : index
    %c0_98 = arith.constant 0 : index
    %248 = vector.load %arg25[%c0_97, %c0_98] : memref<1x32xf32, #tpu.memory_space<vmem>>, vector<1x32xf32>
    %249 = vector.broadcast %248 : vector<1x32xf32> to vector<8x32xf32>
    %250 = arith.addf %247, %249 : vector<8x32xf32>
    %251 = arith.addf %236, %250 : vector<8x32xf32>
    %cst_99 = arith.constant dense<0.000000e+00> : vector<8xf32>
    %252 = vector.multi_reduction <add>, %251, %cst_99 [1] : vector<8x32xf32> to vector<8xf32>
    %253 = vector.shape_cast %252 : vector<8xf32> to vector<8x1xf32>
    %cst_100 = arith.constant 3.200000e+01 : f32
    %254 = vector.broadcast %cst_100 : f32 to vector<8x1xf32>
    %255 = arith.divf %253, %254 : vector<8x1xf32>
    %256 = vector.broadcast %255 : vector<8x1xf32> to vector<8x32xf32>
    %257 = arith.subf %251, %256 : vector<8x32xf32>
    %258 = arith.mulf %257, %257 : vector<8x32xf32>
    %cst_101 = arith.constant dense<0.000000e+00> : vector<8xf32>
    %259 = vector.multi_reduction <add>, %258, %cst_101 [1] : vector<8x32xf32> to vector<8xf32>
    %260 = vector.shape_cast %259 : vector<8xf32> to vector<8x1xf32>
    %cst_102 = arith.constant 3.200000e+01 : f32
    %261 = vector.broadcast %cst_102 : f32 to vector<8x1xf32>
    %262 = arith.divf %260, %261 : vector<8x1xf32>
    %263 = vector.broadcast %255 : vector<8x1xf32> to vector<8x32xf32>
    %264 = arith.subf %251, %263 : vector<8x32xf32>
    %cst_103 = arith.constant 9.99999974E-6 : f32
    %265 = vector.broadcast %cst_103 : f32 to vector<8x1xf32>
    %266 = arith.addf %262, %265 : vector<8x1xf32>
    %267 = math.rsqrt %266 : vector<8x1xf32>
    %268 = vector.broadcast %267 : vector<8x1xf32> to vector<8x32xf32>
    %269 = arith.mulf %264, %268 : vector<8x32xf32>
    %c0_104 = arith.constant 0 : index
    %c0_105 = arith.constant 0 : index
    %270 = vector.load %arg26[%c0_104, %c0_105] : memref<1x32xf32, #tpu.memory_space<vmem>>, vector<1x32xf32>
    %271 = vector.broadcast %270 : vector<1x32xf32> to vector<8x32xf32>
    %272 = arith.mulf %269, %271 : vector<8x32xf32>
    %c0_106 = arith.constant 0 : index
    %c0_107 = arith.constant 0 : index
    %273 = vector.load %arg27[%c0_106, %c0_107] : memref<1x32xf32, #tpu.memory_space<vmem>>, vector<1x32xf32>
    %274 = vector.broadcast %273 : vector<1x32xf32> to vector<8x32xf32>
    %275 = arith.addf %272, %274 : vector<8x32xf32>
    %c0_108 = arith.constant 0 : index
    %c0_109 = arith.constant 0 : index
    %276 = vector.load %arg30[%c0_108, %c0_109] : memref<8x32xf32, #tpu.memory_space<vmem>>, vector<8x32xf32>
    tpu.vector_store %arg30[%c0_108, %c0_109], %275 {strides = array<i32>} : memref<8x32xf32, #tpu.memory_space<vmem>>, vector<8x32xf32>,
    %277 = arith.extui %0 : i1 to i32
    %c0_i32_110 = arith.constant 0 : i32
    %278 = arith.cmpi ne, %277, %c0_i32_110 : i32
    scf.if %278 {
      %c0_111 = arith.constant 0 : index
      %c0_112 = arith.constant 0 : index
      %c0_113 = arith.constant 0 : index
      %279 = vector.load %arg28[%c0_111, %c0_112, %c0_113] : memref<1x8x32xf32, #tpu.memory_space<vmem>>, vector<1x8x32xf32>
      %280 = vector.shape_cast %279 : vector<1x8x32xf32> to vector<8x32xf32>
      %281 = vector.shape_cast %275 : vector<8x32xf32> to vector<1x8x32xf32>
      tpu.vector_store %arg28[%c0_111, %c0_112, %c0_113], %281 {strides = array<i32>} : memref<1x8x32xf32, #tpu.memory_space<vmem>>, vector<1x8x32xf32>,
    } else {
    }
    return
  }
  func.func @transform_0(%arg0: i32, %arg1: i32) -> (i32, i32, i32) {
    %c0_i32 = arith.constant 0 : i32
    %c0_i32_0 = arith.constant 0 : i32
    %c0_i32_1 = arith.constant 0 : i32
    return %arg0, %c0_i32, %c0_i32_0 : i32, i32, i32
  }
  func.func @transform_1(%arg0: i32, %arg1: i32) -> (i32, i32, i32) {
    %c0_i32 = arith.constant 0 : i32
    %c0_i32_0 = arith.constant 0 : i32
    %c0_i32_1 = arith.constant 0 : i32
    return %arg0, %c0_i32, %c0_i32_0 : i32, i32, i32
  }
  func.func @transform_2(%arg0: i32, %arg1: i32) -> (i32, i32, i32) {
    %c0_i32 = arith.constant 0 : i32
    %c0_i32_0 = arith.constant 0 : i32
    %c0_i32_1 = arith.constant 0 : i32
    return %arg0, %c0_i32, %c0_i32_0 : i32, i32, i32
  }
  func.func @transform_3(%arg0: i32, %arg1: i32) -> (i32, i32, i32) {
    %c0_i32 = arith.constant 0 : i32
    %c0_i32_0 = arith.constant 0 : i32
    %c0_i32_1 = arith.constant 0 : i32
    %c0_i32_2 = arith.constant 0 : i32
    return %c0_i32, %c0_i32_0, %c0_i32_1 : i32, i32, i32
  }
  func.func @transform_4(%arg0: i32, %arg1: i32) -> (i32, i32, i32) {
    %c0_i32 = arith.constant 0 : i32
    %c0_i32_0 = arith.constant 0 : i32
    %c0_i32_1 = arith.constant 0 : i32
    return %arg1, %c0_i32, %c0_i32_0 : i32, i32, i32
  }
  func.func @transform_5(%arg0: i32, %arg1: i32) -> (i32, i32) {
    %c0_i32 = arith.constant 0 : i32
    %c0_i32_0 = arith.constant 0 : i32
    %c0_i32_1 = arith.constant 0 : i32
    return %c0_i32, %c0_i32_0 : i32, i32
  }
  func.func @transform_6(%arg0: i32, %arg1: i32) -> (i32, i32) {
    %c0_i32 = arith.constant 0 : i32
    %c0_i32_0 = arith.constant 0 : i32
    %c0_i32_1 = arith.constant 0 : i32
    return %c0_i32, %c0_i32_0 : i32, i32
  }
  func.func @transform_7(%arg0: i32, %arg1: i32) -> (i32, i32) {
    %c0_i32 = arith.constant 0 : i32
    %c0_i32_0 = arith.constant 0 : i32
    %c0_i32_1 = arith.constant 0 : i32
    return %c0_i32, %c0_i32_0 : i32, i32
  }
  func.func @transform_8(%arg0: i32, %arg1: i32) -> (i32, i32) {
    %c0_i32 = arith.constant 0 : i32
    %c0_i32_0 = arith.constant 0 : i32
    %c0_i32_1 = arith.constant 0 : i32
    return %c0_i32, %c0_i32_0 : i32, i32
  }
  func.func @transform_9(%arg0: i32, %arg1: i32) -> (i32, i32) {
    %c0_i32 = arith.constant 0 : i32
    %c0_i32_0 = arith.constant 0 : i32
    %c0_i32_1 = arith.constant 0 : i32
    return %c0_i32, %c0_i32_0 : i32, i32
  }
  func.func @transform_10(%arg0: i32, %arg1: i32) -> (i32, i32) {
    %c0_i32 = arith.constant 0 : i32
    %c0_i32_0 = arith.constant 0 : i32
    %c0_i32_1 = arith.constant 0 : i32
    return %c0_i32, %c0_i32_0 : i32, i32
  }
  func.func @transform_11(%arg0: i32, %arg1: i32) -> (i32, i32) {
    %c0_i32 = arith.constant 0 : i32
    %c0_i32_0 = arith.constant 0 : i32
    %c0_i32_1 = arith.constant 0 : i32
    return %c0_i32, %c0_i32_0 : i32, i32
  }
  func.func @transform_12(%arg0: i32, %arg1: i32) -> (i32, i32) {
    %c0_i32 = arith.constant 0 : i32
    %c0_i32_0 = arith.constant 0 : i32
    %c0_i32_1 = arith.constant 0 : i32
    return %c0_i32, %c0_i32_0 : i32, i32
  }
  func.func @transform_13(%arg0: i32, %arg1: i32) -> (i32, i32) {
    %c0_i32 = arith.constant 0 : i32
    %c0_i32_0 = arith.constant 0 : i32
    %c0_i32_1 = arith.constant 0 : i32
    return %c0_i32, %c0_i32_0 : i32, i32
  }
  func.func @transform_14(%arg0: i32, %arg1: i32) -> (i32, i32) {
    %c0_i32 = arith.constant 0 : i32
    %c0_i32_0 = arith.constant 0 : i32
    %c0_i32_1 = arith.constant 0 : i32
    return %c0_i32, %c0_i32_0 : i32, i32
  }
  func.func @transform_15(%arg0: i32, %arg1: i32) -> (i32, i32) {
    %c0_i32 = arith.constant 0 : i32
    %c0_i32_0 = arith.constant 0 : i32
    %c0_i32_1 = arith.constant 0 : i32
    return %c0_i32, %c0_i32_0 : i32, i32
  }
  func.func @transform_16(%arg0: i32, %arg1: i32) -> (i32, i32) {
    %c0_i32 = arith.constant 0 : i32
    %c0_i32_0 = arith.constant 0 : i32
    %c0_i32_1 = arith.constant 0 : i32
    return %c0_i32, %c0_i32_0 : i32, i32
  }
  func.func @transform_17(%arg0: i32, %arg1: i32) -> (i32, i32) {
    %c0_i32 = arith.constant 0 : i32
    %c0_i32_0 = arith.constant 0 : i32
    %c0_i32_1 = arith.constant 0 : i32
    return %c0_i32, %c0_i32_0 : i32, i32
  }
  func.func @transform_18(%arg0: i32, %arg1: i32) -> (i32, i32) {
    %c0_i32 = arith.constant 0 : i32
    %c0_i32_0 = arith.constant 0 : i32
    %c0_i32_1 = arith.constant 0 : i32
    return %c0_i32, %c0_i32_0 : i32, i32
  }
  func.func @transform_19(%arg0: i32, %arg1: i32) -> (i32, i32) {
    %c0_i32 = arith.constant 0 : i32
    %c0_i32_0 = arith.constant 0 : i32
    %c0_i32_1 = arith.constant 0 : i32
    return %c0_i32, %c0_i32_0 : i32, i32
  }
  func.func @transform_20(%arg0: i32, %arg1: i32) -> (i32, i32) {
    %c0_i32 = arith.constant 0 : i32
    %c0_i32_0 = arith.constant 0 : i32
    %c0_i32_1 = arith.constant 0 : i32
    return %c0_i32, %c0_i32_0 : i32, i32
  }
  func.func @transform_21(%arg0: i32, %arg1: i32) -> (i32, i32) {
    %c0_i32 = arith.constant 0 : i32
    %c0_i32_0 = arith.constant 0 : i32
    %c0_i32_1 = arith.constant 0 : i32
    return %c0_i32, %c0_i32_0 : i32, i32
  }
  func.func @transform_22(%arg0: i32, %arg1: i32) -> (i32, i32) {
    %c0_i32 = arith.constant 0 : i32
    %c0_i32_0 = arith.constant 0 : i32
    %c0_i32_1 = arith.constant 0 : i32
    return %c0_i32, %c0_i32_0 : i32, i32
  }
  func.func @transform_23(%arg0: i32, %arg1: i32) -> (i32, i32) {
    %c0_i32 = arith.constant 0 : i32
    %c0_i32_0 = arith.constant 0 : i32
    %c0_i32_1 = arith.constant 0 : i32
    return %c0_i32, %c0_i32_0 : i32, i32
  }
  func.func @transform_24(%arg0: i32, %arg1: i32) -> (i32, i32) {
    %c0_i32 = arith.constant 0 : i32
    %c0_i32_0 = arith.constant 0 : i32
    %c0_i32_1 = arith.constant 0 : i32
    return %c0_i32, %c0_i32_0 : i32, i32
  }
  func.func @transform_25(%arg0: i32, %arg1: i32) -> (i32, i32) {
    %c0_i32 = arith.constant 0 : i32
    %c0_i32_0 = arith.constant 0 : i32
    %c0_i32_1 = arith.constant 0 : i32
    return %c0_i32, %c0_i32_0 : i32, i32
  }
  func.func @transform_26(%arg0: i32, %arg1: i32) -> (i32, i32, i32) {
    %c0_i32 = arith.constant 0 : i32
    %c0_i32_0 = arith.constant 0 : i32
    %c0_i32_1 = arith.constant 0 : i32
    return %arg0, %c0_i32, %c0_i32_0 : i32, i32, i32
  }
  func.func @transform_27(%arg0: i32, %arg1: i32) -> (i32, i32, i32, i32) {
    %c0_i32 = arith.constant 0 : i32
    %c0_i32_0 = arith.constant 0 : i32
    %c0_i32_1 = arith.constant 0 : i32
    %c0_i32_2 = arith.constant 0 : i32
    return %arg0, %c0_i32, %c0_i32_0, %c0_i32_1 : i32, i32, i32, i32
  }
}

</mosaic_0001>

<llo_original>
// kernel: decoder_forward.1
$region0: #{decoder_forward.1}
  #allocation0 [shape = 'u32[]', space=smem, size = 0x4, offset = 0x4, fixed_abs, tag = 'smem constant byte address 0x4 - core index']
  #allocation1 [shape = 'u32[144,128]{1,0:T(1,128)}', space=vmem, size = 0x12000, scoped, tag = 'internal scratch']
  #allocation2 [shape = 'f32[8,32]{1,0:T(8,128)}', space=vmem, size = 0x1000, scoped, tag = 'scratch operand']
  #allocation3 [shape = 'bf16[8,32]{1,0:T(8,128)(2,1)}', space=vmem, size = 0x800, scoped, tag = 'scratch operand']
  #allocation4 [shape = 'bf16[8,32]{1,0:T(8,128)(2,1)}', space=vmem, size = 0x800, scoped, tag = 'scratch operand']
  %s0 = inlined_call_operand.vmem [shape: f32[2,8,32], index: 0, kind: input, shape index: {}]
  %s1 = inlined_call_operand.vmem [shape: f32[2,8,32], index: 1, kind: input, shape index: {}]
  %s2 = inlined_call_operand.vmem [shape: f32[2,1,8], index: 2, kind: input, shape index: {}]
  %s3 = inlined_call_operand.vmem [shape: f32[1,8,8], index: 3, kind: input, shape index: {}]
  %s4 = inlined_call_operand.vmem [shape: f32[2,1,32], index: 4, kind: input, shape index: {}]
  %s5 = inlined_call_operand.vmem [shape: bf16[32,96], index: 5, kind: input, shape index: {}]
  %s6 = inlined_call_operand.hbm [shape: f32[1,96], index: 6, kind: input, shape index: {}]
  %s7 = inlined_call_operand.vmem [shape: bf16[32,32], index: 7, kind: input, shape index: {}]
  %s8 = inlined_call_operand.hbm [shape: f32[1,32], index: 8, kind: input, shape index: {}]
  %s9 = inlined_call_operand.hbm [shape: f32[1,32], index: 9, kind: input, shape index: {}]
  %s10 = inlined_call_operand.hbm [shape: f32[1,32], index: 10, kind: input, shape index: {}]
  %s11 = inlined_call_operand.vmem [shape: bf16[32,32], index: 11, kind: input, shape index: {}]
  %s12 = inlined_call_operand.hbm [shape: f32[1,32], index: 12, kind: input, shape index: {}]
  %s13 = inlined_call_operand.vmem [shape: bf16[32,32], index: 13, kind: input, shape index: {}]
  %s14 = inlined_call_operand.hbm [shape: bf16[32,32], index: 14, kind: input, shape index: {}]
  %s15 = inlined_call_operand.hbm [shape: f32[1,32], index: 15, kind: input, shape index: {}]
  %s16 = inlined_call_operand.hbm [shape: bf16[32,32], index: 16, kind: input, shape index: {}]
  %s17 = inlined_call_operand.hbm [shape: f32[1,32], index: 17, kind: input, shape index: {}]
  %s18 = inlined_call_operand.hbm [shape: f32[1,32], index: 18, kind: input, shape index: {}]
  %s19 = inlined_call_operand.hbm [shape: f32[1,32], index: 19, kind: input, shape index: {}]
  %s20 = inlined_call_operand.hbm [shape: bf16[32,64], index: 20, kind: input, shape index: {}]
  %s21 = inlined_call_operand.hbm [shape: f32[1,64], index: 21, kind: input, shape index: {}]
  %s22 = inlined_call_operand.vmem [shape: bf16[64,32], index: 22, kind: input, shape index: {}]
  %s23 = inlined_call_operand.hbm [shape: f32[1,32], index: 23, kind: input, shape index: {}]
  %s24 = inlined_call_operand.hbm [shape: f32[1,32], index: 24, kind: input, shape index: {}]
  %s25 = inlined_call_operand.hbm [shape: f32[1,32], index: 25, kind: input, shape index: {}]
  %s26 = inlined_call_operand.hbm [shape: f32[2,8,32], index: 26, kind: output, shape index: {0}]
  %s27 = inlined_call_operand.hbm [shape: f32[2,4,8,8], index: 27, kind: output, shape index: {1}]
  %28 = xla_tuple %s26, %s27
  %s29 = sld [smem:[#allocation0]]
  $region233: #{decoder_forward.1} parent=0
    _
  %s31 = ssub.s32 1, %s29
  %s32 = scalar_select 0, %s31, %s29
  $region1: #{decoder_forward.1} parent=0
    #allocation5 [shape = 'u8[512]{0}', space=vmem, size = 0x400, scoped, tag = 'input window, operand 6, single buffered']
    #allocation6 [shape = 's32[2]{0}', space=sflag, size = 0x8, scoped, tag = 'scoped memory for decoder_forward.1']
    #allocation7 [shape = 's32[2]{0}', space=sflag, size = 0x8, scoped, tag = 'scoped memory for decoder_forward.1']
    #allocation8 [shape = 'u8[512]{0}', space=vmem, size = 0x400, scoped, tag = 'input window, operand 8, single buffered']
    #allocation9 [shape = 's32[1]{0}', space=sflag, size = 0x4, scoped, tag = 'scoped memory for decoder_forward.1']
    #allocation10 [shape = 'u8[512]{0}', space=vmem, size = 0x400, scoped, tag = 'input window, operand 9, single buffered']
    #allocation11 [shape = 'u8[512]{0}', space=vmem, size = 0x400, scoped, tag = 'input window, operand 10, single buffered']
    #allocation12 [shape = 's32[1]{0}', space=sflag, size = 0x4, scoped, tag = 'scoped memory for decoder_forward.1']
    #allocation13 [shape = 'u8[512]{0}', space=vmem, size = 0x400, scoped, tag = 'input window, operand 12, single buffered']
    #allocation14 [shape = 'u8[8192]{0}', space=vmem, size = 0x2000, scoped, tag = 'input window, operand 14, single buffered']
    #allocation15 [shape = 's32[1]{0}', space=sflag, size = 0x4, scoped, tag = 'scoped memory for decoder_forward.1']
    #allocation16 [shape = 'u8[512]{0}', space=vmem, size = 0x400, scoped, tag = 'input window, operand 15, single buffered']
    #allocation17 [shape = 'u8[8192]{0}', space=vmem, size = 0x2000, scoped, tag = 'input window, operand 16, single buffered']
    #allocation18 [shape = 's32[1]{0}', space=sflag, size = 0x4, scoped, tag = 'scoped memory for decoder_forward.1']
    #allocation19 [shape = 'u8[512]{0}', space=vmem, size = 0x400, scoped, tag = 'input window, operand 17, single buffered']
    #allocation20 [shape = 'u8[512]{0}', space=vmem, size = 0x400, scoped, tag = 'input window, operand 18, single buffered']
    #allocation21 [shape = 's32[1]{0}', space=sflag, size = 0x4, scoped, tag = 'scoped memory for decoder_forward.1']
    #allocation22 [shape = 'u8[512]{0}', space=vmem, size = 0x400, scoped, tag = 'input window, operand 19, single buffered']
    #allocation23 [shape = 'u8[8192]{0}', space=vmem, size = 0x2000, scoped, tag = 'input window, operand 20, single buffered']
    #allocation24 [shape = 's32[1]{0}', space=sflag, size = 0x4, scoped, tag = 'scoped memory for decoder_forward.1']
    #allocation25 [shape = 'u8[512]{0}', space=vmem, size = 0x400, scoped, tag = 'input window, operand 21, single buffered']
    #allocation26 [shape = 'u8[512]{0}', space=vmem, size = 0x400, scoped, tag = 'input window, operand 23, single buffered']
    #allocation27 [shape = 's32[1]{0}', space=sflag, size = 0x4, scoped, tag = 'scoped memory for decoder_forward.1']
    #allocation28 [shape = 'u8[512]{0}', space=vmem, size = 0x400, scoped, tag = 'input window, operand 24, single buffered']
    #allocation29 [shape = 'u8[512]{0}', space=vmem, size = 0x400, scoped, tag = 'input window, operand 25, single buffered']
    #allocation30 [shape = 's32[1]{0}', space=sflag, size = 0x4, scoped, tag = 'scoped memory for decoder_forward.1']
    #allocation31 [shape = 'u8[8192]{0}', space=vmem, size = 0x2000, scoped, tag = 'output window, operand 0']
    #allocation32 [shape = 'u8[32768]{0}', space=vmem, size = 0x8000, scoped, tag = 'output window, operand 1']
    #allocation33 [shape = 's32[2]{0}', space=sflag, size = 0x8, scoped, tag = 'scoped memory for decoder_forward.1']
    %33 = vsyncpa [#allocation6], 0
    %34 = vsyncpa [#allocation9], 0
    %35 = vsyncpa [#allocation12], 0
    %36 = vsyncpa [#allocation15], 0
    %37 = vsyncpa [#allocation18], 0
    %38 = vsyncpa [#allocation21], 0
    %39 = vsyncpa [#allocation24], 0
    %40 = vsyncpa [#allocation27], 0
    %41 = vsyncpa [#allocation30], 0
    %42 = vsyncpa [#allocation7], 0
    %s43 = scalar_lea.sflag [#allocation7], 1
    %44 = vsyncpa %s43, 0
    %45 = vsyncpa [#allocation33], 0
    %s46 = scalar_lea.sflag [#allocation33], 1
    %47 = vsyncpa %s46, 0
    loop: start=0, step=1, limit=6
    $region2: #{decoder_forward.1} parent=1 // loop_pre_header
      _
    $region3: #{decoder_forward.1} parent=1 // loop_header
      %s49 = sphi 0, %s53
      %p50 = scmp.ge.s32.totalorder %s49, 6
      %s56 = sphi 0, %s68
      %s57 = sphi 0, %s64
      %s58 = sphi 0, %s56
      %s59 = sphi 0, %s57
      %s60 = sphi 0, %s58
      %s61 = sphi 0, %s59
      %s71 = sphi 0, %s73
      %s74 = sphi 0, %s71
      %s75 = sphi 0, %s74
      %s91 = sphi 0, %s75
      %s97 = sphi 0, %s99
      %s100 = sphi 0, %s97
      %s101 = sphi 0, %s100
      %s117 = sphi 0, %s101
      %s123 = sphi 0, %s125
      %s126 = sphi 0, %s123
      %s127 = sphi 0, %s126
      %s143 = sphi 0, %s127
      %s147 = sphi 0, %s147
      %s149 = sphi 0, %s147
      %s150 = sphi 0, %s149
      %s164 = sphi 0, %s150
      %s170 = sphi 0, %s172
      %s173 = sphi 0, %s170
      %s174 = sphi 0, %s173
      %s190 = sphi 0, %s174
      %s194 = sphi 0, %s194
      %s196 = sphi 0, %s194
      %s197 = sphi 0, %s196
      %s211 = sphi 0, %s197
      %s215 = sphi 0, %s215
      %s217 = sphi 0, %s215
      %s218 = sphi 0, %s217
      %s232 = sphi 0, %s218
      %s236 = sphi 0, %s236
      %s238 = sphi 0, %s236
      %s239 = sphi 0, %s238
      %s253 = sphi 0, %s239
      %s257 = sphi 0, %s257
      %s259 = sphi 0, %s257
      %s260 = sphi 0, %s259
      %s274 = sphi 0, %s260
      %s278 = sphi 0, %s278
      %s280 = sphi 0, %s278
      %s281 = sphi 0, %s280
      %s295 = sphi 0, %s281
      %s299 = sphi 0, %s299
      %s301 = sphi 0, %s299
      %s302 = sphi 0, %s301
      %s316 = sphi 0, %s302
      %s320 = sphi 0, %s320
      %s322 = sphi 0, %s320
      %s323 = sphi 0, %s322
      %s337 = sphi 0, %s323
      %s341 = sphi 0, %s341
      %s343 = sphi 0, %s341
      %s344 = sphi 0, %s343
      %s358 = sphi 0, %s344
      %s362 = sphi 0, %s362
      %s364 = sphi 0, %s362
      %s365 = sphi 0, %s364
      %s379 = sphi 0, %s365
      %s383 = sphi 0, %s383
      %s385 = sphi 0, %s383
      %s386 = sphi 0, %s385
      %s400 = sphi 0, %s386
      %s404 = sphi 0, %s404
      %s406 = sphi 0, %s404
      %s407 = sphi 0, %s406
      %s421 = sphi 0, %s407
      %s425 = sphi 0, %s425
      %s427 = sphi 0, %s425
      %s428 = sphi 0, %s427
      %s442 = sphi 0, %s428
      %s446 = sphi 0, %s446
      %s448 = sphi 0, %s446
      %s449 = sphi 0, %s448
      %s463 = sphi 0, %s449
      %s467 = sphi 0, %s467
      %s469 = sphi 0, %s467
      %s470 = sphi 0, %s469
      %s484 = sphi 0, %s470
      %s488 = sphi 0, %s488
      %s490 = sphi 0, %s488
      %s491 = sphi 0, %s490
      %s505 = sphi 0, %s491
      %s509 = sphi 0, %s509
      %s511 = sphi 0, %s509
      %s512 = sphi 0, %s511
      %s526 = sphi 0, %s512
      %s530 = sphi 0, %s530
      %s532 = sphi 0, %s530
      %s533 = sphi 0, %s532
      %s547 = sphi 0, %s533
      %s551 = sphi 0, %s551
      %s553 = sphi 0, %s551
      %s554 = sphi 0, %s553
      %s568 = sphi 0, %s554
      %s572 = sphi 0, %s572
      %s574 = sphi 0, %s572
      %s575 = sphi 0, %s574
      %s589 = sphi 0, %s575
      %s593 = sphi 0, %s593
      %s595 = sphi 0, %s593
      %s596 = sphi 0, %s595
      %s610 = sphi 0, %s596
      %s614 = sphi 0, %s614
      %s616 = sphi 0, %s614
      %s617 = sphi 0, %s616
      %s631 = sphi 0, %s617
      %s637 = sphi 0, %s639
      %s640 = sphi 0, %s637
      %s641 = sphi 0, %s640
      %s657 = sphi 0, %s641
      %s663 = sphi 0, %s665
      %s666 = sphi 0, %s663
      %s667 = sphi 0, %s666
      %s683 = sphi 0, %s667
    $region4: #{decoder_forward.1} parent=1 // loop_header_branch
      %52 = sbr.rel (%p50) target = $region8
    $region5: #{decoder_forward.1} parent=1 // loop_body
      %s54 = ssub.s32 %s49, 1
      %s55 = ssub.s32 %s49, 2
      %s62 = sadd.s32 1, %s57
      %p63 = scmp.ge.s32.totalorder %s62, 2
      %s64 = scalar_select %p63, 0, %s62
      %s65 = sadd.s32 1, %s56
      %s66 = scalar_select %p63, %s65, %s56
      %p67 = scmp.ge.s32.totalorder %s66, 2
      %s68 = scalar_select %p67, 0, %s66
      %s69 = ssub.s32 %s56, %s68
      %p70 = scmp.eq.s32.totalorder %s69, 0
      %s72 = sadd.s32 %s71, 1
      %s73 = scalar_select %p70, %s71, %s72
      %p76 = pneg %p70
      %p77 = scmp.eq.s32.totalorder %s49, 3
      %p78 = por %p76, %p77
      %p79 = scmp.ne.s32.totalorder %s71, %s74
      %p80 = scmp.eq.s32.totalorder %s49, 0
      %p81 = por %p79, %p80
      %p82 = scmp.ne.s32.totalorder %s71, %s74
      %p83 = scmp.eq.s32.totalorder %s54, 3
      %p84 = por %p82, %p83
      %p85 = scmp.ne.s32.totalorder %s74, %s75
      %p86 = scmp.eq.s32.totalorder %s54, 0
      %p87 = por %p85, %p86
      %p88 = scmp.ne.s32.totalorder %s74, %s75
      %p89 = scmp.eq.s32.totalorder %s55, 3
      %p90 = por %p88, %p89
      %p92 = scmp.ne.s32.totalorder %s75, %s91
      %p93 = scmp.eq.s32.totalorder %s55, 0
      %p94 = por %p92, %p93
      %s95 = ssub.s32 %s56, %s68
      %p96 = scmp.eq.s32.totalorder %s95, 0
      %s98 = sadd.s32 %s97, 1
      %s99 = scalar_select %p96, %s97, %s98
      %p102 = pneg %p96
      %p103 = scmp.eq.s32.totalorder %s49, 3
      %p104 = por %p102, %p103
      %p105 = scmp.ne.s32.totalorder %s97, %s100
      %p106 = scmp.eq.s32.totalorder %s49, 0
      %p107 = por %p105, %p106
      %p108 = scmp.ne.s32.totalorder %s97, %s100
      %p109 = scmp.eq.s32.totalorder %s54, 3
      %p110 = por %p108, %p109
      %p111 = scmp.ne.s32.totalorder %s100, %s101
      %p112 = scmp.eq.s32.totalorder %s54, 0
      %p113 = por %p111, %p112
      %p114 = scmp.ne.s32.totalorder %s100, %s101
      %p115 = scmp.eq.s32.totalorder %s55, 3
      %p116 = por %p114, %p115
      %p118 = scmp.ne.s32.totalorder %s101, %s117
      %p119 = scmp.eq.s32.totalorder %s55, 0
      %p120 = por %p118, %p119
      %s121 = ssub.s32 %s56, %s68
      %p122 = scmp.eq.s32.totalorder %s121, 0
      %s124 = sadd.s32 %s123, 1
      %s125 = scalar_select %p122, %s123, %s124
      %p128 = pneg %p122
      %p129 = scmp.eq.s32.totalorder %s49, 3
      %p130 = por %p128, %p129
      %p131 = scmp.ne.s32.totalorder %s123, %s126
      %p132 = scmp.eq.s32.totalorder %s49, 0
      %p133 = por %p131, %p132
      %p134 = scmp.ne.s32.totalorder %s123, %s126
      %p135 = scmp.eq.s32.totalorder %s54, 3
      %p136 = por %p134, %p135
      %p137 = scmp.ne.s32.totalorder %s126, %s127
      %p138 = scmp.eq.s32.totalorder %s54, 0
      %p139 = por %p137, %p138
      %p140 = scmp.ne.s32.totalorder %s126, %s127
      %p141 = scmp.eq.s32.totalorder %s55, 3
      %p142 = por %p140, %p141
      %p144 = scmp.ne.s32.totalorder %s127, %s143
      %p145 = scmp.eq.s32.totalorder %s55, 0
      %p146 = por %p144, %p145
      %s148 = sadd.s32 %s147, 1
      %p151 = scmp.eq.s32.totalorder %s49, 3
      %p152 = scmp.ne.s32.totalorder %s147, %s149
      %p153 = scmp.eq.s32.totalorder %s49, 0
      %p154 = por %p152, %p153
      %p155 = scmp.ne.s32.totalorder %s147, %s149
      %p156 = scmp.eq.s32.totalorder %s54, 3
      %p157 = por %p155, %p156
      %p158 = scmp.ne.s32.totalorder %s149, %s150
      %p159 = scmp.eq.s32.totalorder %s54, 0
      %p160 = por %p158, %p159
      %p161 = scmp.ne.s32.totalorder %s149, %s150
      %p162 = scmp.eq.s32.totalorder %s55, 3
      %p163 = por %p161, %p162
      %p165 = scmp.ne.s32.totalorder %s150, %s164
      %p166 = scmp.eq.s32.totalorder %s55, 0
      %p167 = por %p165, %p166
      %s168 = ssub.s32 %s57, %s64
      %p169 = scmp.eq.s32.totalorder %s168, 0
      %s171 = sadd.s32 %s170, 1
      %s172 = scalar_select %p169, %s170, %s171
      %p175 = pneg %p169
      %p176 = scmp.eq.s32.totalorder %s49, 3
      %p177 = por %p175, %p176
      %p178 = scmp.ne.s32.totalorder %s170, %s173
      %p179 = scmp.eq.s32.totalorder %s49, 0
      %p180 = por %p178, %p179
      %p181 = scmp.ne.s32.totalorder %s170, %s173
      %p182 = scmp.eq.s32.totalorder %s54, 3
      %p183 = por %p181, %p182
      %p184 = scmp.ne.s32.totalorder %s173, %s174
      %p185 = scmp.eq.s32.totalorder %s54, 0
      %p186 = por %p184, %p185
      %p187 = scmp.ne.s32.totalorder %s173, %s174
      %p188 = scmp.eq.s32.totalorder %s55, 3
      %p189 = por %p187, %p188
      %p191 = scmp.ne.s32.totalorder %s174, %s190
      %p192 = scmp.eq.s32.totalorder %s55, 0
      %p193 = por %p191, %p192
      %s195 = sadd.s32 %s194, 1
      %p198 = scmp.eq.s32.totalorder %s49, 3
      %p199 = scmp.ne.s32.totalorder %s194, %s196
      %p200 = scmp.eq.s32.totalorder %s49, 0
      %p201 = por %p199, %p200
      %p202 = scmp.ne.s32.totalorder %s194, %s196
      %p203 = scmp.eq.s32.totalorder %s54, 3
      %p204 = por %p202, %p203
      %p205 = scmp.ne.s32.totalorder %s196, %s197
      %p206 = scmp.eq.s32.totalorder %s54, 0
      %p207 = por %p205, %p206
      %p208 = scmp.ne.s32.totalorder %s196, %s197
      %p209 = scmp.eq.s32.totalorder %s55, 3
      %p210 = por %p208, %p209
      %p212 = scmp.ne.s32.totalorder %s197, %s211
      %p213 = scmp.eq.s32.totalorder %s55, 0
      %p214 = por %p212, %p213
      %s216 = sadd.s32 %s215, 1
      %p219 = scmp.eq.s32.totalorder %s49, 3
      %p220 = scmp.ne.s32.totalorder %s215, %s217
      %p221 = scmp.eq.s32.totalorder %s49, 0
      %p222 = por %p220, %p221
      %p223 = scmp.ne.s32.totalorder %s215, %s217
      %p224 = scmp.eq.s32.totalorder %s54, 3
      %p225 = por %p223, %p224
      %p226 = scmp.ne.s32.totalorder %s217, %s218
      %p227 = scmp.eq.s32.totalorder %s54, 0
      %p228 = por %p226, %p227
      %p229 = scmp.ne.s32.totalorder %s217, %s218
      %p230 = scmp.eq.s32.totalorder %s55, 3
      %p231 = por %p229, %p230
      %p233 = scmp.ne.s32.totalorder %s218, %s232
      %p234 = scmp.eq.s32.totalorder %s55, 0
      %p235 = por %p233, %p234
      %s237 = sadd.s32 %s236, 1
      %p240 = scmp.eq.s32.totalorder %s49, 3
      %p241 = scmp.ne.s32.totalorder %s236, %s238
      %p242 = scmp.eq.s32.totalorder %s49, 0
      %p243 = por %p241, %p242
      %p244 = scmp.ne.s32.totalorder %s236, %s238
      %p245 = scmp.eq.s32.totalorder %s54, 3
      %p246 = por %p244, %p245
      %p247 = scmp.ne.s32.totalorder %s238, %s239
      %p248 = scmp.eq.s32.totalorder %s54, 0
      %p249 = por %p247, %p248
      %p250 = scmp.ne.s32.totalorder %s238, %s239
      %p251 = scmp.eq.s32.totalorder %s55, 3
      %p252 = por %p250, %p251
      %p254 = scmp.ne.s32.totalorder %s239, %s253
      %p255 = scmp.eq.s32.totalorder %s55, 0
      %p256 = por %p254, %p255
      %s258 = sadd.s32 %s257, 1
      %p261 = scmp.eq.s32.totalorder %s49, 3
      %p262 = scmp.ne.s32.totalorder %s257, %s259
      %p263 = scmp.eq.s32.totalorder %s49, 0
      %p264 = por %p262, %p263
      %p265 = scmp.ne.s32.totalorder %s257, %s259
      %p266 = scmp.eq.s32.totalorder %s54, 3
      %p267 = por %p265, %p266
      %p268 = scmp.ne.s32.totalorder %s259, %s260
      %p269 = scmp.eq.s32.totalorder %s54, 0
      %p270 = por %p268, %p269
      %p271 = scmp.ne.s32.totalorder %s259, %s260
      %p272 = scmp.eq.s32.totalorder %s55, 3
      %p273 = por %p271, %p272
      %p275 = scmp.ne.s32.totalorder %s260, %s274
      %p276 = scmp.eq.s32.totalorder %s55, 0
      %p277 = por %p275, %p276
      %s279 = sadd.s32 %s278, 1
      %p282 = scmp.eq.s32.totalorder %s49, 3
      %p283 = scmp.ne.s32.totalorder %s278, %s280
      %p284 = scmp.eq.s32.totalorder %s49, 0
      %p285 = por %p283, %p284
      %p286 = scmp.ne.s32.totalorder %s278, %s280
      %p287 = scmp.eq.s32.totalorder %s54, 3
      %p288 = por %p286, %p287
      %p289 = scmp.ne.s32.totalorder %s280, %s281
      %p290 = scmp.eq.s32.totalorder %s54, 0
      %p291 = por %p289, %p290
      %p292 = scmp.ne.s32.totalorder %s280, %s281
      %p293 = scmp.eq.s32.totalorder %s55, 3
      %p294 = por %p292, %p293
      %p296 = scmp.ne.s32.totalorder %s281, %s295
      %p297 = scmp.eq.s32.totalorder %s55, 0
      %p298 = por %p296, %p297
      %s300 = sadd.s32 %s299, 1
      %p303 = scmp.eq.s32.totalorder %s49, 3
      %p304 = scmp.ne.s32.totalorder %s299, %s301
      %p305 = scmp.eq.s32.totalorder %s49, 0
      %p306 = por %p304, %p305
      %p307 = scmp.ne.s32.totalorder %s299, %s301
      %p308 = scmp.eq.s32.totalorder %s54, 3
      %p309 = por %p307, %p308
      %p310 = scmp.ne.s32.totalorder %s301, %s302
      %p311 = scmp.eq.s32.totalorder %s54, 0
      %p312 = por %p310, %p311
      %p313 = scmp.ne.s32.totalorder %s301, %s302
      %p314 = scmp.eq.s32.totalorder %s55, 3
      %p315 = por %p313, %p314
      %p317 = scmp.ne.s32.totalorder %s302, %s316
      %p318 = scmp.eq.s32.totalorder %s55, 0
      %p319 = por %p317, %p318
      %s321 = sadd.s32 %s320, 1
      %p324 = scmp.eq.s32.totalorder %s49, 3
      %p325 = scmp.ne.s32.totalorder %s320, %s322
      %p326 = scmp.eq.s32.totalorder %s49, 0
      %p327 = por %p325, %p326
      %p328 = scmp.ne.s32.totalorder %s320, %s322
      %p329 = scmp.eq.s32.totalorder %s54, 3
      %p330 = por %p328, %p329
      %p331 = scmp.ne.s32.totalorder %s322, %s323
      %p332 = scmp.eq.s32.totalorder %s54, 0
      %p333 = por %p331, %p332
      %p334 = scmp.ne.s32.totalorder %s322, %s323
      %p335 = scmp.eq.s32.totalorder %s55, 3
      %p336 = por %p334, %p335
      %p338 = scmp.ne.s32.totalorder %s323, %s337
      %p339 = scmp.eq.s32.totalorder %s55, 0
      %p340 = por %p338, %p339
      %s342 = sadd.s32 %s341, 1
      %p345 = scmp.eq.s32.totalorder %s49, 3
      %p346 = scmp.ne.s32.totalorder %s341, %s343
      %p347 = scmp.eq.s32.totalorder %s49, 0
      %p348 = por %p346, %p347
      %p349 = scmp.ne.s32.totalorder %s341, %s343
      %p350 = scmp.eq.s32.totalorder %s54, 3
      %p351 = por %p349, %p350
      %p352 = scmp.ne.s32.totalorder %s343, %s344
      %p353 = scmp.eq.s32.totalorder %s54, 0
      %p354 = por %p352, %p353
      %p355 = scmp.ne.s32.totalorder %s343, %s344
      %p356 = scmp.eq.s32.totalorder %s55, 3
      %p357 = por %p355, %p356
      %p359 = scmp.ne.s32.totalorder %s344, %s358
      %p360 = scmp.eq.s32.totalorder %s55, 0
      %p361 = por %p359, %p360
      %s363 = sadd.s32 %s362, 1
      %p366 = scmp.eq.s32.totalorder %s49, 3
      %p367 = scmp.ne.s32.totalorder %s362, %s364
      %p368 = scmp.eq.s32.totalorder %s49, 0
      %p369 = por %p367, %p368
      %p370 = scmp.ne.s32.totalorder %s362, %s364
      %p371 = scmp.eq.s32.totalorder %s54, 3
      %p372 = por %p370, %p371
      %p373 = scmp.ne.s32.totalorder %s364, %s365
      %p374 = scmp.eq.s32.totalorder %s54, 0
      %p375 = por %p373, %p374
      %p376 = scmp.ne.s32.totalorder %s364, %s365
      %p377 = scmp.eq.s32.totalorder %s55, 3
      %p378 = por %p376, %p377
      %p380 = scmp.ne.s32.totalorder %s365, %s379
      %p381 = scmp.eq.s32.totalorder %s55, 0
      %p382 = por %p380, %p381
      %s384 = sadd.s32 %s383, 1
      %p387 = scmp.eq.s32.totalorder %s49, 3
      %p388 = scmp.ne.s32.totalorder %s383, %s385
      %p389 = scmp.eq.s32.totalorder %s49, 0
      %p390 = por %p388, %p389
      %p391 = scmp.ne.s32.totalorder %s383, %s385
      %p392 = scmp.eq.s32.totalorder %s54, 3
      %p393 = por %p391, %p392
      %p394 = scmp.ne.s32.totalorder %s385, %s386
      %p395 = scmp.eq.s32.totalorder %s54, 0
      %p396 = por %p394, %p395
      %p397 = scmp.ne.s32.totalorder %s385, %s386
      %p398 = scmp.eq.s32.totalorder %s55, 3
      %p399 = por %p397, %p398
      %p401 = scmp.ne.s32.totalorder %s386, %s400
      %p402 = scmp.eq.s32.totalorder %s55, 0
      %p403 = por %p401, %p402
      %s405 = sadd.s32 %s404, 1
      %p408 = scmp.eq.s32.totalorder %s49, 3
      %p409 = scmp.ne.s32.totalorder %s404, %s406
      %p410 = scmp.eq.s32.totalorder %s49, 0
      %p411 = por %p409, %p410
      %p412 = scmp.ne.s32.totalorder %s404, %s406
      %p413 = scmp.eq.s32.totalorder %s54, 3
      %p414 = por %p412, %p413
      %p415 = scmp.ne.s32.totalorder %s406, %s407
      %p416 = scmp.eq.s32.totalorder %s54, 0
      %p417 = por %p415, %p416
      %p418 = scmp.ne.s32.totalorder %s406, %s407
      %p419 = scmp.eq.s32.totalorder %s55, 3
      %p420 = por %p418, %p419
      %p422 = scmp.ne.s32.totalorder %s407, %s421
      %p423 = scmp.eq.s32.totalorder %s55, 0
      %p424 = por %p422, %p423
      %s426 = sadd.s32 %s425, 1
      %p429 = scmp.eq.s32.totalorder %s49, 3
      %p430 = scmp.ne.s32.totalorder %s425, %s427
      %p431 = scmp.eq.s32.totalorder %s49, 0
      %p432 = por %p430, %p431
      %p433 = scmp.ne.s32.totalorder %s425, %s427
      %p434 = scmp.eq.s32.totalorder %s54, 3
      %p435 = por %p433, %p434
      %p436 = scmp.ne.s32.totalorder %s427, %s428
      %p437 = scmp.eq.s32.totalorder %s54, 0
      %p438 = por %p436, %p437
      %p439 = scmp.ne.s32.totalorder %s427, %s428
      %p440 = scmp.eq.s32.totalorder %s55, 3
      %p441 = por %p439, %p440
      %p443 = scmp.ne.s32.totalorder %s428, %s442
      %p444 = scmp.eq.s32.totalorder %s55, 0
      %p445 = por %p443, %p444
      %s447 = sadd.s32 %s446, 1
      %p450 = scmp.eq.s32.totalorder %s49, 3
      %p451 = scmp.ne.s32.totalorder %s446, %s448
      %p452 = scmp.eq.s32.totalorder %s49, 0
      %p453 = por %p451, %p452
      %p454 = scmp.ne.s32.totalorder %s446, %s448
      %p455 = scmp.eq.s32.totalorder %s54, 3
      %p456 = por %p454, %p455
      %p457 = scmp.ne.s32.totalorder %s448, %s449
      %p458 = scmp.eq.s32.totalorder %s54, 0
      %p459 = por %p457, %p458
      %p460 = scmp.ne.s32.totalorder %s448, %s449
      %p461 = scmp.eq.s32.totalorder %s55, 3
      %p462 = por %p460, %p461
      %p464 = scmp.ne.s32.totalorder %s449, %s463
      %p465 = scmp.eq.s32.totalorder %s55, 0
      %p466 = por %p464, %p465
      %s468 = sadd.s32 %s467, 1
      %p471 = scmp.eq.s32.totalorder %s49, 3
      %p472 = scmp.ne.s32.totalorder %s467, %s469
      %p473 = scmp.eq.s32.totalorder %s49, 0
      %p474 = por %p472, %p473
      %p475 = scmp.ne.s32.totalorder %s467, %s469
      %p476 = scmp.eq.s32.totalorder %s54, 3
      %p477 = por %p475, %p476
      %p478 = scmp.ne.s32.totalorder %s469, %s470
      %p479 = scmp.eq.s32.totalorder %s54, 0
      %p480 = por %p478, %p479
      %p481 = scmp.ne.s32.totalorder %s469, %s470
      %p482 = scmp.eq.s32.totalorder %s55, 3
      %p483 = por %p481, %p482
      %p485 = scmp.ne.s32.totalorder %s470, %s484
      %p486 = scmp.eq.s32.totalorder %s55, 0
      %p487 = por %p485, %p486
      %s489 = sadd.s32 %s488, 1
      %p492 = scmp.eq.s32.totalorder %s49, 3
      %p493 = scmp.ne.s32.totalorder %s488, %s490
      %p494 = scmp.eq.s32.totalorder %s49, 0
      %p495 = por %p493, %p494
      %p496 = scmp.ne.s32.totalorder %s488, %s490
      %p497 = scmp.eq.s32.totalorder %s54, 3
      %p498 = por %p496, %p497
      %p499 = scmp.ne.s32.totalorder %s490, %s491
      %p500 = scmp.eq.s32.totalorder %s54, 0
      %p501 = por %p499, %p500
      %p502 = scmp.ne.s32.totalorder %s490, %s491
      %p503 = scmp.eq.s32.totalorder %s55, 3
      %p504 = por %p502, %p503
      %p506 = scmp.ne.s32.totalorder %s491, %s505
      %p507 = scmp.eq.s32.totalorder %s55, 0
      %p508 = por %p506, %p507
      %s510 = sadd.s32 %s509, 1
      %p513 = scmp.eq.s32.totalorder %s49, 3
      %p514 = scmp.ne.s32.totalorder %s509, %s511
      %p515 = scmp.eq.s32.totalorder %s49, 0
      %p516 = por %p514, %p515
      %p517 = scmp.ne.s32.totalorder %s509, %s511
      %p518 = scmp.eq.s32.totalorder %s54, 3
      %p519 = por %p517, %p518
      %p520 = scmp.ne.s32.totalorder %s511, %s512
      %p521 = scmp.eq.s32.totalorder %s54, 0
      %p522 = por %p520, %p521
      %p523 = scmp.ne.s32.totalorder %s511, %s512
      %p524 = scmp.eq.s32.totalorder %s55, 3
      %p525 = por %p523, %p524
      %p527 = scmp.ne.s32.totalorder %s512, %s526
      %p528 = scmp.eq.s32.totalorder %s55, 0
      %p529 = por %p527, %p528
      %s531 = sadd.s32 %s530, 1
      %p534 = scmp.eq.s32.totalorder %s49, 3
      %p535 = scmp.ne.s32.totalorder %s530, %s532
      %p536 = scmp.eq.s32.totalorder %s49, 0
      %p537 = por %p535, %p536
      %p538 = scmp.ne.s32.totalorder %s530, %s532
      %p539 = scmp.eq.s32.totalorder %s54, 3
      %p540 = por %p538, %p539
      %p541 = scmp.ne.s32.totalorder %s532, %s533
      %p542 = scmp.eq.s32.totalorder %s54, 0
      %p543 = por %p541, %p542
      %p544 = scmp.ne.s32.totalorder %s532, %s533
      %p545 = scmp.eq.s32.totalorder %s55, 3
      %p546 = por %p544, %p545
      %p548 = scmp.ne.s32.totalorder %s533, %s547
      %p549 = scmp.eq.s32.totalorder %s55, 0
      %p550 = por %p548, %p549
      %s552 = sadd.s32 %s551, 1
      %p555 = scmp.eq.s32.totalorder %s49, 3
      %p556 = scmp.ne.s32.totalorder %s551, %s553
      %p557 = scmp.eq.s32.totalorder %s49, 0
      %p558 = por %p556, %p557
      %p559 = scmp.ne.s32.totalorder %s551, %s553
      %p560 = scmp.eq.s32.totalorder %s54, 3
      %p561 = por %p559, %p560
      %p562 = scmp.ne.s32.totalorder %s553, %s554
      %p563 = scmp.eq.s32.totalorder %s54, 0
      %p564 = por %p562, %p563
      %p565 = scmp.ne.s32.totalorder %s553, %s554
      %p566 = scmp.eq.s32.totalorder %s55, 3
      %p567 = por %p565, %p566
      %p569 = scmp.ne.s32.totalorder %s554, %s568
      %p570 = scmp.eq.s32.totalorder %s55, 0
      %p571 = por %p569, %p570
      %s573 = sadd.s32 %s572, 1
      %p576 = scmp.eq.s32.totalorder %s49, 3
      %p577 = scmp.ne.s32.totalorder %s572, %s574
      %p578 = scmp.eq.s32.totalorder %s49, 0
      %p579 = por %p577, %p578
      %p580 = scmp.ne.s32.totalorder %s572, %s574
      %p581 = scmp.eq.s32.totalorder %s54, 3
      %p582 = por %p580, %p581
      %p583 = scmp.ne.s32.totalorder %s574, %s575
      %p584 = scmp.eq.s32.totalorder %s54, 0
      %p585 = por %p583, %p584
      %p586 = scmp.ne.s32.totalorder %s574, %s575
      %p587 = scmp.eq.s32.totalorder %s55, 3
      %p588 = por %p586, %p587
      %p590 = scmp.ne.s32.totalorder %s575, %s589
      %p591 = scmp.eq.s32.totalorder %s55, 0
      %p592 = por %p590, %p591
      %s594 = sadd.s32 %s593, 1
      %p597 = scmp.eq.s32.totalorder %s49, 3
      %p598 = scmp.ne.s32.totalorder %s593, %s595
      %p599 = scmp.eq.s32.totalorder %s49, 0
      %p600 = por %p598, %p599
      %p601 = scmp.ne.s32.totalorder %s593, %s595
      %p602 = scmp.eq.s32.totalorder %s54, 3
      %p603 = por %p601, %p602
      %p604 = scmp.ne.s32.totalorder %s595, %s596
      %p605 = scmp.eq.s32.totalorder %s54, 0
      %p606 = por %p604, %p605
      %p607 = scmp.ne.s32.totalorder %s595, %s596
      %p608 = scmp.eq.s32.totalorder %s55, 3
      %p609 = por %p607, %p608
      %p611 = scmp.ne.s32.totalorder %s596, %s610
      %p612 = scmp.eq.s32.totalorder %s55, 0
      %p613 = por %p611, %p612
      %s615 = sadd.s32 %s614, 1
      %p618 = scmp.eq.s32.totalorder %s49, 3
      %p619 = scmp.ne.s32.totalorder %s614, %s616
      %p620 = scmp.eq.s32.totalorder %s49, 0
      %p621 = por %p619, %p620
      %p622 = scmp.ne.s32.totalorder %s614, %s616
      %p623 = scmp.eq.s32.totalorder %s54, 3
      %p624 = por %p622, %p623
      %p625 = scmp.ne.s32.totalorder %s616, %s617
      %p626 = scmp.eq.s32.totalorder %s54, 0
      %p627 = por %p625, %p626
      %p628 = scmp.ne.s32.totalorder %s616, %s617
      %p629 = scmp.eq.s32.totalorder %s55, 3
      %p630 = por %p628, %p629
      %p632 = scmp.ne.s32.totalorder %s617, %s631
      %p633 = scmp.eq.s32.totalorder %s55, 0
      %p634 = por %p632, %p633
      %s635 = ssub.s32 %s56, %s68
      %p636 = scmp.eq.s32.totalorder %s635, 0
      %s638 = sadd.s32 %s637, 1
      %s639 = scalar_select %p636, %s637, %s638
      %p642 = pneg %p636
      %p643 = scmp.eq.s32.totalorder %s49, 3
      %p644 = por %p642, %p643
      %p645 = scmp.ne.s32.totalorder %s637, %s640
      %p646 = scmp.eq.s32.totalorder %s49, 0
      %p647 = por %p645, %p646
      %p648 = scmp.ne.s32.totalorder %s637, %s640
      %p649 = scmp.eq.s32.totalorder %s54, 3
      %p650 = por %p648, %p649
      %p651 = scmp.ne.s32.totalorder %s640, %s641
      %p652 = scmp.eq.s32.totalorder %s54, 0
      %p653 = por %p651, %p652
      %p654 = scmp.ne.s32.totalorder %s640, %s641
      %p655 = scmp.eq.s32.totalorder %s55, 3
      %p656 = por %p654, %p655
      %p658 = scmp.ne.s32.totalorder %s641, %s657
      %p659 = scmp.eq.s32.totalorder %s55, 0
      %p660 = por %p658, %p659
      %s661 = ssub.s32 %s56, %s68
      %p662 = scmp.eq.s32.totalorder %s661, 0
      %s664 = sadd.s32 %s663, 1
      %s665 = scalar_select %p662, %s663, %s664
      %p668 = pneg %p662
      %p669 = scmp.eq.s32.totalorder %s49, 3
      %p670 = por %p668, %p669
      %p671 = scmp.ne.s32.totalorder %s663, %s666
      %p672 = scmp.eq.s32.totalorder %s49, 0
      %p673 = por %p671, %p672
      %p674 = scmp.ne.s32.totalorder %s663, %s666
      %p675 = scmp.eq.s32.totalorder %s54, 3
      %p676 = por %p674, %p675
      %p677 = scmp.ne.s32.totalorder %s666, %s667
      %p678 = scmp.eq.s32.totalorder %s54, 0
      %p679 = por %p677, %p678
      %p680 = scmp.ne.s32.totalorder %s666, %s667
      %p681 = scmp.eq.s32.totalorder %s55, 3
      %p682 = por %p680, %p681
      %p684 = scmp.ne.s32.totalorder %s667, %s683
      %p685 = scmp.eq.s32.totalorder %s55, 0
      %p686 = por %p684, %p685
      %p687 = scmp.le.s32.totalorder 1, %s49
      %p688 = scmp.lt.s32.totalorder %s49, 5
      %p689 = pnand %p687, %p688
      %p690 = pneg %p689
      // Predicated region
      $region9: #{decoder_forward.1} parent=5 // pred_check
        _
      $region10: #{decoder_forward.1} parent=5 // pred_check_branch
        %692 = sbr.rel (%p689) target = $region12
      $region11: #{decoder_forward.1} parent=5 // pred_region
        %s693 = ssub.s32 %s49, 1
        // Predicated region
        $region13: #{decoder_forward.1} parent=11 // pred_check
          %p694 = pneg %p160
        $region14: #{decoder_forward.1} parent=11 // pred_check_branch
          %696 = sbr.rel (%p694) target = $region16
        $region15: #{decoder_forward.1} parent=11 // pred_region
          _
        $region16: #{decoder_forward.1} parent=11 // pred_fallthru
          _
        // Predicated region
        $region17: #{decoder_forward.1} parent=11 // pred_check
          %p697 = pneg %p207
        $region18: #{decoder_forward.1} parent=11 // pred_check_branch
          %699 = sbr.rel (%p697) target = $region20
        $region19: #{decoder_forward.1} parent=11 // pred_region
          _
        $region20: #{decoder_forward.1} parent=11 // pred_fallthru
          _
        // Predicated region
        $region21: #{decoder_forward.1} parent=11 // pred_check
          %p700 = pneg %p228
        $region22: #{decoder_forward.1} parent=11 // pred_check_branch
          %702 = sbr.rel (%p700) target = $region24
        $region23: #{decoder_forward.1} parent=11 // pred_region
          %s704 = ssub.s32 16, 16
          %705 = vsyncadd [#allocation6], %s704
          %s707 = sshll.u32 [#allocation5], 4
          %s708 = int_to_ptr.vmem [resolvable:$true] %s707
          %710 = dma.hbm_to_vmem [thread:$0]  %s6, 16, %s708, [#allocation6]
        $region24: #{decoder_forward.1} parent=11 // pred_fallthru
          _
        // Predicated region
        $region25: #{decoder_forward.1} parent=11 // pred_check
          %p711 = pneg %p249
        $region26: #{decoder_forward.1} parent=11 // pred_check_branch
          %713 = sbr.rel (%p711) target = $region28
        $region27: #{decoder_forward.1} parent=11 // pred_region
          _
        $region28: #{decoder_forward.1} parent=11 // pred_fallthru
          _
        // Predicated region
        $region29: #{decoder_forward.1} parent=11 // pred_check
          %p714 = pneg %p270
        $region30: #{decoder_forward.1} parent=11 // pred_check_branch
          %716 = sbr.rel (%p714) target = $region32
        $region31: #{decoder_forward.1} parent=11 // pred_region
          %s718 = ssub.s32 16, 16
          %719 = vsyncadd [#allocation9], %s718
          %s721 = sshll.u32 [#allocation8], 4
          %s722 = int_to_ptr.vmem [resolvable:$true] %s721
          %724 = dma.hbm_to_vmem [thread:$0]  %s8, 16, %s722, [#allocation9]
        $region32: #{decoder_forward.1} parent=11 // pred_fallthru
          _
        // Predicated region
        $region33: #{decoder_forward.1} parent=11 // pred_check
          %p725 = pneg %p291
        $region34: #{decoder_forward.1} parent=11 // pred_check_branch
          %727 = sbr.rel (%p725) target = $region36
        $region35: #{decoder_forward.1} parent=11 // pred_region
          %s729 = ssub.s32 16, 16
          %730 = vsyncadd [#allocation9], %s729
          %s732 = sshll.u32 [#allocation10], 4
          %s733 = int_to_ptr.vmem [resolvable:$true] %s732
          %735 = dma.hbm_to_vmem [thread:$0]  %s9, 16, %s733, [#allocation9]
        $region36: #{decoder_forward.1} parent=11 // pred_fallthru
          _
        // Predicated region
        $region37: #{decoder_forward.1} parent=11 // pred_check
          %p736 = pneg %p312
        $region38: #{decoder_forward.1} parent=11 // pred_check_branch
          %738 = sbr.rel (%p736) target = $region40
        $region39: #{decoder_forward.1} parent=11 // pred_region
          %s740 = ssub.s32 16, 16
          %741 = vsyncadd [#allocation12], %s740
          %s743 = sshll.u32 [#allocation11], 4
          %s744 = int_to_ptr.vmem [resolvable:$true] %s743
          %746 = dma.hbm_to_vmem [thread:$0]  %s10, 16, %s744, [#allocation12]
        $region40: #{decoder_forward.1} parent=11 // pred_fallthru
          _
        // Predicated region
        $region41: #{decoder_forward.1} parent=11 // pred_check
          %p747 = pneg %p333
        $region42: #{decoder_forward.1} parent=11 // pred_check_branch
          %749 = sbr.rel (%p747) target = $region44
        $region43: #{decoder_forward.1} parent=11 // pred_region
          _
        $region44: #{decoder_forward.1} parent=11 // pred_fallthru
          _
        // Predicated region
        $region45: #{decoder_forward.1} parent=11 // pred_check
          %p750 = pneg %p354
        $region46: #{decoder_forward.1} parent=11 // pred_check_branch
          %752 = sbr.rel (%p750) target = $region48
        $region47: #{decoder_forward.1} parent=11 // pred_region
          %s754 = ssub.s32 16, 16
          %755 = vsyncadd [#allocation12], %s754
          %s757 = sshll.u32 [#allocation13], 4
          %s758 = int_to_ptr.vmem [resolvable:$true] %s757
          %760 = dma.hbm_to_vmem [thread:$0]  %s12, 16, %s758, [#allocation12]
        $region48: #{decoder_forward.1} parent=11 // pred_fallthru
          _
        // Predicated region
        $region49: #{decoder_forward.1} parent=11 // pred_check
          %p761 = pneg %p375
        $region50: #{decoder_forward.1} parent=11 // pred_check_branch
          %763 = sbr.rel (%p761) target = $region52
        $region51: #{decoder_forward.1} parent=11 // pred_region
          _
        $region52: #{decoder_forward.1} parent=11 // pred_fallthru
          _
        // Predicated region
        $region53: #{decoder_forward.1} parent=11 // pred_check
          %p764 = pneg %p396
        $region54: #{decoder_forward.1} parent=11 // pred_check_branch
          %766 = sbr.rel (%p764) target = $region56
        $region55: #{decoder_forward.1} parent=11 // pred_region
          %s768 = ssub.s32 256, 256
          %769 = vsyncadd [#allocation15], %s768
          %s770 = sshll.u32 [#allocation14], 4
          %s771 = int_to_ptr.vmem [resolvable:$true] %s770
          %776 = dma.hbm_to_vmem [thread:$0]  %s14, 256, %s771, [#allocation15], 64, 64, 4
        $region56: #{decoder_forward.1} parent=11 // pred_fallthru
          _
        // Predicated region
        $region57: #{decoder_forward.1} parent=11 // pred_check
          %p777 = pneg %p417
        $region58: #{decoder_forward.1} parent=11 // pred_check_branch
          %779 = sbr.rel (%p777) target = $region60
        $region59: #{decoder_forward.1} parent=11 // pred_region
          %s781 = ssub.s32 16, 16
          %782 = vsyncadd [#allocation15], %s781
          %s784 = sshll.u32 [#allocation16], 4
          %s785 = int_to_ptr.vmem [resolvable:$true] %s784
          %787 = dma.hbm_to_vmem [thread:$0]  %s15, 16, %s785, [#allocation15]
        $region60: #{decoder_forward.1} parent=11 // pred_fallthru
          _
        // Predicated region
        $region61: #{decoder_forward.1} parent=11 // pred_check
          %p788 = pneg %p438
        $region62: #{decoder_forward.1} parent=11 // pred_check_branch
          %790 = sbr.rel (%p788) target = $region64
        $region63: #{decoder_forward.1} parent=11 // pred_region
          %s792 = ssub.s32 256, 256
          %793 = vsyncadd [#allocation18], %s792
          %s794 = sshll.u32 [#allocation17], 4
          %s795 = int_to_ptr.vmem [resolvable:$true] %s794
          %800 = dma.hbm_to_vmem [thread:$0]  %s16, 256, %s795, [#allocation18], 64, 64, 4
        $region64: #{decoder_forward.1} parent=11 // pred_fallthru
          _
        // Predicated region
        $region65: #{decoder_forward.1} parent=11 // pred_check
          %p801 = pneg %p459
        $region66: #{decoder_forward.1} parent=11 // pred_check_branch
          %803 = sbr.rel (%p801) target = $region68
        $region67: #{decoder_forward.1} parent=11 // pred_region
          %s805 = ssub.s32 16, 16
          %806 = vsyncadd [#allocation18], %s805
          %s808 = sshll.u32 [#allocation19], 4
          %s809 = int_to_ptr.vmem [resolvable:$true] %s808
          %811 = dma.hbm_to_vmem [thread:$0]  %s17, 16, %s809, [#allocation18]
        $region68: #{decoder_forward.1} parent=11 // pred_fallthru
          _
        // Predicated region
        $region69: #{decoder_forward.1} parent=11 // pred_check
          %p812 = pneg %p480
        $region70: #{decoder_forward.1} parent=11 // pred_check_branch
          %814 = sbr.rel (%p812) target = $region72
        $region71: #{decoder_forward.1} parent=11 // pred_region
          %s816 = ssub.s32 16, 16
          %817 = vsyncadd [#allocation21], %s816
          %s819 = sshll.u32 [#allocation20], 4
          %s820 = int_to_ptr.vmem [resolvable:$true] %s819
          %822 = dma.hbm_to_vmem [thread:$0]  %s18, 16, %s820, [#allocation21]
        $region72: #{decoder_forward.1} parent=11 // pred_fallthru
          _
        // Predicated region
        $region73: #{decoder_forward.1} parent=11 // pred_check
          %p823 = pneg %p501
        $region74: #{decoder_forward.1} parent=11 // pred_check_branch
          %825 = sbr.rel (%p823) target = $region76
        $region75: #{decoder_forward.1} parent=11 // pred_region
          %s827 = ssub.s32 16, 16
          %828 = vsyncadd [#allocation21], %s827
          %s830 = sshll.u32 [#allocation22], 4
          %s831 = int_to_ptr.vmem [resolvable:$true] %s830
          %833 = dma.hbm_to_vmem [thread:$0]  %s19, 16, %s831, [#allocation21]
        $region76: #{decoder_forward.1} parent=11 // pred_fallthru
          _
        // Predicated region
        $region77: #{decoder_forward.1} parent=11 // pred_check
          %p834 = pneg %p522
        $region78: #{decoder_forward.1} parent=11 // pred_check_branch
          %836 = sbr.rel (%p834) target = $region80
        $region79: #{decoder_forward.1} parent=11 // pred_region
          %s838 = ssub.s32 256, 256
          %839 = vsyncadd [#allocation24], %s838
          %s840 = sshll.u32 [#allocation23], 4
          %s841 = int_to_ptr.vmem [resolvable:$true] %s840
          %846 = dma.hbm_to_vmem [thread:$0]  %s20, 256, %s841, [#allocation24], 64, 64, 4
        $region80: #{decoder_forward.1} parent=11 // pred_fallthru
          _
        // Predicated region
        $region81: #{decoder_forward.1} parent=11 // pred_check
          %p847 = pneg %p543
        $region82: #{decoder_forward.1} parent=11 // pred_check_branch
          %849 = sbr.rel (%p847) target = $region84
        $region83: #{decoder_forward.1} parent=11 // pred_region
          %s851 = ssub.s32 16, 16
          %852 = vsyncadd [#allocation24], %s851
          %s854 = sshll.u32 [#allocation25], 4
          %s855 = int_to_ptr.vmem [resolvable:$true] %s854
          %857 = dma.hbm_to_vmem [thread:$0]  %s21, 16, %s855, [#allocation24]
        $region84: #{decoder_forward.1} parent=11 // pred_fallthru
          _
        // Predicated region
        $region85: #{decoder_forward.1} parent=11 // pred_check
          %p858 = pneg %p564
        $region86: #{decoder_forward.1} parent=11 // pred_check_branch
          %860 = sbr.rel (%p858) target = $region88
        $region87: #{decoder_forward.1} parent=11 // pred_region
          _
        $region88: #{decoder_forward.1} parent=11 // pred_fallthru
          _
        // Predicated region
        $region89: #{decoder_forward.1} parent=11 // pred_check
          %p861 = pneg %p585
        $region90: #{decoder_forward.1} parent=11 // pred_check_branch
          %863 = sbr.rel (%p861) target = $region92
        $region91: #{decoder_forward.1} parent=11 // pred_region
          %s865 = ssub.s32 16, 16
          %866 = vsyncadd [#allocation27], %s865
          %s868 = sshll.u32 [#allocation26], 4
          %s869 = int_to_ptr.vmem [resolvable:$true] %s868
          %871 = dma.hbm_to_vmem [thread:$0]  %s23, 16, %s869, [#allocation27]
        $region92: #{decoder_forward.1} parent=11 // pred_fallthru
          _
        // Predicated region
        $region93: #{decoder_forward.1} parent=11 // pred_check
          %p872 = pneg %p606
        $region94: #{decoder_forward.1} parent=11 // pred_check_branch
          %874 = sbr.rel (%p872) target = $region96
        $region95: #{decoder_forward.1} parent=11 // pred_region
          %s876 = ssub.s32 16, 16
          %877 = vsyncadd [#allocation27], %s876
          %s879 = sshll.u32 [#allocation28], 4
          %s880 = int_to_ptr.vmem [resolvable:$true] %s879
          %882 = dma.hbm_to_vmem [thread:$0]  %s24, 16, %s880, [#allocation27]
        $region96: #{decoder_forward.1} parent=11 // pred_fallthru
          _
        // Predicated region
        $region97: #{decoder_forward.1} parent=11 // pred_check
          %p883 = pneg %p627
        $region98: #{decoder_forward.1} parent=11 // pred_check_branch
          %885 = sbr.rel (%p883) target = $region100
        $region99: #{decoder_forward.1} parent=11 // pred_region
          %s887 = ssub.s32 16, 16
          %888 = vsyncadd [#allocation30], %s887
          %s890 = sshll.u32 [#allocation29], 4
          %s891 = int_to_ptr.vmem [resolvable:$true] %s890
          %893 = dma.hbm_to_vmem [thread:$0]  %s25, 16, %s891, [#allocation30]
        $region100: #{decoder_forward.1} parent=11 // pred_fallthru
          _
      $region12: #{decoder_forward.1} parent=5 // pred_fallthru
        _
      %p894 = scmp.lt.s32.totalorder %s49, 4
      // Predicated region
      $region101: #{decoder_forward.1} parent=5 // pred_check
        %p895 = pneg %p894
      $region102: #{decoder_forward.1} parent=5 // pred_check_branch
        %897 = sbr.rel (%p895) target = $region104
      $region103: #{decoder_forward.1} parent=5 // pred_region
        // Predicated region
        $region105: #{decoder_forward.1} parent=103 // pred_check
          %p898 = pneg %p81
        $region106: #{decoder_forward.1} parent=103 // pred_check_branch
          %900 = sbr.rel (%p898) target = $region108
        $region107: #{decoder_forward.1} parent=103 // pred_region
          %p901 = scmp.lt.s32.totalorder %s56, 1
          %s902 = scalar_select %p901, %s56, 1
          %s903 = smul.addr %s902, 8
          %s904 = scalar_lea.vmem %s0, %s903
        $region108: #{decoder_forward.1} parent=103 // pred_fallthru
          _
        // Predicated region
        $region109: #{decoder_forward.1} parent=103 // pred_check
          %p905 = pneg %p107
        $region110: #{decoder_forward.1} parent=103 // pred_check_branch
          %907 = sbr.rel (%p905) target = $region112
        $region111: #{decoder_forward.1} parent=103 // pred_region
          %p908 = scmp.lt.s32.totalorder %s56, 1
          %s909 = scalar_select %p908, %s56, 1
          %s910 = smul.addr %s909, 8
          %s911 = scalar_lea.vmem %s1, %s910
        $region112: #{decoder_forward.1} parent=103 // pred_fallthru
          _
        // Predicated region
        $region113: #{decoder_forward.1} parent=103 // pred_check
          %p912 = pneg %p133
        $region114: #{decoder_forward.1} parent=103 // pred_check_branch
          %914 = sbr.rel (%p912) target = $region116
        $region115: #{decoder_forward.1} parent=103 // pred_region
          %p915 = scmp.lt.s32.totalorder %s56, 1
          %s916 = scalar_select %p915, %s56, 1
          %s917 = scalar_lea.vmem %s2, %s916
        $region116: #{decoder_forward.1} parent=103 // pred_fallthru
          _
        // Predicated region
        $region117: #{decoder_forward.1} parent=103 // pred_check
          %p918 = pneg %p180
        $region118: #{decoder_forward.1} parent=103 // pred_check_branch
          %920 = sbr.rel (%p918) target = $region120
        $region119: #{decoder_forward.1} parent=103 // pred_region
          %p921 = scmp.lt.s32.totalorder %s57, 1
          %s922 = scalar_select %p921, %s57, 1
          %s923 = scalar_lea.vmem %s4, %s922
        $region120: #{decoder_forward.1} parent=103 // pred_fallthru
          _
      $region104: #{decoder_forward.1} parent=5 // pred_fallthru
        _
      %p924 = scmp.le.s32.totalorder 1, %s49
      %p925 = scmp.lt.s32.totalorder %s49, 5
      %p926 = pnand %p924, %p925
      %p927 = pneg %p926
      // Predicated region
      $region121: #{decoder_forward.1} parent=5 // pred_check
        _
      $region122: #{decoder_forward.1} parent=5 // pred_check_branch
        %929 = sbr.rel (%p926) target = $region124
      $region123: #{decoder_forward.1} parent=5 // pred_region
        %s930 = ssub.s32 %s49, 1
        // Predicated region
        $region125: #{decoder_forward.1} parent=123 // pred_check
          %p931 = pneg %p228
        $region126: #{decoder_forward.1} parent=123 // pred_check_branch
          %933 = sbr.rel (%p931) target = $region128
        $region127: #{decoder_forward.1} parent=123 // pred_region
          %934 = dma.done [#allocation6], 16
        $region128: #{decoder_forward.1} parent=123 // pred_fallthru
          _
        // Predicated region
        $region129: #{decoder_forward.1} parent=123 // pred_check
          %p935 = pneg %p270
        $region130: #{decoder_forward.1} parent=123 // pred_check_branch
          %937 = sbr.rel (%p935) target = $region132
        $region131: #{decoder_forward.1} parent=123 // pred_region
          %938 = dma.done [#allocation9], 16
        $region132: #{decoder_forward.1} parent=123 // pred_fallthru
          _
        // Predicated region
        $region133: #{decoder_forward.1} parent=123 // pred_check
          %p939 = pneg %p291
        $region134: #{decoder_forward.1} parent=123 // pred_check_branch
          %941 = sbr.rel (%p939) target = $region136
        $region135: #{decoder_forward.1} parent=123 // pred_region
          %942 = dma.done [#allocation9], 16
        $region136: #{decoder_forward.1} parent=123 // pred_fallthru
          _
        // Predicated region
        $region137: #{decoder_forward.1} parent=123 // pred_check
          %p943 = pneg %p312
        $region138: #{decoder_forward.1} parent=123 // pred_check_branch
          %945 = sbr.rel (%p943) target = $region140
        $region139: #{decoder_forward.1} parent=123 // pred_region
          %946 = dma.done [#allocation12], 16
        $region140: #{decoder_forward.1} parent=123 // pred_fallthru
          _
        // Predicated region
        $region141: #{decoder_forward.1} parent=123 // pred_check
          %p947 = pneg %p354
        $region142: #{decoder_forward.1} parent=123 // pred_check_branch
          %949 = sbr.rel (%p947) target = $region144
        $region143: #{decoder_forward.1} parent=123 // pred_region
          %950 = dma.done [#allocation12], 16
        $region144: #{decoder_forward.1} parent=123 // pred_fallthru
          _
        // Predicated region
        $region145: #{decoder_forward.1} parent=123 // pred_check
          %p951 = pneg %p396
        $region146: #{decoder_forward.1} parent=123 // pred_check_branch
          %953 = sbr.rel (%p951) target = $region148
        $region147: #{decoder_forward.1} parent=123 // pred_region
          %954 = dma.done [#allocation15], 256
        $region148: #{decoder_forward.1} parent=123 // pred_fallthru
          _
        // Predicated region
        $region149: #{decoder_forward.1} parent=123 // pred_check
          %p955 = pneg %p417
        $region150: #{decoder_forward.1} parent=123 // pred_check_branch
          %957 = sbr.rel (%p955) target = $region152
        $region151: #{decoder_forward.1} parent=123 // pred_region
          %958 = dma.done [#allocation15], 16
        $region152: #{decoder_forward.1} parent=123 // pred_fallthru
          _
        // Predicated region
        $region153: #{decoder_forward.1} parent=123 // pred_check
          %p959 = pneg %p438
        $region154: #{decoder_forward.1} parent=123 // pred_check_branch
          %961 = sbr.rel (%p959) target = $region156
        $region155: #{decoder_forward.1} parent=123 // pred_region
          %962 = dma.done [#allocation18], 256
        $region156: #{decoder_forward.1} parent=123 // pred_fallthru
          _
        // Predicated region
        $region157: #{decoder_forward.1} parent=123 // pred_check
          %p963 = pneg %p459
        $region158: #{decoder_forward.1} parent=123 // pred_check_branch
          %965 = sbr.rel (%p963) target = $region160
        $region159: #{decoder_forward.1} parent=123 // pred_region
          %966 = dma.done [#allocation18], 16
        $region160: #{decoder_forward.1} parent=123 // pred_fallthru
          _
        // Predicated region
        $region161: #{decoder_forward.1} parent=123 // pred_check
          %p967 = pneg %p480
        $region162: #{decoder_forward.1} parent=123 // pred_check_branch
          %969 = sbr.rel (%p967) target = $region164
        $region163: #{decoder_forward.1} parent=123 // pred_region
          %970 = dma.done [#allocation21], 16
        $region164: #{decoder_forward.1} parent=123 // pred_fallthru
          _
        // Predicated region
        $region165: #{decoder_forward.1} parent=123 // pred_check
          %p971 = pneg %p501
        $region166: #{decoder_forward.1} parent=123 // pred_check_branch
          %973 = sbr.rel (%p971) target = $region168
        $region167: #{decoder_forward.1} parent=123 // pred_region
          %974 = dma.done [#allocation21], 16
        $region168: #{decoder_forward.1} parent=123 // pred_fallthru
          _
        // Predicated region
        $region169: #{decoder_forward.1} parent=123 // pred_check
          %p975 = pneg %p522
        $region170: #{decoder_forward.1} parent=123 // pred_check_branch
          %977 = sbr.rel (%p975) target = $region172
        $region171: #{decoder_forward.1} parent=123 // pred_region
          %978 = dma.done [#allocation24], 256
        $region172: #{decoder_forward.1} parent=123 // pred_fallthru
          _
        // Predicated region
        $region173: #{decoder_forward.1} parent=123 // pred_check
          %p979 = pneg %p543
        $region174: #{decoder_forward.1} parent=123 // pred_check_branch
          %981 = sbr.rel (%p979) target = $region176
        $region175: #{decoder_forward.1} parent=123 // pred_region
          %982 = dma.done [#allocation24], 16
        $region176: #{decoder_forward.1} parent=123 // pred_fallthru
          _
        // Predicated region
        $region177: #{decoder_forward.1} parent=123 // pred_check
          %p983 = pneg %p585
        $region178: #{decoder_forward.1} parent=123 // pred_check_branch
          %985 = sbr.rel (%p983) target = $region180
        $region179: #{decoder_forward.1} parent=123 // pred_region
          %986 = dma.done [#allocation27], 16
        $region180: #{decoder_forward.1} parent=123 // pred_fallthru
          _
        // Predicated region
        $region181: #{decoder_forward.1} parent=123 // pred_check
          %p987 = pneg %p606
        $region182: #{decoder_forward.1} parent=123 // pred_check_branch
          %989 = sbr.rel (%p987) target = $region184
        $region183: #{decoder_forward.1} parent=123 // pred_region
          %990 = dma.done [#allocation27], 16
        $region184: #{decoder_forward.1} parent=123 // pred_fallthru
          _
        // Predicated region
        $region185: #{decoder_forward.1} parent=123 // pred_check
          %p991 = pneg %p627
        $region186: #{decoder_forward.1} parent=123 // pred_check_branch
          %993 = sbr.rel (%p991) target = $region188
        $region187: #{decoder_forward.1} parent=123 // pred_region
          %994 = dma.done [#allocation30], 16
        $region188: #{decoder_forward.1} parent=123 // pred_fallthru
          _
        %p995 = scmp.lt.s32.totalorder %s58, 1
        %s996 = scalar_select %p995, %s58, 1
        %s997 = smul.addr %s996, 8
        %s998 = scalar_lea.vmem %s0, %s997
        %p999 = pneg %p87
        %p1000 = pneg %p84
        %p1001 = scmp.lt.s32.totalorder %s58, 1
        %s1002 = scalar_select %p1001, %s58, 1
        %s1003 = smul.addr %s1002, 8
        %s1004 = scalar_lea.vmem %s1, %s1003
        %p1005 = pneg %p113
        %p1006 = pneg %p110
        %p1007 = scmp.lt.s32.totalorder %s58, 1
        %s1008 = scalar_select %p1007, %s58, 1
        %s1009 = scalar_lea.vmem %s2, %s1008
        %p1010 = pneg %p139
        %p1011 = pneg %p136
        %p1012 = pneg %p160
        %p1013 = pneg %p157
        %p1014 = scmp.lt.s32.totalorder %s59, 1
        %s1015 = scalar_select %p1014, %s59, 1
        %s1016 = scalar_lea.vmem %s4, %s1015
        %p1017 = pneg %p186
        %p1018 = pneg %p183
        %p1019 = pneg %p207
        %p1020 = pneg %p204
        %p1021 = pneg %p228
        %p1022 = pneg %p225
        %p1023 = pneg %p249
        %p1024 = pneg %p246
        %p1025 = pneg %p270
        %p1026 = pneg %p267
        %p1027 = pneg %p291
        %p1028 = pneg %p288
        %p1029 = pneg %p312
        %p1030 = pneg %p309
        %p1031 = pneg %p333
        %p1032 = pneg %p330
        %p1033 = pneg %p354
        %p1034 = pneg %p351
        %p1035 = pneg %p375
        %p1036 = pneg %p372
        %p1037 = pneg %p396
        %p1038 = pneg %p393
        %p1039 = pneg %p417
        %p1040 = pneg %p414
        %p1041 = pneg %p438
        %p1042 = pneg %p435
        %p1043 = pneg %p459
        %p1044 = pneg %p456
        %p1045 = pneg %p480
        %p1046 = pneg %p477
        %p1047 = pneg %p501
        %p1048 = pneg %p498
        %p1049 = pneg %p522
        %p1050 = pneg %p519
        %p1051 = pneg %p543
        %p1052 = pneg %p540
        %p1053 = pneg %p564
        %p1054 = pneg %p561
        %p1055 = pneg %p585
        %p1056 = pneg %p582
        %p1057 = pneg %p606
        %p1058 = pneg %p603
        %p1059 = pneg %p627
        %p1060 = pneg %p624
        %p1061 = pneg %p653
        %p1062 = pneg %p650
        %s1063 = sand.u32 %s640, 1
        %s1064 = scalar_lea.sflag [#allocation7], %s1063
        %s1065 = sand.u32 %s640, 1
        %s1066 = smul.addr %s1065, 8
        %s1067 = scalar_lea.vmem [#allocation31], %s1066
        %p1068 = pneg %p679
        %p1069 = pneg %p676
        %s1070 = sand.u32 %s666, 1
        %s1071 = scalar_lea.sflag [#allocation33], %s1070
        %s1072 = sand.u32 %s666, 1
        %s1073 = smul.addr %s1072, 32
        %s1074 = scalar_lea.vmem [#allocation32], %s1073
        %p1075 = scmp.lt.s32.totalorder %s58, 1
        %s1076 = scalar_select %p1075, %s58, 1
        %s1077 = smul.addr %s1076, 8
        %s1078 = scalar_lea.vmem %s0, %s1077
        %p1079 = scmp.lt.s32.totalorder %s58, 1
        %s1080 = scalar_select %p1079, %s58, 1
        %s1081 = smul.addr %s1080, 8
        %s1082 = scalar_lea.vmem %s1, %s1081
        %p1083 = scmp.lt.s32.totalorder %s58, 1
        %s1084 = scalar_select %p1083, %s58, 1
        %s1085 = scalar_lea.vmem %s2, %s1084
        %p1086 = scmp.lt.s32.totalorder %s59, 1
        %s1087 = scalar_select %p1086, %s59, 1
        %s1088 = scalar_lea.vmem %s4, %s1087
        %p1090 = scmp.eq.s32.totalorder %s59, 1
        %p1091 = scmp.eq.s32.totalorder %s59, 0
        // Predicated region
        $region189: #{decoder_forward.1} parent=123 // pred_check
          %p1092 = pneg %p1091
        $region190: #{decoder_forward.1} parent=123 // pred_check_branch
          %1094 = sbr.rel (%p1092) target = $region192
        $region191: #{decoder_forward.1} parent=123 // pred_region
          %v1095 = vld [vmem:[%s1078] sm:$0xff]
          %vm1096 = vcmask 261120
          %1097 = vst.msk [vmem:[#allocation2] sm:$0xff] %vm1096, %v1095
          %v1098 = vld [vmem:[%s1082] sm:$0xff]
          %v1099 = vpack.c.bf16 %v1098, %v1098
          %v1100 = vld [vmem:[%s13] sm:$0xf]
          %v1101 = vld [vmem:[%s13 + $0x4] sm:$0xf]
          %v1102 = vld [vmem:[%s13 + $0x8] sm:$0xf]
          %v1103 = vld [vmem:[%s13 + $0xc] sm:$0xf]
          %v1108 = vunpack.c.l.b16 %v1100
          %v1109 = vunpack.c.l.b16 %v1101
          %v1110 = vunpack.c.l.b16 %v1102
          %v1111 = vunpack.c.l.b16 %v1103
          %v1112 = vpack.c.b16 %v1109, %v1108
          %v1113 = vpack.c.b16 %v1111, %v1110
          %v1117 = vsel %vm1096, %v1099, 0
          %1119 = vmatprep.subr.bf16.mxu0 0
          %1120 = vmatpush1.bf16.msra.mxu0 0
          %1121 = vmatprep.subr.bf16.mxu0 0
          %1122 = vmatpush1.bf16.msra.mxu0 0
          %1123 = vmatprep.subr.bf16.mxu0 0
          %1124 = vmatpush1.bf16.msra.mxu0 0
          %1125 = vmatprep.subr.bf16.mxu0 0
          %1126 = vmatpush1.bf16.msra.mxu0 0
          %1127 = vmatprep.subr.bf16.mxu0 0
          %1128 = vmatpush1.bf16.msra.mxu0 0
          %1129 = vmatprep.subr.bf16.mxu0 0
          %1130 = vmatpush1.bf16.msra.mxu0 0
          %1131 = vmatprep.subr.bf16.mxu0 0
          %1132 = vmatpush1.bf16.msra.mxu0 %v1113
          %1133 = vmatprep.subr.bf16.mxu0 0
          %1134 = vmatpush1.bf16.msra.mxu0 %v1112
          %1135 = vmatprep.subr.bf16.mxu0 0
          %1136 = vmatpush2.bf16.msra.mxu0 0
          %1137 = vmatprep.subr.bf16.mxu0 0
          %1138 = vmatpush2.bf16.msra.mxu0 0
          %1139 = vmatprep.subr.bf16.mxu0 0
          %1140 = vmatpush2.bf16.msra.mxu0 0
          %1141 = vmatprep.subr.bf16.mxu0 0
          %1142 = vmatpush2.bf16.msra.mxu0 0
          %1143 = vmatprep.subr.bf16.mxu0 0
          %1144 = vmatpush2.bf16.msra.mxu0 0
          %1145 = vmatprep.subr.bf16.mxu0 0
          %1146 = vmatpush2.bf16.msra.mxu0 0
          %1147 = vmatprep.subr.bf16.mxu0 0
          %1148 = vmatpush2.bf16.msra.mxu0 0
          %1149 = vmatprep.subr.bf16.mxu0 0
          %1150 = vmatpush2.bf16.msra.mxu0 0
          %1151 = vmatprep.mubr.bf16.mxu0 0
          %1152 = vmatmul.mubr.bf16.gmra.mxu0 %v1117
          %v1153 = vpop.f32.mrf.mxu0
          %v1154 = vadd.f32 0.0, %v1153
          %v1155 = vpop.f32.mrf.mxu0
          %v1156 = vpop.f32.mrf.mxu0
          %v1157 = vpop.f32.mrf.mxu0
          %1158 = vdwg.mxu0
          %v1159 = vld [vmem:[#allocation14] sm:$0xf]
          %v1160 = vld [vmem:[#allocation14 + $0x4] sm:$0xf]
          %v1161 = vld [vmem:[#allocation14 + $0x8] sm:$0xf]
          %v1162 = vld [vmem:[#allocation14 + $0xc] sm:$0xf]
          %v1163 = vld [vmem:[#allocation16] sm:$0x1]
          %v1165 = vlaneseq
          %v1166 = vshrl.u32 %v1165, 7
          %v1167 = vsub.s32 0, %v1166
          %v1168 = vrot.slane %v1163, %v1167
          %v1174 = vunpack.c.l.b16 %v1159
          %v1175 = vunpack.c.l.b16 %v1160
          %v1176 = vunpack.c.l.b16 %v1161
          %v1177 = vunpack.c.l.b16 %v1162
          %v1178 = vpack.c.b16 %v1175, %v1174
          %v1179 = vpack.c.b16 %v1177, %v1176
          %1182 = vmatprep.subr.bf16.mxu0 0
          %1183 = vmatpush1.bf16.msra.mxu0 0
          %1184 = vmatprep.subr.bf16.mxu0 0
          %1185 = vmatpush1.bf16.msra.mxu0 0
          %1186 = vmatprep.subr.bf16.mxu0 0
          %1187 = vmatpush1.bf16.msra.mxu0 0
          %1188 = vmatprep.subr.bf16.mxu0 0
          %1189 = vmatpush1.bf16.msra.mxu0 0
          %1190 = vmatprep.subr.bf16.mxu0 0
          %1191 = vmatpush1.bf16.msra.mxu0 0
          %1192 = vmatprep.subr.bf16.mxu0 0
          %1193 = vmatpush1.bf16.msra.mxu0 0
          %1194 = vmatprep.subr.bf16.mxu0 0
          %1195 = vmatpush1.bf16.msra.mxu0 %v1179
          %1196 = vmatprep.subr.bf16.mxu0 0
          %1197 = vmatpush1.bf16.msra.mxu0 %v1178
          %1198 = vmatprep.subr.bf16.mxu0 0
          %1199 = vmatpush2.bf16.msra.mxu0 0
          %1200 = vmatprep.subr.bf16.mxu0 0
          %1201 = vmatpush2.bf16.msra.mxu0 0
          %1202 = vmatprep.subr.bf16.mxu0 0
          %1203 = vmatpush2.bf16.msra.mxu0 0
          %1204 = vmatprep.subr.bf16.mxu0 0
          %1205 = vmatpush2.bf16.msra.mxu0 0
          %1206 = vmatprep.subr.bf16.mxu0 0
          %1207 = vmatpush2.bf16.msra.mxu0 0
          %1208 = vmatprep.subr.bf16.mxu0 0
          %1209 = vmatpush2.bf16.msra.mxu0 0
          %1210 = vmatprep.subr.bf16.mxu0 0
          %1211 = vmatpush2.bf16.msra.mxu0 0
          %1212 = vmatprep.subr.bf16.mxu0 0
          %1213 = vmatpush2.bf16.msra.mxu0 0
          %1214 = vmatprep.mubr.bf16.mxu0 0
          %1215 = vmatmul.mubr.bf16.gmra.mxu0 %v1117
          %v1216 = vpop.f32.mrf.mxu0
          %v1217 = vadd.f32 %v1168, %v1216
          %v1218 = vpop.f32.mrf.mxu0
          %v1219 = vpop.f32.mrf.mxu0
          %v1220 = vpop.f32.mrf.mxu0
          %1221 = vdwg.mxu0
          %v1222 = vpack.c.bf16 %v1154, %v1154
          %vm1223 = vcmask 257024
          %1224 = vst.msk [vmem:[#allocation3] sm:$0xf] %vm1223, %v1222
          %v1225 = vpack.c.bf16 %v1217, %v1217
          %1226 = vst.msk [vmem:[#allocation4] sm:$0xf] %vm1223, %v1225
        $region192: #{decoder_forward.1} parent=123 // pred_fallthru
          _
        %v1227 = vld [vmem:[#allocation2] sm:$0xff]
        %v1228 = vld [vmem:[%s1088] sm:$0x1]
        %v1230 = vlaneseq
        %v1231 = vshrl.u32 %v1230, 7
        %v1232 = vsub.s32 0, %v1231
        %v1233 = vrot.slane %v1228, %v1232
        %v1235 = vadd.f32 %v1227, %v1233
        %v1236 = vld [vmem:[%s3] sm:$0xff]
        %v1237 = vld [vmem:[%s1085] sm:$0x1]
        %v1238 = vpack.c.bf16 %v1235, %v1235
        %v1239 = vld [vmem:[%s5] sm:$0xf]
        %v1240 = vld [vmem:[%s5 + $0x4] sm:$0xf]
        %v1241 = vld [vmem:[%s5 + $0x8] sm:$0xf]
        %v1242 = vld [vmem:[%s5 + $0xc] sm:$0xf]
        %v1243 = vld [vmem:[#allocation5] sm:$0x1]
        %v1245 = vlaneseq
        %v1246 = vshrl.u32 %v1245, 7
        %v1247 = vsub.s32 0, %v1246
        %v1248 = vrot.slane %v1243, %v1247
        %v1254 = vunpack.c.l.b16 %v1239
        %v1255 = vunpack.c.l.b16 %v1240
        %v1256 = vunpack.c.l.b16 %v1241
        %v1257 = vunpack.c.l.b16 %v1242
        %v1258 = vpack.c.b16 %v1255, %v1254
        %v1259 = vpack.c.b16 %v1257, %v1256
        %vm1262 = vcmask 261120
        %v1264 = vsel %vm1262, %v1238, 0
        %1266 = vmatprep.subr.bf16.mxu0 0
        %1267 = vmatpush1.bf16.msra.mxu0 0
        %1268 = vmatprep.subr.bf16.mxu0 0
        %1269 = vmatpush1.bf16.msra.mxu0 0
        %1270 = vmatprep.subr.bf16.mxu0 0
        %1271 = vmatpush1.bf16.msra.mxu0 0
        %1272 = vmatprep.subr.bf16.mxu0 0
        %1273 = vmatpush1.bf16.msra.mxu0 0
        %1274 = vmatprep.subr.bf16.mxu0 0
        %1275 = vmatpush1.bf16.msra.mxu0 0
        %1276 = vmatprep.subr.bf16.mxu0 0
        %1277 = vmatpush1.bf16.msra.mxu0 0
        %1278 = vmatprep.subr.bf16.mxu0 0
        %1279 = vmatpush1.bf16.msra.mxu0 %v1259
        %1280 = vmatprep.subr.bf16.mxu0 0
        %1281 = vmatpush1.bf16.msra.mxu0 %v1258
        %1282 = vmatprep.subr.bf16.mxu0 0
        %1283 = vmatpush2.bf16.msra.mxu0 0
        %1284 = vmatprep.subr.bf16.mxu0 0
        %1285 = vmatpush2.bf16.msra.mxu0 0
        %1286 = vmatprep.subr.bf16.mxu0 0
        %1287 = vmatpush2.bf16.msra.mxu0 0
        %1288 = vmatprep.subr.bf16.mxu0 0
        %1289 = vmatpush2.bf16.msra.mxu0 0
        %1290 = vmatprep.subr.bf16.mxu0 0
        %1291 = vmatpush2.bf16.msra.mxu0 0
        %1292 = vmatprep.subr.bf16.mxu0 0
        %1293 = vmatpush2.bf16.msra.mxu0 0
        %1294 = vmatprep.subr.bf16.mxu0 0
        %1295 = vmatpush2.bf16.msra.mxu0 0
        %1296 = vmatprep.subr.bf16.mxu0 0
        %1297 = vmatpush2.bf16.msra.mxu0 0
        %1298 = vmatprep.mubr.bf16.mxu0 0
        %1299 = vmatmul.mubr.bf16.gmra.mxu0 %v1264
        %v1300 = vpop.f32.mrf.mxu0
        %v1301 = vadd.f32 %v1248, %v1300
        %v1302 = vpop.f32.mrf.mxu0
        %v1303 = vpop.f32.mrf.mxu0
        %v1304 = vpop.f32.mrf.mxu0
        %1305 = vdwg.mxu0
        %v1306 = vpack.c.bf16 %v1301, %v1301
        %1308 = vrot.lane.b32.xlu0 %v1306, 96
        %v1309 = vpop.permute.xlu0 %1308
        %vm1310 = vcmask 64512
        %v1312 = vsel %vm1310, %v1306, 0
        %v1315 = vsel %vm1310, %v1309, 0
        %1317 = vmatprep.subr.bf16.mxu0 0
        %1318 = vmatpush1.bf16.xpose.msra.mxu0 0
        %1319 = vmatprep.subr.bf16.mxu0 0
        %1320 = vmatpush1.bf16.xpose.msra.mxu0 0
        %1321 = vmatprep.subr.bf16.mxu0 0
        %1322 = vmatpush1.bf16.xpose.msra.mxu0 0
        %1323 = vmatprep.subr.bf16.mxu0 0
        %1324 = vmatpush1.bf16.xpose.msra.mxu0 0
        %1325 = vmatprep.subr.bf16.mxu0 0
        %1326 = vmatpush1.bf16.xpose.msra.mxu0 0
        %1327 = vmatprep.subr.bf16.mxu0 0
        %1328 = vmatpush1.bf16.xpose.msra.mxu0 0
        %1329 = vmatprep.subr.bf16.mxu0 0
        %1330 = vmatpush1.bf16.xpose.msra.mxu0 0
        %1331 = vmatprep.subr.bf16.mxu0 0
        %1332 = vmatpush1.bf16.xpose.msra.mxu0 %v1315
        %1333 = vmatprep.subr.bf16.mxu0 0
        %1334 = vmatpush2.bf16.xpose.msra.mxu0 0
        %1335 = vmatprep.subr.bf16.mxu0 0
        %1336 = vmatpush2.bf16.xpose.msra.mxu0 0
        %1337 = vmatprep.subr.bf16.mxu0 0
        %1338 = vmatpush2.bf16.xpose.msra.mxu0 0
        %1339 = vmatprep.subr.bf16.mxu0 0
        %1340 = vmatpush2.bf16.xpose.msra.mxu0 0
        %1341 = vmatprep.subr.bf16.mxu0 0
        %1342 = vmatpush2.bf16.xpose.msra.mxu0 0
        %1343 = vmatprep.subr.bf16.mxu0 0
        %1344 = vmatpush2.bf16.xpose.msra.mxu0 0
        %1345 = vmatprep.subr.bf16.mxu0 0
        %1346 = vmatpush2.bf16.xpose.msra.mxu0 0
        %1347 = vmatprep.subr.bf16.mxu0 0
        %1348 = vmatpush2.bf16.xpose.msra.mxu0 0
        %1349 = vmatprep.mubr.bf16.mxu0 0
        %1350 = vmatmul.mubr.bf16.gmra.mxu0 %v1312
        %v1351 = vpop.f32.mrf.mxu0
        %v1352 = vadd.f32 %v1236, %v1351
        %v1353 = vpop.f32.mrf.mxu0
        %v1354 = vpop.f32.mrf.mxu0
        %v1355 = vpop.f32.mrf.mxu0
        %1356 = vdwg.mxu0
        %v1357 = vsel %vm1310, %v1352, -inf
        %1358 = vmax.xlane.f32.xlu0 %v1357
        %v1359 = vpop.xlane.xlu0 %1358
        %v1360 = vsub.f32 %v1352, %v1359
        %v1361 = vmul.f32 %v1360, 1.442695
        %v1362 = vpow.pop %v1361
        %v1363 = vsel %vm1310, %v1362, 0.0
        %1364 = vadd.xlane.f32.xlu0 %v1363
        %v1365 = vpop.xlane.xlu0 %1364
        %v1366 = vrcp.pop %v1365
        %v1367 = vmul.f32 %v1362, %v1366
        %v1368 = vpack.c.bf16 %v1367, %v1367
        %1369 = vrot.lane.b32.xlu0 %v1306, 64
        %v1370 = vpop.permute.xlu0 %1369
        %v1372 = vsel %vm1310, %v1368, 0
        %vm1374 = vcmask 1043456
        %v1376 = vsel %vm1374, %v1370, 0
        %1378 = vmatprep.subr.bf16.mxu0 0
        %1379 = vmatpush1.bf16.msra.mxu0 0
        %1380 = vmatprep.subr.bf16.mxu0 0
        %1381 = vmatpush1.bf16.msra.mxu0 0
        %1382 = vmatprep.subr.bf16.mxu0 0
        %1383 = vmatpush1.bf16.msra.mxu0 0
        %1384 = vmatprep.subr.bf16.mxu0 0
        %1385 = vmatpush1.bf16.msra.mxu0 0
        %1386 = vmatprep.subr.bf16.mxu0 0
        %1387 = vmatpush1.bf16.msra.mxu0 0
        %1388 = vmatprep.subr.bf16.mxu0 0
        %1389 = vmatpush1.bf16.msra.mxu0 0
        %1390 = vmatprep.subr.bf16.mxu0 0
        %1391 = vmatpush1.bf16.msra.mxu0 0
        %1392 = vmatprep.subr.bf16.mxu0 0
        %1393 = vmatpush1.bf16.msra.mxu0 %v1376
        %1394 = vmatprep.subr.bf16.mxu0 0
        %1395 = vmatpush2.bf16.msra.mxu0 0
        %1396 = vmatprep.subr.bf16.mxu0 0
        %1397 = vmatpush2.bf16.msra.mxu0 0
        %1398 = vmatprep.subr.bf16.mxu0 0
        %1399 = vmatpush2.bf16.msra.mxu0 0
        %1400 = vmatprep.subr.bf16.mxu0 0
        %1401 = vmatpush2.bf16.msra.mxu0 0
        %1402 = vmatprep.subr.bf16.mxu0 0
        %1403 = vmatpush2.bf16.msra.mxu0 0
        %1404 = vmatprep.subr.bf16.mxu0 0
        %1405 = vmatpush2.bf16.msra.mxu0 0
        %1406 = vmatprep.subr.bf16.mxu0 0
        %1407 = vmatpush2.bf16.msra.mxu0 0
        %1408 = vmatprep.subr.bf16.mxu0 0
        %1409 = vmatpush2.bf16.msra.mxu0 0
        %1410 = vmatprep.mubr.bf16.mxu0 0
        %1411 = vmatmul.mubr.bf16.gmra.mxu0 %v1372
        %v1412 = vpop.f32.mrf.mxu0
        %v1413 = vadd.f32 0.0, %v1412
        %v1414 = vpop.f32.mrf.mxu0
        %v1415 = vpop.f32.mrf.mxu0
        %v1416 = vpop.f32.mrf.mxu0
        %1417 = vdwg.mxu0
        %1418 = vrot.lane.b32.xlu0 %v1306, 120
        %v1419 = vpop.permute.xlu0 %1418
        %1420 = vrot.lane.b32.xlu0 %v1306, 88
        %v1421 = vpop.permute.xlu0 %1420
        %v1423 = vsel %vm1310, %v1419, 0
        %v1426 = vsel %vm1310, %v1421, 0
        %1428 = vmatprep.subr.bf16.mxu0 0
        %1429 = vmatpush1.bf16.xpose.msra.mxu0 0
        %1430 = vmatprep.subr.bf16.mxu0 0
        %1431 = vmatpush1.bf16.xpose.msra.mxu0 0
        %1432 = vmatprep.subr.bf16.mxu0 0
        %1433 = vmatpush1.bf16.xpose.msra.mxu0 0
        %1434 = vmatprep.subr.bf16.mxu0 0
        %1435 = vmatpush1.bf16.xpose.msra.mxu0 0
        %1436 = vmatprep.subr.bf16.mxu0 0
        %1437 = vmatpush1.bf16.xpose.msra.mxu0 0
        %1438 = vmatprep.subr.bf16.mxu0 0
        %1439 = vmatpush1.bf16.xpose.msra.mxu0 0
        %1440 = vmatprep.subr.bf16.mxu0 0
        %1441 = vmatpush1.bf16.xpose.msra.mxu0 0
        %1442 = vmatprep.subr.bf16.mxu0 0
        %1443 = vmatpush1.bf16.xpose.msra.mxu0 %v1426
        %1444 = vmatprep.subr.bf16.mxu0 0
        %1445 = vmatpush2.bf16.xpose.msra.mxu0 0
        %1446 = vmatprep.subr.bf16.mxu0 0
        %1447 = vmatpush2.bf16.xpose.msra.mxu0 0
        %1448 = vmatprep.subr.bf16.mxu0 0
        %1449 = vmatpush2.bf16.xpose.msra.mxu0 0
        %1450 = vmatprep.subr.bf16.mxu0 0
        %1451 = vmatpush2.bf16.xpose.msra.mxu0 0
        %1452 = vmatprep.subr.bf16.mxu0 0
        %1453 = vmatpush2.bf16.xpose.msra.mxu0 0
        %1454 = vmatprep.subr.bf16.mxu0 0
        %1455 = vmatpush2.bf16.xpose.msra.mxu0 0
        %1456 = vmatprep.subr.bf16.mxu0 0
        %1457 = vmatpush2.bf16.xpose.msra.mxu0 0
        %1458 = vmatprep.subr.bf16.mxu0 0
        %1459 = vmatpush2.bf16.xpose.msra.mxu0 0
        %1460 = vmatprep.mubr.bf16.mxu0 0
        %1461 = vmatmul.mubr.bf16.gmra.mxu0 %v1423
        %v1462 = vpop.f32.mrf.mxu0
        %v1463 = vadd.f32 %v1236, %v1462
        %v1464 = vpop.f32.mrf.mxu0
        %v1465 = vpop.f32.mrf.mxu0
        %v1466 = vpop.f32.mrf.mxu0
        %1467 = vdwg.mxu0
        %v1468 = vsel %vm1310, %v1463, -inf
        %1469 = vmax.xlane.f32.xlu0 %v1468
        %v1470 = vpop.xlane.xlu0 %1469
        %v1471 = vsub.f32 %v1463, %v1470
        %v1472 = vmul.f32 %v1471, 1.442695
        %v1473 = vpow.pop %v1472
        %v1474 = vsel %vm1310, %v1473, 0.0
        %1475 = vadd.xlane.f32.xlu0 %v1474
        %v1476 = vpop.xlane.xlu0 %1475
        %v1477 = vrcp.pop %v1476
        %v1478 = vmul.f32 %v1473, %v1477
        %v1479 = vpack.c.bf16 %v1478, %v1478
        %1480 = vrot.lane.b32.xlu0 %v1306, 56
        %v1481 = vpop.permute.xlu0 %1480
        %v1483 = vsel %vm1310, %v1479, 0
        %v1486 = vsel %vm1374, %v1481, 0
        %1488 = vmatprep.subr.bf16.mxu0 0
        %1489 = vmatpush1.bf16.msra.mxu0 0
        %1490 = vmatprep.subr.bf16.mxu0 0
        %1491 = vmatpush1.bf16.msra.mxu0 0
        %1492 = vmatprep.subr.bf16.mxu0 0
        %1493 = vmatpush1.bf16.msra.mxu0 0
        %1494 = vmatprep.subr.bf16.mxu0 0
        %1495 = vmatpush1.bf16.msra.mxu0 0
        %1496 = vmatprep.subr.bf16.mxu0 0
        %1497 = vmatpush1.bf16.msra.mxu0 0
        %1498 = vmatprep.subr.bf16.mxu0 0
        %1499 = vmatpush1.bf16.msra.mxu0 0
        %1500 = vmatprep.subr.bf16.mxu0 0
        %1501 = vmatpush1.bf16.msra.mxu0 0
        %1502 = vmatprep.subr.bf16.mxu0 0
        %1503 = vmatpush1.bf16.msra.mxu0 %v1486
        %1504 = vmatprep.subr.bf16.mxu0 0
        %1505 = vmatpush2.bf16.msra.mxu0 0
        %1506 = vmatprep.subr.bf16.mxu0 0
        %1507 = vmatpush2.bf16.msra.mxu0 0
        %1508 = vmatprep.subr.bf16.mxu0 0
        %1509 = vmatpush2.bf16.msra.mxu0 0
        %1510 = vmatprep.subr.bf16.mxu0 0
        %1511 = vmatpush2.bf16.msra.mxu0 0
        %1512 = vmatprep.subr.bf16.mxu0 0
        %1513 = vmatpush2.bf16.msra.mxu0 0
        %1514 = vmatprep.subr.bf16.mxu0 0
        %1515 = vmatpush2.bf16.msra.mxu0 0
        %1516 = vmatprep.subr.bf16.mxu0 0
        %1517 = vmatpush2.bf16.msra.mxu0 0
        %1518 = vmatprep.subr.bf16.mxu0 0
        %1519 = vmatpush2.bf16.msra.mxu0 0
        %1520 = vmatprep.mubr.bf16.mxu0 0
        %1521 = vmatmul.mubr.bf16.gmra.mxu0 %v1483
        %v1522 = vpop.f32.mrf.mxu0
        %v1523 = vadd.f32 0.0, %v1522
        %v1524 = vpop.f32.mrf.mxu0
        %v1525 = vpop.f32.mrf.mxu0
        %v1526 = vpop.f32.mrf.mxu0
        %1527 = vdwg.mxu0
        %1528 = vrot.lane.b32.xlu0 %v1306, 112
        %v1529 = vpop.permute.xlu0 %1528
        %1530 = vrot.lane.b32.xlu0 %v1306, 80
        %v1531 = vpop.permute.xlu0 %1530
        %v1533 = vsel %vm1310, %v1529, 0
        %v1536 = vsel %vm1310, %v1531, 0
        %1538 = vmatprep.subr.bf16.mxu0 0
        %1539 = vmatpush1.bf16.xpose.msra.mxu0 0
        %1540 = vmatprep.subr.bf16.mxu0 0
        %1541 = vmatpush1.bf16.xpose.msra.mxu0 0
        %1542 = vmatprep.subr.bf16.mxu0 0
        %1543 = vmatpush1.bf16.xpose.msra.mxu0 0
        %1544 = vmatprep.subr.bf16.mxu0 0
        %1545 = vmatpush1.bf16.xpose.msra.mxu0 0
        %1546 = vmatprep.subr.bf16.mxu0 0
        %1547 = vmatpush1.bf16.xpose.msra.mxu0 0
        %1548 = vmatprep.subr.bf16.mxu0 0
        %1549 = vmatpush1.bf16.xpose.msra.mxu0 0
        %1550 = vmatprep.subr.bf16.mxu0 0
        %1551 = vmatpush1.bf16.xpose.msra.mxu0 0
        %1552 = vmatprep.subr.bf16.mxu0 0
        %1553 = vmatpush1.bf16.xpose.msra.mxu0 %v1536
        %1554 = vmatprep.subr.bf16.mxu0 0
        %1555 = vmatpush2.bf16.xpose.msra.mxu0 0
        %1556 = vmatprep.subr.bf16.mxu0 0
        %1557 = vmatpush2.bf16.xpose.msra.mxu0 0
        %1558 = vmatprep.subr.bf16.mxu0 0
        %1559 = vmatpush2.bf16.xpose.msra.mxu0 0
        %1560 = vmatprep.subr.bf16.mxu0 0
        %1561 = vmatpush2.bf16.xpose.msra.mxu0 0
        %1562 = vmatprep.subr.bf16.mxu0 0
        %1563 = vmatpush2.bf16.xpose.msra.mxu0 0
        %1564 = vmatprep.subr.bf16.mxu0 0
        %1565 = vmatpush2.bf16.xpose.msra.mxu0 0
        %1566 = vmatprep.subr.bf16.mxu0 0
        %1567 = vmatpush2.bf16.xpose.msra.mxu0 0
        %1568 = vmatprep.subr.bf16.mxu0 0
        %1569 = vmatpush2.bf16.xpose.msra.mxu0 0
        %1570 = vmatprep.mubr.bf16.mxu0 0
        %1571 = vmatmul.mubr.bf16.gmra.mxu0 %v1533
        %v1572 = vpop.f32.mrf.mxu0
        %v1573 = vadd.f32 %v1236, %v1572
        %v1574 = vpop.f32.mrf.mxu0
        %v1575 = vpop.f32.mrf.mxu0
        %v1576 = vpop.f32.mrf.mxu0
        %1577 = vdwg.mxu0
        %v1578 = vsel %vm1310, %v1573, -inf
        %1579 = vmax.xlane.f32.xlu0 %v1578
        %v1580 = vpop.xlane.xlu0 %1579
        %v1581 = vsub.f32 %v1573, %v1580
        %v1582 = vmul.f32 %v1581, 1.442695
        %v1583 = vpow.pop %v1582
        %v1584 = vsel %vm1310, %v1583, 0.0
        %1585 = vadd.xlane.f32.xlu0 %v1584
        %v1586 = vpop.xlane.xlu0 %1585
        %v1587 = vrcp.pop %v1586
        %v1588 = vmul.f32 %v1583, %v1587
        %v1589 = vpack.c.bf16 %v1588, %v1588
        %1590 = vrot.lane.b32.xlu0 %v1306, 48
        %v1591 = vpop.permute.xlu0 %1590
        %v1593 = vsel %vm1310, %v1589, 0
        %v1596 = vsel %vm1374, %v1591, 0
        %1598 = vmatprep.subr.bf16.mxu0 0
        %1599 = vmatpush1.bf16.msra.mxu0 0
        %1600 = vmatprep.subr.bf16.mxu0 0
        %1601 = vmatpush1.bf16.msra.mxu0 0
        %1602 = vmatprep.subr.bf16.mxu0 0
        %1603 = vmatpush1.bf16.msra.mxu0 0
        %1604 = vmatprep.subr.bf16.mxu0 0
        %1605 = vmatpush1.bf16.msra.mxu0 0
        %1606 = vmatprep.subr.bf16.mxu0 0
        %1607 = vmatpush1.bf16.msra.mxu0 0
        %1608 = vmatprep.subr.bf16.mxu0 0
        %1609 = vmatpush1.bf16.msra.mxu0 0
        %1610 = vmatprep.subr.bf16.mxu0 0
        %1611 = vmatpush1.bf16.msra.mxu0 0
        %1612 = vmatprep.subr.bf16.mxu0 0
        %1613 = vmatpush1.bf16.msra.mxu0 %v1596
        %1614 = vmatprep.subr.bf16.mxu0 0
        %1615 = vmatpush2.bf16.msra.mxu0 0
        %1616 = vmatprep.subr.bf16.mxu0 0
        %1617 = vmatpush2.bf16.msra.mxu0 0
        %1618 = vmatprep.subr.bf16.mxu0 0
        %1619 = vmatpush2.bf16.msra.mxu0 0
        %1620 = vmatprep.subr.bf16.mxu0 0
        %1621 = vmatpush2.bf16.msra.mxu0 0
        %1622 = vmatprep.subr.bf16.mxu0 0
        %1623 = vmatpush2.bf16.msra.mxu0 0
        %1624 = vmatprep.subr.bf16.mxu0 0
        %1625 = vmatpush2.bf16.msra.mxu0 0
        %1626 = vmatprep.subr.bf16.mxu0 0
        %1627 = vmatpush2.bf16.msra.mxu0 0
        %1628 = vmatprep.subr.bf16.mxu0 0
        %1629 = vmatpush2.bf16.msra.mxu0 0
        %1630 = vmatprep.mubr.bf16.mxu0 0
        %1631 = vmatmul.mubr.bf16.gmra.mxu0 %v1593
        %v1632 = vpop.f32.mrf.mxu0
        %v1633 = vadd.f32 0.0, %v1632
        %v1634 = vpop.f32.mrf.mxu0
        %v1635 = vpop.f32.mrf.mxu0
        %v1636 = vpop.f32.mrf.mxu0
        %1637 = vdwg.mxu0
        %1638 = vrot.lane.b32.xlu0 %v1306, 104
        %v1639 = vpop.permute.xlu0 %1638
        %1640 = vrot.lane.b32.xlu0 %v1306, 72
        %v1641 = vpop.permute.xlu0 %1640
        %v1643 = vsel %vm1310, %v1639, 0
        %v1646 = vsel %vm1310, %v1641, 0
        %1648 = vmatprep.subr.bf16.mxu0 0
        %1649 = vmatpush1.bf16.xpose.msra.mxu0 0
        %1650 = vmatprep.subr.bf16.mxu0 0
        %1651 = vmatpush1.bf16.xpose.msra.mxu0 0
        %1652 = vmatprep.subr.bf16.mxu0 0
        %1653 = vmatpush1.bf16.xpose.msra.mxu0 0
        %1654 = vmatprep.subr.bf16.mxu0 0
        %1655 = vmatpush1.bf16.xpose.msra.mxu0 0
        %1656 = vmatprep.subr.bf16.mxu0 0
        %1657 = vmatpush1.bf16.xpose.msra.mxu0 0
        %1658 = vmatprep.subr.bf16.mxu0 0
        %1659 = vmatpush1.bf16.xpose.msra.mxu0 0
        %1660 = vmatprep.subr.bf16.mxu0 0
        %1661 = vmatpush1.bf16.xpose.msra.mxu0 0
        %1662 = vmatprep.subr.bf16.mxu0 0
        %1663 = vmatpush1.bf16.xpose.msra.mxu0 %v1646
        %1664 = vmatprep.subr.bf16.mxu0 0
        %1665 = vmatpush2.bf16.xpose.msra.mxu0 0
        %1666 = vmatprep.subr.bf16.mxu0 0
        %1667 = vmatpush2.bf16.xpose.msra.mxu0 0
        %1668 = vmatprep.subr.bf16.mxu0 0
        %1669 = vmatpush2.bf16.xpose.msra.mxu0 0
        %1670 = vmatprep.subr.bf16.mxu0 0
        %1671 = vmatpush2.bf16.xpose.msra.mxu0 0
        %1672 = vmatprep.subr.bf16.mxu0 0
        %1673 = vmatpush2.bf16.xpose.msra.mxu0 0
        %1674 = vmatprep.subr.bf16.mxu0 0
        %1675 = vmatpush2.bf16.xpose.msra.mxu0 0
        %1676 = vmatprep.subr.bf16.mxu0 0
        %1677 = vmatpush2.bf16.xpose.msra.mxu0 0
        %1678 = vmatprep.subr.bf16.mxu0 0
        %1679 = vmatpush2.bf16.xpose.msra.mxu0 0
        %1680 = vmatprep.mubr.bf16.mxu0 0
        %1681 = vmatmul.mubr.bf16.gmra.mxu0 %v1643
        %v1682 = vpop.f32.mrf.mxu0
        %v1683 = vadd.f32 %v1236, %v1682
        %v1684 = vpop.f32.mrf.mxu0
        %v1685 = vpop.f32.mrf.mxu0
        %v1686 = vpop.f32.mrf.mxu0
        %1687 = vdwg.mxu0
        %v1688 = vsel %vm1310, %v1683, -inf
        %1689 = vmax.xlane.f32.xlu0 %v1688
        %v1690 = vpop.xlane.xlu0 %1689
        %v1691 = vsub.f32 %v1683, %v1690
        %v1692 = vmul.f32 %v1691, 1.442695
        %v1693 = vpow.pop %v1692
        %v1694 = vsel %vm1310, %v1693, 0.0
        %1695 = vadd.xlane.f32.xlu0 %v1694
        %v1696 = vpop.xlane.xlu0 %1695
        %v1697 = vrcp.pop %v1696
        %v1698 = vmul.f32 %v1693, %v1697
        %v1699 = vpack.c.bf16 %v1698, %v1698
        %1700 = vrot.lane.b32.xlu0 %v1306, 40
        %v1701 = vpop.permute.xlu0 %1700
        %v1703 = vsel %vm1310, %v1699, 0
        %v1706 = vsel %vm1374, %v1701, 0
        %1708 = vmatprep.subr.bf16.mxu0 0
        %1709 = vmatpush1.bf16.msra.mxu0 0
        %1710 = vmatprep.subr.bf16.mxu0 0
        %1711 = vmatpush1.bf16.msra.mxu0 0
        %1712 = vmatprep.subr.bf16.mxu0 0
        %1713 = vmatpush1.bf16.msra.mxu0 0
        %1714 = vmatprep.subr.bf16.mxu0 0
        %1715 = vmatpush1.bf16.msra.mxu0 0
        %1716 = vmatprep.subr.bf16.mxu0 0
        %1717 = vmatpush1.bf16.msra.mxu0 0
        %1718 = vmatprep.subr.bf16.mxu0 0
        %1719 = vmatpush1.bf16.msra.mxu0 0
        %1720 = vmatprep.subr.bf16.mxu0 0
        %1721 = vmatpush1.bf16.msra.mxu0 0
        %1722 = vmatprep.subr.bf16.mxu0 0
        %1723 = vmatpush1.bf16.msra.mxu0 %v1706
        %1724 = vmatprep.subr.bf16.mxu0 0
        %1725 = vmatpush2.bf16.msra.mxu0 0
        %1726 = vmatprep.subr.bf16.mxu0 0
        %1727 = vmatpush2.bf16.msra.mxu0 0
        %1728 = vmatprep.subr.bf16.mxu0 0
        %1729 = vmatpush2.bf16.msra.mxu0 0
        %1730 = vmatprep.subr.bf16.mxu0 0
        %1731 = vmatpush2.bf16.msra.mxu0 0
        %1732 = vmatprep.subr.bf16.mxu0 0
        %1733 = vmatpush2.bf16.msra.mxu0 0
        %1734 = vmatprep.subr.bf16.mxu0 0
        %1735 = vmatpush2.bf16.msra.mxu0 0
        %1736 = vmatprep.subr.bf16.mxu0 0
        %1737 = vmatpush2.bf16.msra.mxu0 0
        %1738 = vmatprep.subr.bf16.mxu0 0
        %1739 = vmatpush2.bf16.msra.mxu0 0
        %1740 = vmatprep.mubr.bf16.mxu0 0
        %1741 = vmatmul.mubr.bf16.gmra.mxu0 %v1703
        %v1742 = vpop.f32.mrf.mxu0
        %v1743 = vadd.f32 0.0, %v1742
        %v1744 = vpop.f32.mrf.mxu0
        %v1745 = vpop.f32.mrf.mxu0
        %v1746 = vpop.f32.mrf.mxu0
        %1747 = vdwg.mxu0
        %1749 = vrot.lane.b32.xlu0 %v1523, 8
        %v1750 = vpop.permute.xlu0 %1749
        %1753 = vrot.lane.b32.xlu0 %v1633, 16
        %v1754 = vpop.permute.xlu0 %1753
        %1757 = vrot.lane.b32.xlu0 %v1743, 24
        %v1758 = vpop.permute.xlu0 %1757
        %v1760 = vsel %vm1310, %v1413, %v1750
        %vm1761 = vcmask 130048
        %v1762 = vsel %vm1761, %v1760, %v1754
        %vm1763 = vcmask 195584
        %v1764 = vsel %vm1763, %v1762, %v1758
        %v1765 = vpack.c.bf16 %v1764, %v1764
        %v1766 = vld [vmem:[%s7] sm:$0xf]
        %v1767 = vld [vmem:[%s7 + $0x4] sm:$0xf]
        %v1768 = vld [vmem:[%s7 + $0x8] sm:$0xf]
        %v1769 = vld [vmem:[%s7 + $0xc] sm:$0xf]
        %v1770 = vld [vmem:[#allocation8] sm:$0x1]
        %v1772 = vlaneseq
        %v1773 = vshrl.u32 %v1772, 7
        %v1774 = vsub.s32 0, %v1773
        %v1775 = vrot.slane %v1770, %v1774
        %v1781 = vunpack.c.l.b16 %v1766
        %v1782 = vunpack.c.l.b16 %v1767
        %v1783 = vunpack.c.l.b16 %v1768
        %v1784 = vunpack.c.l.b16 %v1769
        %v1785 = vpack.c.b16 %v1782, %v1781
        %v1786 = vpack.c.b16 %v1784, %v1783
        %v1790 = vsel %vm1262, %v1765, 0
        %1792 = vmatprep.subr.bf16.mxu0 0
        %1793 = vmatpush1.bf16.msra.mxu0 0
        %1794 = vmatprep.subr.bf16.mxu0 0
        %1795 = vmatpush1.bf16.msra.mxu0 0
        %1796 = vmatprep.subr.bf16.mxu0 0
        %1797 = vmatpush1.bf16.msra.mxu0 0
        %1798 = vmatprep.subr.bf16.mxu0 0
        %1799 = vmatpush1.bf16.msra.mxu0 0
        %1800 = vmatprep.subr.bf16.mxu0 0
        %1801 = vmatpush1.bf16.msra.mxu0 0
        %1802 = vmatprep.subr.bf16.mxu0 0
        %1803 = vmatpush1.bf16.msra.mxu0 0
        %1804 = vmatprep.subr.bf16.mxu0 0
        %1805 = vmatpush1.bf16.msra.mxu0 %v1786
        %1806 = vmatprep.subr.bf16.mxu0 0
        %1807 = vmatpush1.bf16.msra.mxu0 %v1785
        %1808 = vmatprep.subr.bf16.mxu0 0
        %1809 = vmatpush2.bf16.msra.mxu0 0
        %1810 = vmatprep.subr.bf16.mxu0 0
        %1811 = vmatpush2.bf16.msra.mxu0 0
        %1812 = vmatprep.subr.bf16.mxu0 0
        %1813 = vmatpush2.bf16.msra.mxu0 0
        %1814 = vmatprep.subr.bf16.mxu0 0
        %1815 = vmatpush2.bf16.msra.mxu0 0
        %1816 = vmatprep.subr.bf16.mxu0 0
        %1817 = vmatpush2.bf16.msra.mxu0 0
        %1818 = vmatprep.subr.bf16.mxu0 0
        %1819 = vmatpush2.bf16.msra.mxu0 0
        %1820 = vmatprep.subr.bf16.mxu0 0
        %1821 = vmatpush2.bf16.msra.mxu0 0
        %1822 = vmatprep.subr.bf16.mxu0 0
        %1823 = vmatpush2.bf16.msra.mxu0 0
        %1824 = vmatprep.mubr.bf16.mxu0 0
        %1825 = vmatmul.mubr.bf16.gmra.mxu0 %v1790
        %v1826 = vpop.f32.mrf.mxu0
        %v1827 = vadd.f32 %v1775, %v1826
        %v1828 = vpop.f32.mrf.mxu0
        %v1829 = vpop.f32.mrf.mxu0
        %v1830 = vpop.f32.mrf.mxu0
        %1831 = vdwg.mxu0
        %v1832 = vadd.f32 %v1235, %v1827
        %v1833 = vsel %vm1262, %v1832, 0.0
        %1834 = vadd.xlane.f32.xlu0 %v1833
        %v1835 = vpop.xlane.xlu0 %1834
        %v1836 = vrcp.pop 32.0
        %v1837 = vmul.f32 %v1835, %v1836
        %v1838 = vsub.f32 %v1832, %v1837
        %v1839 = vmul.f32 %v1838, %v1838
        %v1840 = vsel %vm1262, %v1839, 0.0
        %1841 = vadd.xlane.f32.xlu0 %v1840
        %v1842 = vpop.xlane.xlu0 %1841
        %v1843 = vmul.f32 %v1842, %v1836
        %v1844 = vadd.f32 %v1843, 1e-05
        %v1845 = vrsqrt.pop %v1844
        %v1846 = vmul.f32 %v1838, %v1845
        %v1847 = vld [vmem:[#allocation10] sm:$0x1]
        %v1849 = vlaneseq
        %v1850 = vshrl.u32 %v1849, 7
        %v1851 = vsub.s32 0, %v1850
        %v1852 = vrot.slane %v1847, %v1851
        %v1854 = vmul.f32 %v1846, %v1852
        %v1855 = vld [vmem:[#allocation11] sm:$0x1]
        %v1857 = vlaneseq
        %v1858 = vshrl.u32 %v1857, 7
        %v1859 = vsub.s32 0, %v1858
        %v1860 = vrot.slane %v1855, %v1859
        %v1862 = vadd.f32 %v1854, %v1860
        %v1863 = vpack.c.bf16 %v1862, %v1862
        %v1864 = vld [vmem:[%s11] sm:$0xf]
        %v1865 = vld [vmem:[%s11 + $0x4] sm:$0xf]
        %v1866 = vld [vmem:[%s11 + $0x8] sm:$0xf]
        %v1867 = vld [vmem:[%s11 + $0xc] sm:$0xf]
        %v1868 = vld [vmem:[#allocation13] sm:$0x1]
        %v1870 = vlaneseq
        %v1871 = vshrl.u32 %v1870, 7
        %v1872 = vsub.s32 0, %v1871
        %v1873 = vrot.slane %v1868, %v1872
        %v1879 = vunpack.c.l.b16 %v1864
        %v1880 = vunpack.c.l.b16 %v1865
        %v1881 = vunpack.c.l.b16 %v1866
        %v1882 = vunpack.c.l.b16 %v1867
        %v1883 = vpack.c.b16 %v1880, %v1879
        %v1884 = vpack.c.b16 %v1882, %v1881
        %v1888 = vsel %vm1262, %v1863, 0
        %1890 = vmatprep.subr.bf16.mxu0 0
        %1891 = vmatpush1.bf16.msra.mxu0 0
        %1892 = vmatprep.subr.bf16.mxu0 0
        %1893 = vmatpush1.bf16.msra.mxu0 0
        %1894 = vmatprep.subr.bf16.mxu0 0
        %1895 = vmatpush1.bf16.msra.mxu0 0
        %1896 = vmatprep.subr.bf16.mxu0 0
        %1897 = vmatpush1.bf16.msra.mxu0 0
        %1898 = vmatprep.subr.bf16.mxu0 0
        %1899 = vmatpush1.bf16.msra.mxu0 0
        %1900 = vmatprep.subr.bf16.mxu0 0
        %1901 = vmatpush1.bf16.msra.mxu0 0
        %1902 = vmatprep.subr.bf16.mxu0 0
        %1903 = vmatpush1.bf16.msra.mxu0 %v1884
        %1904 = vmatprep.subr.bf16.mxu0 0
        %1905 = vmatpush1.bf16.msra.mxu0 %v1883
        %1906 = vmatprep.subr.bf16.mxu0 0
        %1907 = vmatpush2.bf16.msra.mxu0 0
        %1908 = vmatprep.subr.bf16.mxu0 0
        %1909 = vmatpush2.bf16.msra.mxu0 0
        %1910 = vmatprep.subr.bf16.mxu0 0
        %1911 = vmatpush2.bf16.msra.mxu0 0
        %1912 = vmatprep.subr.bf16.mxu0 0
        %1913 = vmatpush2.bf16.msra.mxu0 0
        %1914 = vmatprep.subr.bf16.mxu0 0
        %1915 = vmatpush2.bf16.msra.mxu0 0
        %1916 = vmatprep.subr.bf16.mxu0 0
        %1917 = vmatpush2.bf16.msra.mxu0 0
        %1918 = vmatprep.subr.bf16.mxu0 0
        %1919 = vmatpush2.bf16.msra.mxu0 0
        %1920 = vmatprep.subr.bf16.mxu0 0
        %1921 = vmatpush2.bf16.msra.mxu0 0
        %1922 = vmatprep.mubr.bf16.mxu0 0
        %1923 = vmatmul.mubr.bf16.gmra.mxu0 %v1888
        %v1924 = vpop.f32.mrf.mxu0
        %v1925 = vadd.f32 %v1873, %v1924
        %v1926 = vpop.f32.mrf.mxu0
        %v1927 = vpop.f32.mrf.mxu0
        %v1928 = vpop.f32.mrf.mxu0
        %1929 = vdwg.mxu0
        %v1930 = vpack.c.bf16 %v1925, %v1925
        %v1931 = vld [vmem:[#allocation3] sm:$0xf]
        %v1932 = vld [vmem:[#allocation4] sm:$0xf]
        %v1934 = vlaneseq
        %v1935 = vshrl.u32 %v1934, 7
        %v1936 = vsub.s32 0, %v1935
        %v1937 = vrot.slane %v1237, %v1936
        %v1940 = vsel %vm1310, %v1930, 0
        %v1943 = vsel %vm1310, %v1931, 0
        %1945 = vmatprep.subr.bf16.mxu0 0
        %1946 = vmatpush1.bf16.xpose.msra.mxu0 0
        %1947 = vmatprep.subr.bf16.mxu0 0
        %1948 = vmatpush1.bf16.xpose.msra.mxu0 0
        %1949 = vmatprep.subr.bf16.mxu0 0
        %1950 = vmatpush1.bf16.xpose.msra.mxu0 0
        %1951 = vmatprep.subr.bf16.mxu0 0
        %1952 = vmatpush1.bf16.xpose.msra.mxu0 0
        %1953 = vmatprep.subr.bf16.mxu0 0
        %1954 = vmatpush1.bf16.xpose.msra.mxu0 0
        %1955 = vmatprep.subr.bf16.mxu0 0
        %1956 = vmatpush1.bf16.xpose.msra.mxu0 0
        %1957 = vmatprep.subr.bf16.mxu0 0
        %1958 = vmatpush1.bf16.xpose.msra.mxu0 0
        %1959 = vmatprep.subr.bf16.mxu0 0
        %1960 = vmatpush1.bf16.xpose.msra.mxu0 %v1943
        %1961 = vmatprep.subr.bf16.mxu0 0
        %1962 = vmatpush2.bf16.xpose.msra.mxu0 0
        %1963 = vmatprep.subr.bf16.mxu0 0
        %1964 = vmatpush2.bf16.xpose.msra.mxu0 0
        %1965 = vmatprep.subr.bf16.mxu0 0
        %1966 = vmatpush2.bf16.xpose.msra.mxu0 0
        %1967 = vmatprep.subr.bf16.mxu0 0
        %1968 = vmatpush2.bf16.xpose.msra.mxu0 0
        %1969 = vmatprep.subr.bf16.mxu0 0
        %1970 = vmatpush2.bf16.xpose.msra.mxu0 0
        %1971 = vmatprep.subr.bf16.mxu0 0
        %1972 = vmatpush2.bf16.xpose.msra.mxu0 0
        %1973 = vmatprep.subr.bf16.mxu0 0
        %1974 = vmatpush2.bf16.xpose.msra.mxu0 0
        %1975 = vmatprep.subr.bf16.mxu0 0
        %1976 = vmatpush2.bf16.xpose.msra.mxu0 0
        %1977 = vmatprep.mubr.bf16.mxu0 0
        %1978 = vmatmul.mubr.bf16.gmra.mxu0 %v1940
        %v1979 = vpop.f32.mrf.mxu0
        %v1980 = vadd.f32 %v1937, %v1979
        %v1981 = vpop.f32.mrf.mxu0
        %v1982 = vpop.f32.mrf.mxu0
        %v1983 = vpop.f32.mrf.mxu0
        %1984 = vdwg.mxu0
        %v1985 = vsel %vm1310, %v1980, -inf
        %1986 = vmax.xlane.f32.xlu0 %v1985
        %v1987 = vpop.xlane.xlu0 %1986
        %v1988 = vsub.f32 %v1980, %v1987
        %v1989 = vmul.f32 %v1988, 1.442695
        %v1990 = vpow.pop %v1989
        %v1991 = vsel %vm1310, %v1990, 0.0
        %1992 = vadd.xlane.f32.xlu0 %v1991
        %v1993 = vpop.xlane.xlu0 %1992
        %v1994 = vrcp.pop %v1993
        %v1995 = vmul.f32 %v1990, %v1994
        // Predicated region
        $region193: #{decoder_forward.1} parent=123 // pred_check
          %p1996 = pneg %p1090
        $region194: #{decoder_forward.1} parent=123 // pred_check_branch
          %1998 = sbr.rel (%p1996) target = $region196
        $region195: #{decoder_forward.1} parent=123 // pred_region
          %1999 = vst.msk [vmem:[%s1074] sm:$0xff] %vm1310, %v1995
        $region196: #{decoder_forward.1} parent=123 // pred_fallthru
          _
        %v2000 = vpack.c.bf16 %v1995, %v1995
        %v2002 = vsel %vm1310, %v2000, 0
        %v2005 = vsel %vm1374, %v1932, 0
        %2007 = vmatprep.subr.bf16.mxu0 0
        %2008 = vmatpush1.bf16.msra.mxu0 0
        %2009 = vmatprep.subr.bf16.mxu0 0
        %2010 = vmatpush1.bf16.msra.mxu0 0
        %2011 = vmatprep.subr.bf16.mxu0 0
        %2012 = vmatpush1.bf16.msra.mxu0 0
        %2013 = vmatprep.subr.bf16.mxu0 0
        %2014 = vmatpush1.bf16.msra.mxu0 0
        %2015 = vmatprep.subr.bf16.mxu0 0
        %2016 = vmatpush1.bf16.msra.mxu0 0
        %2017 = vmatprep.subr.bf16.mxu0 0
        %2018 = vmatpush1.bf16.msra.mxu0 0
        %2019 = vmatprep.subr.bf16.mxu0 0
        %2020 = vmatpush1.bf16.msra.mxu0 0
        %2021 = vmatprep.subr.bf16.mxu0 0
        %2022 = vmatpush1.bf16.msra.mxu0 %v2005
        %2023 = vmatprep.subr.bf16.mxu0 0
        %2024 = vmatpush2.bf16.msra.mxu0 0
        %2025 = vmatprep.subr.bf16.mxu0 0
        %2026 = vmatpush2.bf16.msra.mxu0 0
        %2027 = vmatprep.subr.bf16.mxu0 0
        %2028 = vmatpush2.bf16.msra.mxu0 0
        %2029 = vmatprep.subr.bf16.mxu0 0
        %2030 = vmatpush2.bf16.msra.mxu0 0
        %2031 = vmatprep.subr.bf16.mxu0 0
        %2032 = vmatpush2.bf16.msra.mxu0 0
        %2033 = vmatprep.subr.bf16.mxu0 0
        %2034 = vmatpush2.bf16.msra.mxu0 0
        %2035 = vmatprep.subr.bf16.mxu0 0
        %2036 = vmatpush2.bf16.msra.mxu0 0
        %2037 = vmatprep.subr.bf16.mxu0 0
        %2038 = vmatpush2.bf16.msra.mxu0 0
        %2039 = vmatprep.mubr.bf16.mxu0 0
        %2040 = vmatmul.mubr.bf16.gmra.mxu0 %v2002
        %v2041 = vpop.f32.mrf.mxu0
        %v2042 = vadd.f32 0.0, %v2041
        %v2043 = vpop.f32.mrf.mxu0
        %v2044 = vpop.f32.mrf.mxu0
        %v2045 = vpop.f32.mrf.mxu0
        %2046 = vdwg.mxu0
        %2048 = vrot.lane.b32.xlu0 %v1930, 120
        %v2049 = vpop.permute.xlu0 %2048
        %v2051 = vunpack.c.l.b16 %v1931
        %v2052 = vpack.c.b16 %v2051, %v2051
        %2053 = vrot.lane.b32.xlu0 %v2052, 120
        %v2054 = vpop.permute.xlu0 %2053
        %v2056 = vsel %vm1310, %v2049, 0
        %v2059 = vsel %vm1310, %v2054, 0
        %2061 = vmatprep.subr.bf16.mxu0 0
        %2062 = vmatpush1.bf16.xpose.msra.mxu0 0
        %2063 = vmatprep.subr.bf16.mxu0 0
        %2064 = vmatpush1.bf16.xpose.msra.mxu0 0
        %2065 = vmatprep.subr.bf16.mxu0 0
        %2066 = vmatpush1.bf16.xpose.msra.mxu0 0
        %2067 = vmatprep.subr.bf16.mxu0 0
        %2068 = vmatpush1.bf16.xpose.msra.mxu0 0
        %2069 = vmatprep.subr.bf16.mxu0 0
        %2070 = vmatpush1.bf16.xpose.msra.mxu0 0
        %2071 = vmatprep.subr.bf16.mxu0 0
        %2072 = vmatpush1.bf16.xpose.msra.mxu0 0
        %2073 = vmatprep.subr.bf16.mxu0 0
        %2074 = vmatpush1.bf16.xpose.msra.mxu0 0
        %2075 = vmatprep.subr.bf16.mxu0 0
        %2076 = vmatpush1.bf16.xpose.msra.mxu0 %v2059
        %2077 = vmatprep.subr.bf16.mxu0 0
        %2078 = vmatpush2.bf16.xpose.msra.mxu0 0
        %2079 = vmatprep.subr.bf16.mxu0 0
        %2080 = vmatpush2.bf16.xpose.msra.mxu0 0
        %2081 = vmatprep.subr.bf16.mxu0 0
        %2082 = vmatpush2.bf16.xpose.msra.mxu0 0
        %2083 = vmatprep.subr.bf16.mxu0 0
        %2084 = vmatpush2.bf16.xpose.msra.mxu0 0
        %2085 = vmatprep.subr.bf16.mxu0 0
        %2086 = vmatpush2.bf16.xpose.msra.mxu0 0
        %2087 = vmatprep.subr.bf16.mxu0 0
        %2088 = vmatpush2.bf16.xpose.msra.mxu0 0
        %2089 = vmatprep.subr.bf16.mxu0 0
        %2090 = vmatpush2.bf16.xpose.msra.mxu0 0
        %2091 = vmatprep.subr.bf16.mxu0 0
        %2092 = vmatpush2.bf16.xpose.msra.mxu0 0
        %2093 = vmatprep.mubr.bf16.mxu0 0
        %2094 = vmatmul.mubr.bf16.gmra.mxu0 %v2056
        %v2095 = vpop.f32.mrf.mxu0
        %v2096 = vadd.f32 %v1937, %v2095
        %v2097 = vpop.f32.mrf.mxu0
        %v2098 = vpop.f32.mrf.mxu0
        %v2099 = vpop.f32.mrf.mxu0
        %2100 = vdwg.mxu0
        %v2101 = vsel %vm1310, %v2096, -inf
        %2102 = vmax.xlane.f32.xlu0 %v2101
        %v2103 = vpop.xlane.xlu0 %2102
        %v2104 = vsub.f32 %v2096, %v2103
        %v2105 = vmul.f32 %v2104, 1.442695
        %v2106 = vpow.pop %v2105
        %v2107 = vsel %vm1310, %v2106, 0.0
        %2108 = vadd.xlane.f32.xlu0 %v2107
        %v2109 = vpop.xlane.xlu0 %2108
        %v2110 = vrcp.pop %v2109
        %v2111 = vmul.f32 %v2106, %v2110
        // Predicated region
        $region197: #{decoder_forward.1} parent=123 // pred_check
          %p2112 = pneg %p1090
        $region198: #{decoder_forward.1} parent=123 // pred_check_branch
          %2114 = sbr.rel (%p2112) target = $region200
        $region199: #{decoder_forward.1} parent=123 // pred_region
          %s2115 = scalar_lea.vmem %s1074, 8 [#allocation32]
          %2116 = vst.msk [vmem:[%s2115] sm:$0xff] %vm1310, %v2111
        $region200: #{decoder_forward.1} parent=123 // pred_fallthru
          _
        %v2117 = vpack.c.bf16 %v2111, %v2111
        %v2119 = vunpack.c.l.b16 %v1932
        %v2120 = vpack.c.b16 %v2119, %v2119
        %2121 = vrot.lane.b32.xlu0 %v2120, 120
        %v2122 = vpop.permute.xlu0 %2121
        %v2124 = vsel %vm1310, %v2117, 0
        %v2127 = vsel %vm1374, %v2122, 0
        %2129 = vmatprep.subr.bf16.mxu0 0
        %2130 = vmatpush1.bf16.msra.mxu0 0
        %2131 = vmatprep.subr.bf16.mxu0 0
        %2132 = vmatpush1.bf16.msra.mxu0 0
        %2133 = vmatprep.subr.bf16.mxu0 0
        %2134 = vmatpush1.bf16.msra.mxu0 0
        %2135 = vmatprep.subr.bf16.mxu0 0
        %2136 = vmatpush1.bf16.msra.mxu0 0
        %2137 = vmatprep.subr.bf16.mxu0 0
        %2138 = vmatpush1.bf16.msra.mxu0 0
        %2139 = vmatprep.subr.bf16.mxu0 0
        %2140 = vmatpush1.bf16.msra.mxu0 0
        %2141 = vmatprep.subr.bf16.mxu0 0
        %2142 = vmatpush1.bf16.msra.mxu0 0
        %2143 = vmatprep.subr.bf16.mxu0 0
        %2144 = vmatpush1.bf16.msra.mxu0 %v2127
        %2145 = vmatprep.subr.bf16.mxu0 0
        %2146 = vmatpush2.bf16.msra.mxu0 0
        %2147 = vmatprep.subr.bf16.mxu0 0
        %2148 = vmatpush2.bf16.msra.mxu0 0
        %2149 = vmatprep.subr.bf16.mxu0 0
        %2150 = vmatpush2.bf16.msra.mxu0 0
        %2151 = vmatprep.subr.bf16.mxu0 0
        %2152 = vmatpush2.bf16.msra.mxu0 0
        %2153 = vmatprep.subr.bf16.mxu0 0
        %2154 = vmatpush2.bf16.msra.mxu0 0
        %2155 = vmatprep.subr.bf16.mxu0 0
        %2156 = vmatpush2.bf16.msra.mxu0 0
        %2157 = vmatprep.subr.bf16.mxu0 0
        %2158 = vmatpush2.bf16.msra.mxu0 0
        %2159 = vmatprep.subr.bf16.mxu0 0
        %2160 = vmatpush2.bf16.msra.mxu0 0
        %2161 = vmatprep.mubr.bf16.mxu0 0
        %2162 = vmatmul.mubr.bf16.gmra.mxu0 %v2124
        %v2163 = vpop.f32.mrf.mxu0
        %v2164 = vadd.f32 0.0, %v2163
        %v2165 = vpop.f32.mrf.mxu0
        %v2166 = vpop.f32.mrf.mxu0
        %v2167 = vpop.f32.mrf.mxu0
        %2168 = vdwg.mxu0
        %2169 = vrot.lane.b32.xlu0 %v1930, 112
        %v2170 = vpop.permute.xlu0 %2169
        %2171 = vrot.lane.b32.xlu0 %v2052, 112
        %v2172 = vpop.permute.xlu0 %2171
        %v2174 = vsel %vm1310, %v2170, 0
        %v2177 = vsel %vm1310, %v2172, 0
        %2179 = vmatprep.subr.bf16.mxu0 0
        %2180 = vmatpush1.bf16.xpose.msra.mxu0 0
        %2181 = vmatprep.subr.bf16.mxu0 0
        %2182 = vmatpush1.bf16.xpose.msra.mxu0 0
        %2183 = vmatprep.subr.bf16.mxu0 0
        %2184 = vmatpush1.bf16.xpose.msra.mxu0 0
        %2185 = vmatprep.subr.bf16.mxu0 0
        %2186 = vmatpush1.bf16.xpose.msra.mxu0 0
        %2187 = vmatprep.subr.bf16.mxu0 0
        %2188 = vmatpush1.bf16.xpose.msra.mxu0 0
        %2189 = vmatprep.subr.bf16.mxu0 0
        %2190 = vmatpush1.bf16.xpose.msra.mxu0 0
        %2191 = vmatprep.subr.bf16.mxu0 0
        %2192 = vmatpush1.bf16.xpose.msra.mxu0 0
        %2193 = vmatprep.subr.bf16.mxu0 0
        %2194 = vmatpush1.bf16.xpose.msra.mxu0 %v2177
        %2195 = vmatprep.subr.bf16.mxu0 0
        %2196 = vmatpush2.bf16.xpose.msra.mxu0 0
        %2197 = vmatprep.subr.bf16.mxu0 0
        %2198 = vmatpush2.bf16.xpose.msra.mxu0 0
        %2199 = vmatprep.subr.bf16.mxu0 0
        %2200 = vmatpush2.bf16.xpose.msra.mxu0 0
        %2201 = vmatprep.subr.bf16.mxu0 0
        %2202 = vmatpush2.bf16.xpose.msra.mxu0 0
        %2203 = vmatprep.subr.bf16.mxu0 0
        %2204 = vmatpush2.bf16.xpose.msra.mxu0 0
        %2205 = vmatprep.subr.bf16.mxu0 0
        %2206 = vmatpush2.bf16.xpose.msra.mxu0 0
        %2207 = vmatprep.subr.bf16.mxu0 0
        %2208 = vmatpush2.bf16.xpose.msra.mxu0 0
        %2209 = vmatprep.subr.bf16.mxu0 0
        %2210 = vmatpush2.bf16.xpose.msra.mxu0 0
        %2211 = vmatprep.mubr.bf16.mxu0 0
        %2212 = vmatmul.mubr.bf16.gmra.mxu0 %v2174
        %v2213 = vpop.f32.mrf.mxu0
        %v2214 = vadd.f32 %v1937, %v2213
        %v2215 = vpop.f32.mrf.mxu0
        %v2216 = vpop.f32.mrf.mxu0
        %v2217 = vpop.f32.mrf.mxu0
        %2218 = vdwg.mxu0
        %v2219 = vsel %vm1310, %v2214, -inf
        %2220 = vmax.xlane.f32.xlu0 %v2219
        %v2221 = vpop.xlane.xlu0 %2220
        %v2222 = vsub.f32 %v2214, %v2221
        %v2223 = vmul.f32 %v2222, 1.442695
        %v2224 = vpow.pop %v2223
        %v2225 = vsel %vm1310, %v2224, 0.0
        %2226 = vadd.xlane.f32.xlu0 %v2225
        %v2227 = vpop.xlane.xlu0 %2226
        %v2228 = vrcp.pop %v2227
        %v2229 = vmul.f32 %v2224, %v2228
        // Predicated region
        $region201: #{decoder_forward.1} parent=123 // pred_check
          %p2230 = pneg %p1090
        $region202: #{decoder_forward.1} parent=123 // pred_check_branch
          %2232 = sbr.rel (%p2230) target = $region204
        $region203: #{decoder_forward.1} parent=123 // pred_region
          %s2233 = scalar_lea.vmem %s1074, 16 [#allocation32]
          %2234 = vst.msk [vmem:[%s2233] sm:$0xff] %vm1310, %v2229
        $region204: #{decoder_forward.1} parent=123 // pred_fallthru
          _
        %v2235 = vpack.c.bf16 %v2229, %v2229
        %2236 = vrot.lane.b32.xlu0 %v2120, 112
        %v2237 = vpop.permute.xlu0 %2236
        %v2239 = vsel %vm1310, %v2235, 0
        %v2242 = vsel %vm1374, %v2237, 0
        %2244 = vmatprep.subr.bf16.mxu0 0
        %2245 = vmatpush1.bf16.msra.mxu0 0
        %2246 = vmatprep.subr.bf16.mxu0 0
        %2247 = vmatpush1.bf16.msra.mxu0 0
        %2248 = vmatprep.subr.bf16.mxu0 0
        %2249 = vmatpush1.bf16.msra.mxu0 0
        %2250 = vmatprep.subr.bf16.mxu0 0
        %2251 = vmatpush1.bf16.msra.mxu0 0
        %2252 = vmatprep.subr.bf16.mxu0 0
        %2253 = vmatpush1.bf16.msra.mxu0 0
        %2254 = vmatprep.subr.bf16.mxu0 0
        %2255 = vmatpush1.bf16.msra.mxu0 0
        %2256 = vmatprep.subr.bf16.mxu0 0
        %2257 = vmatpush1.bf16.msra.mxu0 0
        %2258 = vmatprep.subr.bf16.mxu0 0
        %2259 = vmatpush1.bf16.msra.mxu0 %v2242
        %2260 = vmatprep.subr.bf16.mxu0 0
        %2261 = vmatpush2.bf16.msra.mxu0 0
        %2262 = vmatprep.subr.bf16.mxu0 0
        %2263 = vmatpush2.bf16.msra.mxu0 0
        %2264 = vmatprep.subr.bf16.mxu0 0
        %2265 = vmatpush2.bf16.msra.mxu0 0
        %2266 = vmatprep.subr.bf16.mxu0 0
        %2267 = vmatpush2.bf16.msra.mxu0 0
        %2268 = vmatprep.subr.bf16.mxu0 0
        %2269 = vmatpush2.bf16.msra.mxu0 0
        %2270 = vmatprep.subr.bf16.mxu0 0
        %2271 = vmatpush2.bf16.msra.mxu0 0
        %2272 = vmatprep.subr.bf16.mxu0 0
        %2273 = vmatpush2.bf16.msra.mxu0 0
        %2274 = vmatprep.subr.bf16.mxu0 0
        %2275 = vmatpush2.bf16.msra.mxu0 0
        %2276 = vmatprep.mubr.bf16.mxu0 0
        %2277 = vmatmul.mubr.bf16.gmra.mxu0 %v2239
        %v2278 = vpop.f32.mrf.mxu0
        %v2279 = vadd.f32 0.0, %v2278
        %v2280 = vpop.f32.mrf.mxu0
        %v2281 = vpop.f32.mrf.mxu0
        %v2282 = vpop.f32.mrf.mxu0
        %2283 = vdwg.mxu0
        %2284 = vrot.lane.b32.xlu0 %v1930, 104
        %v2285 = vpop.permute.xlu0 %2284
        %2286 = vrot.lane.b32.xlu0 %v2052, 104
        %v2287 = vpop.permute.xlu0 %2286
        %v2289 = vsel %vm1310, %v2285, 0
        %v2292 = vsel %vm1310, %v2287, 0
        %2294 = vmatprep.subr.bf16.mxu0 0
        %2295 = vmatpush1.bf16.xpose.msra.mxu0 0
        %2296 = vmatprep.subr.bf16.mxu0 0
        %2297 = vmatpush1.bf16.xpose.msra.mxu0 0
        %2298 = vmatprep.subr.bf16.mxu0 0
        %2299 = vmatpush1.bf16.xpose.msra.mxu0 0
        %2300 = vmatprep.subr.bf16.mxu0 0
        %2301 = vmatpush1.bf16.xpose.msra.mxu0 0
        %2302 = vmatprep.subr.bf16.mxu0 0
        %2303 = vmatpush1.bf16.xpose.msra.mxu0 0
        %2304 = vmatprep.subr.bf16.mxu0 0
        %2305 = vmatpush1.bf16.xpose.msra.mxu0 0
        %2306 = vmatprep.subr.bf16.mxu0 0
        %2307 = vmatpush1.bf16.xpose.msra.mxu0 0
        %2308 = vmatprep.subr.bf16.mxu0 0
        %2309 = vmatpush1.bf16.xpose.msra.mxu0 %v2292
        %2310 = vmatprep.subr.bf16.mxu0 0
        %2311 = vmatpush2.bf16.xpose.msra.mxu0 0
        %2312 = vmatprep.subr.bf16.mxu0 0
        %2313 = vmatpush2.bf16.xpose.msra.mxu0 0
        %2314 = vmatprep.subr.bf16.mxu0 0
        %2315 = vmatpush2.bf16.xpose.msra.mxu0 0
        %2316 = vmatprep.subr.bf16.mxu0 0
        %2317 = vmatpush2.bf16.xpose.msra.mxu0 0
        %2318 = vmatprep.subr.bf16.mxu0 0
        %2319 = vmatpush2.bf16.xpose.msra.mxu0 0
        %2320 = vmatprep.subr.bf16.mxu0 0
        %2321 = vmatpush2.bf16.xpose.msra.mxu0 0
        %2322 = vmatprep.subr.bf16.mxu0 0
        %2323 = vmatpush2.bf16.xpose.msra.mxu0 0
        %2324 = vmatprep.subr.bf16.mxu0 0
        %2325 = vmatpush2.bf16.xpose.msra.mxu0 0
        %2326 = vmatprep.mubr.bf16.mxu0 0
        %2327 = vmatmul.mubr.bf16.gmra.mxu0 %v2289
        %v2328 = vpop.f32.mrf.mxu0
        %v2329 = vadd.f32 %v1937, %v2328
        %v2330 = vpop.f32.mrf.mxu0
        %v2331 = vpop.f32.mrf.mxu0
        %v2332 = vpop.f32.mrf.mxu0
        %2333 = vdwg.mxu0
        %v2334 = vsel %vm1310, %v2329, -inf
        %2335 = vmax.xlane.f32.xlu0 %v2334
        %v2336 = vpop.xlane.xlu0 %2335
        %v2337 = vsub.f32 %v2329, %v2336
        %v2338 = vmul.f32 %v2337, 1.442695
        %v2339 = vpow.pop %v2338
        %v2340 = vsel %vm1310, %v2339, 0.0
        %2341 = vadd.xlane.f32.xlu0 %v2340
        %v2342 = vpop.xlane.xlu0 %2341
        %v2343 = vrcp.pop %v2342
        %v2344 = vmul.f32 %v2339, %v2343
        // Predicated region
        $region205: #{decoder_forward.1} parent=123 // pred_check
          %p2345 = pneg %p1090
        $region206: #{decoder_forward.1} parent=123 // pred_check_branch
          %2347 = sbr.rel (%p2345) target = $region208
        $region207: #{decoder_forward.1} parent=123 // pred_region
          %s2348 = scalar_lea.vmem %s1074, 24 [#allocation32]
          %2349 = vst.msk [vmem:[%s2348] sm:$0xff] %vm1310, %v2344
        $region208: #{decoder_forward.1} parent=123 // pred_fallthru
          _
        %v2350 = vpack.c.bf16 %v2344, %v2344
        %2351 = vrot.lane.b32.xlu0 %v2120, 104
        %v2352 = vpop.permute.xlu0 %2351
        %v2354 = vsel %vm1310, %v2350, 0
        %v2357 = vsel %vm1374, %v2352, 0
        %2359 = vmatprep.subr.bf16.mxu0 0
        %2360 = vmatpush1.bf16.msra.mxu0 0
        %2361 = vmatprep.subr.bf16.mxu0 0
        %2362 = vmatpush1.bf16.msra.mxu0 0
        %2363 = vmatprep.subr.bf16.mxu0 0
        %2364 = vmatpush1.bf16.msra.mxu0 0
        %2365 = vmatprep.subr.bf16.mxu0 0
        %2366 = vmatpush1.bf16.msra.mxu0 0
        %2367 = vmatprep.subr.bf16.mxu0 0
        %2368 = vmatpush1.bf16.msra.mxu0 0
        %2369 = vmatprep.subr.bf16.mxu0 0
        %2370 = vmatpush1.bf16.msra.mxu0 0
        %2371 = vmatprep.subr.bf16.mxu0 0
        %2372 = vmatpush1.bf16.msra.mxu0 0
        %2373 = vmatprep.subr.bf16.mxu0 0
        %2374 = vmatpush1.bf16.msra.mxu0 %v2357
        %2375 = vmatprep.subr.bf16.mxu0 0
        %2376 = vmatpush2.bf16.msra.mxu0 0
        %2377 = vmatprep.subr.bf16.mxu0 0
        %2378 = vmatpush2.bf16.msra.mxu0 0
        %2379 = vmatprep.subr.bf16.mxu0 0
        %2380 = vmatpush2.bf16.msra.mxu0 0
        %2381 = vmatprep.subr.bf16.mxu0 0
        %2382 = vmatpush2.bf16.msra.mxu0 0
        %2383 = vmatprep.subr.bf16.mxu0 0
        %2384 = vmatpush2.bf16.msra.mxu0 0
        %2385 = vmatprep.subr.bf16.mxu0 0
        %2386 = vmatpush2.bf16.msra.mxu0 0
        %2387 = vmatprep.subr.bf16.mxu0 0
        %2388 = vmatpush2.bf16.msra.mxu0 0
        %2389 = vmatprep.subr.bf16.mxu0 0
        %2390 = vmatpush2.bf16.msra.mxu0 0
        %2391 = vmatprep.mubr.bf16.mxu0 0
        %2392 = vmatmul.mubr.bf16.gmra.mxu0 %v2354
        %v2393 = vpop.f32.mrf.mxu0
        %v2394 = vadd.f32 0.0, %v2393
        %v2395 = vpop.f32.mrf.mxu0
        %v2396 = vpop.f32.mrf.mxu0
        %v2397 = vpop.f32.mrf.mxu0
        %2398 = vdwg.mxu0
        %2400 = vrot.lane.b32.xlu0 %v2164, 8
        %v2401 = vpop.permute.xlu0 %2400
        %2404 = vrot.lane.b32.xlu0 %v2279, 16
        %v2405 = vpop.permute.xlu0 %2404
        %2408 = vrot.lane.b32.xlu0 %v2394, 24
        %v2409 = vpop.permute.xlu0 %2408
        %v2411 = vsel %vm1310, %v2042, %v2401
        %v2412 = vsel %vm1761, %v2411, %v2405
        %v2413 = vsel %vm1763, %v2412, %v2409
        %v2414 = vpack.c.bf16 %v2413, %v2413
        %v2415 = vld [vmem:[#allocation17] sm:$0xf]
        %v2416 = vld [vmem:[#allocation17 + $0x4] sm:$0xf]
        %v2417 = vld [vmem:[#allocation17 + $0x8] sm:$0xf]
        %v2418 = vld [vmem:[#allocation17 + $0xc] sm:$0xf]
        %v2419 = vld [vmem:[#allocation19] sm:$0x1]
        %v2421 = vlaneseq
        %v2422 = vshrl.u32 %v2421, 7
        %v2423 = vsub.s32 0, %v2422
        %v2424 = vrot.slane %v2419, %v2423
        %v2430 = vunpack.c.l.b16 %v2415
        %v2431 = vunpack.c.l.b16 %v2416
        %v2432 = vunpack.c.l.b16 %v2417
        %v2433 = vunpack.c.l.b16 %v2418
        %v2434 = vpack.c.b16 %v2431, %v2430
        %v2435 = vpack.c.b16 %v2433, %v2432
        %v2439 = vsel %vm1262, %v2414, 0
        %2441 = vmatprep.subr.bf16.mxu0 0
        %2442 = vmatpush1.bf16.msra.mxu0 0
        %2443 = vmatprep.subr.bf16.mxu0 0
        %2444 = vmatpush1.bf16.msra.mxu0 0
        %2445 = vmatprep.subr.bf16.mxu0 0
        %2446 = vmatpush1.bf16.msra.mxu0 0
        %2447 = vmatprep.subr.bf16.mxu0 0
        %2448 = vmatpush1.bf16.msra.mxu0 0
        %2449 = vmatprep.subr.bf16.mxu0 0
        %2450 = vmatpush1.bf16.msra.mxu0 0
        %2451 = vmatprep.subr.bf16.mxu0 0
        %2452 = vmatpush1.bf16.msra.mxu0 0
        %2453 = vmatprep.subr.bf16.mxu0 0
        %2454 = vmatpush1.bf16.msra.mxu0 %v2435
        %2455 = vmatprep.subr.bf16.mxu0 0
        %2456 = vmatpush1.bf16.msra.mxu0 %v2434
        %2457 = vmatprep.subr.bf16.mxu0 0
        %2458 = vmatpush2.bf16.msra.mxu0 0
        %2459 = vmatprep.subr.bf16.mxu0 0
        %2460 = vmatpush2.bf16.msra.mxu0 0
        %2461 = vmatprep.subr.bf16.mxu0 0
        %2462 = vmatpush2.bf16.msra.mxu0 0
        %2463 = vmatprep.subr.bf16.mxu0 0
        %2464 = vmatpush2.bf16.msra.mxu0 0
        %2465 = vmatprep.subr.bf16.mxu0 0
        %2466 = vmatpush2.bf16.msra.mxu0 0
        %2467 = vmatprep.subr.bf16.mxu0 0
        %2468 = vmatpush2.bf16.msra.mxu0 0
        %2469 = vmatprep.subr.bf16.mxu0 0
        %2470 = vmatpush2.bf16.msra.mxu0 0
        %2471 = vmatprep.subr.bf16.mxu0 0
        %2472 = vmatpush2.bf16.msra.mxu0 0
        %2473 = vmatprep.mubr.bf16.mxu0 0
        %2474 = vmatmul.mubr.bf16.gmra.mxu0 %v2439
        %v2475 = vpop.f32.mrf.mxu0
        %v2476 = vadd.f32 %v2424, %v2475
        %v2477 = vpop.f32.mrf.mxu0
        %v2478 = vpop.f32.mrf.mxu0
        %v2479 = vpop.f32.mrf.mxu0
        %2480 = vdwg.mxu0
        %v2481 = vadd.f32 %v1862, %v2476
        %v2482 = vsel %vm1262, %v2481, 0.0
        %2483 = vadd.xlane.f32.xlu0 %v2482
        %v2484 = vpop.xlane.xlu0 %2483
        %v2485 = vmul.f32 %v2484, %v1836
        %v2486 = vsub.f32 %v2481, %v2485
        %v2487 = vmul.f32 %v2486, %v2486
        %v2488 = vsel %vm1262, %v2487, 0.0
        %2489 = vadd.xlane.f32.xlu0 %v2488
        %v2490 = vpop.xlane.xlu0 %2489
        %v2491 = vmul.f32 %v2490, %v1836
        %v2492 = vadd.f32 %v2491, 1e-05
        %v2493 = vrsqrt.pop %v2492
        %v2494 = vmul.f32 %v2486, %v2493
        %v2495 = vld [vmem:[#allocation20] sm:$0x1]
        %v2497 = vlaneseq
        %v2498 = vshrl.u32 %v2497, 7
        %v2499 = vsub.s32 0, %v2498
        %v2500 = vrot.slane %v2495, %v2499
        %v2502 = vmul.f32 %v2494, %v2500
        %v2503 = vld [vmem:[#allocation22] sm:$0x1]
        %v2505 = vlaneseq
        %v2506 = vshrl.u32 %v2505, 7
        %v2507 = vsub.s32 0, %v2506
        %v2508 = vrot.slane %v2503, %v2507
        %v2510 = vadd.f32 %v2502, %v2508
        %v2511 = vpack.c.bf16 %v2510, %v2510
        %v2512 = vld [vmem:[#allocation23] sm:$0xf]
        %v2513 = vld [vmem:[#allocation23 + $0x4] sm:$0xf]
        %v2514 = vld [vmem:[#allocation23 + $0x8] sm:$0xf]
        %v2515 = vld [vmem:[#allocation23 + $0xc] sm:$0xf]
        %v2516 = vld [vmem:[#allocation25] sm:$0x1]
        %v2518 = vlaneseq
        %v2519 = vshrl.u32 %v2518, 7
        %v2520 = vsub.s32 0, %v2519
        %v2521 = vrot.slane %v2516, %v2520
        %v2527 = vunpack.c.l.b16 %v2512
        %v2528 = vunpack.c.l.b16 %v2513
        %v2529 = vunpack.c.l.b16 %v2514
        %v2530 = vunpack.c.l.b16 %v2515
        %v2531 = vpack.c.b16 %v2528, %v2527
        %v2532 = vpack.c.b16 %v2530, %v2529
        %v2536 = vsel %vm1262, %v2511, 0
        %2538 = vmatprep.subr.bf16.mxu0 0
        %2539 = vmatpush1.bf16.msra.mxu0 0
        %2540 = vmatprep.subr.bf16.mxu0 0
        %2541 = vmatpush1.bf16.msra.mxu0 0
        %2542 = vmatprep.subr.bf16.mxu0 0
        %2543 = vmatpush1.bf16.msra.mxu0 0
        %2544 = vmatprep.subr.bf16.mxu0 0
        %2545 = vmatpush1.bf16.msra.mxu0 0
        %2546 = vmatprep.subr.bf16.mxu0 0
        %2547 = vmatpush1.bf16.msra.mxu0 0
        %2548 = vmatprep.subr.bf16.mxu0 0
        %2549 = vmatpush1.bf16.msra.mxu0 0
        %2550 = vmatprep.subr.bf16.mxu0 0
        %2551 = vmatpush1.bf16.msra.mxu0 %v2532
        %2552 = vmatprep.subr.bf16.mxu0 0
        %2553 = vmatpush1.bf16.msra.mxu0 %v2531
        %2554 = vmatprep.subr.bf16.mxu0 0
        %2555 = vmatpush2.bf16.msra.mxu0 0
        %2556 = vmatprep.subr.bf16.mxu0 0
        %2557 = vmatpush2.bf16.msra.mxu0 0
        %2558 = vmatprep.subr.bf16.mxu0 0
        %2559 = vmatpush2.bf16.msra.mxu0 0
        %2560 = vmatprep.subr.bf16.mxu0 0
        %2561 = vmatpush2.bf16.msra.mxu0 0
        %2562 = vmatprep.subr.bf16.mxu0 0
        %2563 = vmatpush2.bf16.msra.mxu0 0
        %2564 = vmatprep.subr.bf16.mxu0 0
        %2565 = vmatpush2.bf16.msra.mxu0 0
        %2566 = vmatprep.subr.bf16.mxu0 0
        %2567 = vmatpush2.bf16.msra.mxu0 0
        %2568 = vmatprep.subr.bf16.mxu0 0
        %2569 = vmatpush2.bf16.msra.mxu0 0
        %2570 = vmatprep.mubr.bf16.mxu0 0
        %2571 = vmatmul.mubr.bf16.gmra.mxu0 %v2536
        %v2572 = vpop.f32.mrf.mxu0
        %v2573 = vadd.f32 %v2521, %v2572
        %v2574 = vpop.f32.mrf.mxu0
        %v2575 = vpop.f32.mrf.mxu0
        %v2576 = vpop.f32.mrf.mxu0
        %2577 = vdwg.mxu0
        %v2578 = vmax.f32 %v2573, 0.0
        %v2579 = vpack.c.bf16 %v2578, %v2578
        %v2580 = vld [vmem:[%s22] sm:$0xf]
        %v2581 = vld [vmem:[%s22 + $0x4] sm:$0xf]
        %v2582 = vld [vmem:[%s22 + $0x8] sm:$0xf]
        %v2583 = vld [vmem:[%s22 + $0xc] sm:$0xf]
        %v2584 = vld [vmem:[%s22 + $0x10] sm:$0xf]
        %v2585 = vld [vmem:[%s22 + $0x14] sm:$0xf]
        %v2586 = vld [vmem:[%s22 + $0x18] sm:$0xf]
        %v2587 = vld [vmem:[%s22 + $0x1c] sm:$0xf]
        %v2588 = vld [vmem:[#allocation26] sm:$0x1]
        %v2590 = vlaneseq
        %v2591 = vshrl.u32 %v2590, 7
        %v2592 = vsub.s32 0, %v2591
        %v2593 = vrot.slane %v2588, %v2592
        %v2603 = vunpack.c.l.b16 %v2580
        %v2604 = vunpack.c.l.b16 %v2581
        %v2605 = vunpack.c.l.b16 %v2582
        %v2606 = vunpack.c.l.b16 %v2583
        %v2607 = vunpack.c.l.b16 %v2584
        %v2608 = vunpack.c.l.b16 %v2585
        %v2609 = vunpack.c.l.b16 %v2586
        %v2610 = vunpack.c.l.b16 %v2587
        %v2611 = vpack.c.b16 %v2604, %v2603
        %v2612 = vpack.c.b16 %v2606, %v2605
        %v2613 = vpack.c.b16 %v2608, %v2607
        %v2614 = vpack.c.b16 %v2610, %v2609
        %vm2619 = vcmask 523264
        %v2621 = vsel %vm2619, %v2579, 0
        %2623 = vmatprep.subr.bf16.mxu0 0
        %2624 = vmatpush1.bf16.msra.mxu0 0
        %2625 = vmatprep.subr.bf16.mxu0 0
        %2626 = vmatpush1.bf16.msra.mxu0 0
        %2627 = vmatprep.subr.bf16.mxu0 0
        %2628 = vmatpush1.bf16.msra.mxu0 0
        %2629 = vmatprep.subr.bf16.mxu0 0
        %2630 = vmatpush1.bf16.msra.mxu0 0
        %2631 = vmatprep.subr.bf16.mxu0 0
        %2632 = vmatpush1.bf16.msra.mxu0 %v2614
        %2633 = vmatprep.subr.bf16.mxu0 0
        %2634 = vmatpush1.bf16.msra.mxu0 %v2613
        %2635 = vmatprep.subr.bf16.mxu0 0
        %2636 = vmatpush1.bf16.msra.mxu0 %v2612
        %2637 = vmatprep.subr.bf16.mxu0 0
        %2638 = vmatpush1.bf16.msra.mxu0 %v2611
        %2639 = vmatprep.subr.bf16.mxu0 0
        %2640 = vmatpush2.bf16.msra.mxu0 0
        %2641 = vmatprep.subr.bf16.mxu0 0
        %2642 = vmatpush2.bf16.msra.mxu0 0
        %2643 = vmatprep.subr.bf16.mxu0 0
        %2644 = vmatpush2.bf16.msra.mxu0 0
        %2645 = vmatprep.subr.bf16.mxu0 0
        %2646 = vmatpush2.bf16.msra.mxu0 0
        %2647 = vmatprep.subr.bf16.mxu0 0
        %2648 = vmatpush2.bf16.msra.mxu0 0
        %2649 = vmatprep.subr.bf16.mxu0 0
        %2650 = vmatpush2.bf16.msra.mxu0 0
        %2651 = vmatprep.subr.bf16.mxu0 0
        %2652 = vmatpush2.bf16.msra.mxu0 0
        %2653 = vmatprep.subr.bf16.mxu0 0
        %2654 = vmatpush2.bf16.msra.mxu0 0
        %2655 = vmatprep.mubr.bf16.mxu0 0
        %2656 = vmatmul.mubr.bf16.gmra.mxu0 %v2621
        %v2657 = vpop.f32.mrf.mxu0
        %v2658 = vadd.f32 %v2593, %v2657
        %v2659 = vpop.f32.mrf.mxu0
        %v2660 = vpop.f32.mrf.mxu0
        %v2661 = vpop.f32.mrf.mxu0
        %2662 = vdwg.mxu0
        %v2663 = vadd.f32 %v2510, %v2658
        %v2664 = vsel %vm1262, %v2663, 0.0
        %2665 = vadd.xlane.f32.xlu0 %v2664
        %v2666 = vpop.xlane.xlu0 %2665
        %v2667 = vmul.f32 %v2666, %v1836
        %v2668 = vsub.f32 %v2663, %v2667
        %v2669 = vmul.f32 %v2668, %v2668
        %v2670 = vsel %vm1262, %v2669, 0.0
        %2671 = vadd.xlane.f32.xlu0 %v2670
        %v2672 = vpop.xlane.xlu0 %2671
        %v2673 = vmul.f32 %v2672, %v1836
        %v2674 = vadd.f32 %v2673, 1e-05
        %v2675 = vrsqrt.pop %v2674
        %v2676 = vmul.f32 %v2668, %v2675
        %v2677 = vld [vmem:[#allocation28] sm:$0x1]
        %v2679 = vlaneseq
        %v2680 = vshrl.u32 %v2679, 7
        %v2681 = vsub.s32 0, %v2680
        %v2682 = vrot.slane %v2677, %v2681
        %v2684 = vmul.f32 %v2676, %v2682
        %v2685 = vld [vmem:[#allocation29] sm:$0x1]
        %v2687 = vlaneseq
        %v2688 = vshrl.u32 %v2687, 7
        %v2689 = vsub.s32 0, %v2688
        %v2690 = vrot.slane %v2685, %v2689
        %v2692 = vadd.f32 %v2684, %v2690
        %2693 = vst.msk [vmem:[#allocation2] sm:$0xff] %vm1262, %v2692
        // Predicated region
        $region209: #{decoder_forward.1} parent=123 // pred_check
          %p2694 = pneg %p1090
        $region210: #{decoder_forward.1} parent=123 // pred_check_branch
          %2696 = sbr.rel (%p2694) target = $region212
        $region211: #{decoder_forward.1} parent=123 // pred_region
          %2697 = vst.msk [vmem:[%s1067] sm:$0xff] %vm1262, %v2692
        $region212: #{decoder_forward.1} parent=123 // pred_fallthru
          _
        %s2698 = sand.u32 %s640, 1
        %s2699 = scalar_lea.sflag [#allocation7], %s2698
        %s2700 = sand.u32 %s640, 1
        %s2701 = smul.addr %s2700, 8
        %s2702 = scalar_lea.vmem [#allocation31], %s2701
        %s2703 = sand.u32 %s666, 1
        %s2704 = scalar_lea.sflag [#allocation33], %s2703
        %s2705 = sand.u32 %s666, 1
        %s2706 = smul.addr %s2705, 32
        %s2707 = scalar_lea.vmem [#allocation32], %s2706
        // Predicated region
        $region213: #{decoder_forward.1} parent=123 // pred_check
          %p2708 = pneg %p650
        $region214: #{decoder_forward.1} parent=123 // pred_check_branch
          %2710 = sbr.rel (%p2708) target = $region216
        $region215: #{decoder_forward.1} parent=123 // pred_region
          %s2712 = ssub.s32 128, 128
          %2713 = vsyncadd %s2699, %s2712
          %s2714 = smul.addr %s58, 128
          %s2715 = scalar_lea.hbm %s26, %s2714
          %s2717 = sshll.u32 %s2702, 4
          %s2718 = int_to_ptr.vmem [resolvable:$true] %s2717
          %2720 = dma.vmem_to_hbm [thread:$0]  %s2718, 128, %s2715, %s2699
        $region216: #{decoder_forward.1} parent=123 // pred_fallthru
          _
        // Predicated region
        $region217: #{decoder_forward.1} parent=123 // pred_check
          %p2721 = pneg %p676
        $region218: #{decoder_forward.1} parent=123 // pred_check_branch
          %2723 = sbr.rel (%p2721) target = $region220
        $region219: #{decoder_forward.1} parent=123 // pred_region
          %s2725 = ssub.s32 512, 512
          %2726 = vsyncadd %s2704, %s2725
          %s2727 = smul.addr %s58, 4
          %s2728 = smul.addr %s2727, 128
          %s2729 = scalar_lea.hbm %s27, %s2728
          %s2730 = sshll.u32 %s2707, 4
          %s2731 = int_to_ptr.vmem [resolvable:$true] %s2730
          %2736 = dma.vmem_to_hbm [thread:$0]  %s2731, 512, %s2729, %s2704, 128, 128, 8
        $region220: #{decoder_forward.1} parent=123 // pred_fallthru
          _
      $region124: #{decoder_forward.1} parent=5 // pred_fallthru
        _
      %p2737 = scmp.le.s32.totalorder 2, %s49
      // Predicated region
      $region221: #{decoder_forward.1} parent=5 // pred_check
        %p2738 = pneg %p2737
      $region222: #{decoder_forward.1} parent=5 // pred_check_branch
        %2740 = sbr.rel (%p2738) target = $region224
      $region223: #{decoder_forward.1} parent=5 // pred_region
        %s2741 = ssub.s32 %s49, 2
        // Predicated region
        $region225: #{decoder_forward.1} parent=223 // pred_check
          %p2742 = pneg %p656
        $region226: #{decoder_forward.1} parent=223 // pred_check_branch
          %2744 = sbr.rel (%p2742) target = $region228
        $region227: #{decoder_forward.1} parent=223 // pred_region
          %s2745 = sand.u32 %s641, 1
          %s2746 = scalar_lea.sflag [#allocation7], %s2745
          %s2747 = sand.u32 %s641, 1
          %s2748 = smul.addr %s2747, 8
          %s2749 = scalar_lea.vmem [#allocation31], %s2748
          %2750 = dma.done %s2746, 128
        $region228: #{decoder_forward.1} parent=223 // pred_fallthru
          _
        // Predicated region
        $region229: #{decoder_forward.1} parent=223 // pred_check
          %p2751 = pneg %p682
        $region230: #{decoder_forward.1} parent=223 // pred_check_branch
          %2753 = sbr.rel (%p2751) target = $region232
        $region231: #{decoder_forward.1} parent=223 // pred_region
          %s2754 = sand.u32 %s667, 1
          %s2755 = scalar_lea.sflag [#allocation33], %s2754
          %s2756 = sand.u32 %s667, 1
          %s2757 = smul.addr %s2756, 32
          %s2758 = scalar_lea.vmem [#allocation32], %s2757
          %2759 = dma.done %s2755, 512
        $region232: #{decoder_forward.1} parent=223 // pred_fallthru
          _
      $region224: #{decoder_forward.1} parent=5 // pred_fallthru
        _
    $region6: #{decoder_forward.1} parent=1 // loop_footer
      %s53 = sadd.s32 1, %s49
    $region7: #{decoder_forward.1} parent=1 // loop_footer_branch
      %48 = sbr.rel target = $region3
    $region8: #{decoder_forward.1} parent=1 // loop_exit
      _
    %2760 = vsyncpa [#allocation6], 1
    %s2761 = scalar_lea.sflag [#allocation6], 1
    %2762 = vsyncpa %s2761, 1
    %2763 = vsyncpa [#allocation9], 1
    %2764 = vsyncpa [#allocation12], 1
    %2765 = vsyncpa [#allocation15], 1
    %2766 = vsyncpa [#allocation18], 1
    %2767 = vsyncpa [#allocation21], 1
    %2768 = vsyncpa [#allocation24], 1
    %2769 = vsyncpa [#allocation27], 1
    %2770 = vsyncpa [#allocation30], 1
    %2771 = vsyncpa [#allocation7], 1
    %s2772 = scalar_lea.sflag [#allocation7], 1
    %2773 = vsyncpa %s2772, 1
    %2774 = vsyncpa [#allocation33], 1
    %s2775 = scalar_lea.sflag [#allocation33], 1
    %2776 = vsyncpa %s2775, 1

</llo_original>
